<compile_context>
chip_gen: v7x
topology: tpu7x:2x2x1
jax: 0.10.0
libtpu: 0.0.40
codegen_flags: <defaults>
</compile_context>

<pallas_src>
import functools

import jax
import jax.numpy as jnp
from jax.experimental import pallas as pl
from jax.experimental.pallas import tpu as pltpu


def _head_major(a2d, num_heads, head_dim):
    """(rows, H*Dh) -> (H, rows, Dh): one relayout pass instead of H lane slices."""
    rows = a2d.shape[0]
    a3 = a2d.reshape(rows, num_heads, head_dim)
    if hasattr(pltpu, "einshape"):            # lane-layout-aware major-dim swap
        return pltpu.einshape("nhd->hnd", a3)
    return jnp.transpose(a3, (1, 0, 2))       # fallback relayout


def _default_vmem_limit():
    # Leave pipeline headroom: ~3/4 of per-core VMEM (48 MiB on v7x's 64 MiB,
    # 96 MiB on v5e/v6e's 128 MiB).  Never request the whole physical VMEM.
    try:
        cap = pltpu.get_tpu_info().vmem_capacity_bytes
        return int(min(cap * 3 // 4, 96 * 1024 * 1024))
    except Exception:
        return 48 * 1024 * 1024


def _choose_query_tile(n):
    # Prefer 256 (fills the v6e/v7x 256-wide MXU), then smaller powers of two.
    for t in (256, 128, 64, 32, 16):
        if n % t == 0:
            return t
    return n  # small / odd N: single tile covering the full sequence


def _attention_kernel(xq_ref, xkv_ref, wq_ref, wkv_ref, wp_ref, bp_ref, o_ref,
                      k_hm_ref, v_hm_ref, ctx_ref, *,
                      num_heads, head_dim, approx_recip):
    H, Dh = num_heads, head_dim
    C = H * Dh
    cdt = wq_ref.dtype               # MXU operand dtype (bf16 or f32); accumulate f32
    qi = pl.program_id(1)

    # ---- once per batch element (first query tile): K/V projection, head-major ----
    @pl.when(qi == 0)
    def _():
        xkv = xkv_ref[0]                                                  # (N, C)
        kv = jnp.dot(xkv, wkv_ref[...],
                     preferred_element_type=jnp.float32).astype(cdt)      # (N, 2C)
        k_hm_ref[...] = _head_major(kv[:, :C], H, Dh)                     # (H, N, Dh)
        v_hm_ref[...] = _head_major(kv[:, C:], H, Dh)                     # (H, N, Dh)

    # ---- query tile projection (qk scale pre-folded into Wq), head-major ----
    xq = xq_ref[0]                                                        # (TQ, C)
    q = jnp.dot(xq, wq_ref[...], preferred_element_type=jnp.float32).astype(cdt)
    q_hm = _head_major(q, H, Dh)                                          # (H, TQ, Dh)

    # ---- per-head attention over the full key range (exact softmax per row) ----
    for h in range(H):
        q_h = q_hm[h]                                                     # (TQ, Dh)
        k_h = k_hm_ref[h]                                                 # (N, Dh)
        v_h = v_hm_ref[h]                                                 # (N, Dh)
        # Contract the last dims of both operands (same dimension_numbers as the
        # upstream TPU flash-attention kernel) -- no explicit k transpose.
        s = jax.lax.dot_general(q_h, k_h, (((1,), (1,)), ((), ())),
                                preferred_element_type=jnp.float32)       # (TQ, N)
        s = s - jnp.max(s, axis=-1, keepdims=True)
        p = jnp.exp(s)                                                    # (TQ, N) f32
        r = jnp.sum(p, axis=-1, keepdims=True)                            # (TQ, 1) f32
        ctx = jnp.dot(p.astype(cdt), v_h,
                      preferred_element_type=jnp.float32)                 # (TQ, Dh)
        inv = pl.reciprocal(r, approx=True) if approx_recip else 1.0 / r
        ctx_ref[:, h * Dh:(h + 1) * Dh] = ctx * inv                       # f32 scratch

    # ---- single output projection (K = C, lane-dense output) + bias once ----
    out = jnp.dot(ctx_ref[...].astype(cdt), wp_ref[...],
                  preferred_element_type=jnp.float32)                     # (TQ, C)
    o_ref[0] = (out + bp_ref[...]).astype(o_ref.dtype)


def attention_forward(x, qkv_weight, proj_weight, proj_bias, *, num_heads,
                      qk_scale=None, tq=None, mxu_dtype=None, approx_recip=True):
    """x: (B, N, C); qkv_weight: (3C, C); proj_weight: (C, C); proj_bias: (C,).

    MXU operands default to bf16 (f32 accumulation everywhere); pass
    mxu_dtype=jnp.float32 and approx_recip=False for an exact path.
    Returns (out, None), matching the module's SDPA branch.
    """
    B, N, C = x.shape
    assert C % num_heads == 0, "dim must be divisible by num_heads"
    head_dim = C // num_heads
    scale = qk_scale if qk_scale is not None else head_dim ** (-0.5)

    cdt = jnp.dtype(jnp.bfloat16 if mxu_dtype is None else mxu_dtype)

    if tq is None:
        tq = _choose_query_tile(N)
    assert N % tq == 0, "query tile must divide the sequence length"
    nq = N // tq

    # nn.Linear stores weight as (out, in); pre-transpose so the kernel does x @ W.
    # Fold the qk scale into Wq (free at runtime).  Split Wq vs. fused Wkv because
    # Q is computed per query tile while K/V are computed once per batch element.
    w_all = qkv_weight.T.astype(jnp.float32)                  # (C, 3C)
    wq = (w_all[:, :C] * scale).astype(cdt)                   # (C, C)
    wkv = w_all[:, C:].astype(cdt)                            # (C, 2C)
    wp = proj_weight.T.astype(cdt)                            # (C, C)
    bp = proj_bias.astype(jnp.float32).reshape(1, C)          # (1, C) f32

    x_mxu = x.astype(cdt)

    kernel = functools.partial(_attention_kernel, num_heads=num_heads,
                               head_dim=head_dim, approx_recip=approx_recip)

    def _weight_spec(shape):
        index_map = lambda b, q, _s=shape: (0,) * len(_s)
        try:
            # Constant across the grid -> single-buffered (saves VMEM, esp. v7x).
            return pl.BlockSpec(shape, index_map, pipeline_mode=pl.Buffered(1))
        except Exception:
            return pl.BlockSpec(shape, index_map)

    out = pl.pallas_call(
        kernel,
        out_shape=jax.ShapeDtypeStruct((B, N, C), x.dtype),
        grid_spec=pltpu.PrefetchScalarGridSpec(
            num_scalar_prefetch=0,
            grid=(B, nq),
            in_specs=[
                pl.BlockSpec((1, tq, C), lambda b, q: (b, q, 0)),   # x: query tile
                pl.BlockSpec((1, N, C), lambda b, q: (b, 0, 0)),    # x: full seq (K/V src)
                _weight_spec((C, C)),                               # Wq (scale folded in)
                _weight_spec((C, 2 * C)),                           # Wkv fused
                _weight_spec((C, C)),                               # Wproj
                _weight_spec((1, C)),                               # proj bias (f32)
            ],
            out_specs=pl.BlockSpec((1, tq, C), lambda b, q: (b, q, 0)),
            scratch_shapes=[
                pltpu.VMEM((num_heads, N, head_dim), cdt),          # K head-major
                pltpu.VMEM((num_heads, N, head_dim), cdt),          # V head-major
                pltpu.VMEM((tq, C), jnp.float32),                   # ctx accumulator
            ],
        ),
        compiler_params=pltpu.CompilerParams(
            # Batch axis -> megacore-parallel.  Query-tile axis must stay
            # "arbitrary": the K/V scratch written at qi == 0 is carried across
            # the query tiles of the same batch element.
            dimension_semantics=("parallel", "arbitrary"),
            vmem_limit_bytes=_default_vmem_limit(),
        ),
    )(x_mxu, x_mxu, wq, wkv, wp, bp)

    # SDPA path of the PyTorch module returns attn=None.
    return out, None


def _reference(x, qkv_weight, proj_weight, proj_bias, *, num_heads):
    """Pure-JAX f32 reference mirroring the PyTorch forward (eval mode)."""
    B, N, C = x.shape
    Dh = C // num_heads
    scale = Dh ** (-0.5)
    x = x.astype(jnp.float32)
    qkv = jnp.einsum("bnc,dc->bnd", x, qkv_weight.astype(jnp.float32))    # (B, N, 3C)
    qkv = qkv.reshape(B, N, 3, num_heads, Dh).transpose(2, 0, 3, 1, 4)
    q, k, v = qkv[0], qkv[1], qkv[2]                                      # (B, H, N, Dh)
    attn = jax.nn.softmax(jnp.einsum("bhqd,bhkd->bhqk", q, k) * scale, axis=-1)
    ctx = jnp.einsum("bhqk,bhkd->bhqd", attn, v)
    ctx = ctx.transpose(0, 2, 1, 3).reshape(B, N, C)
    return jnp.einsum("bnc,dc->bnd", ctx, proj_weight.astype(jnp.float32)) + proj_bias


if __name__ == "__main__":
    # Small but lane-dense test shape: C is a multiple of 128 so the kernel's
    # production (unmasked-store) path is exercised; still only 2*32*128 tokens*dims.
    B, N, C = 2, 32, 128
    num_heads = 8                                        # head_dim = 16

    key = jax.random.PRNGKey(0)
    kx, kqkv, kp, kb = jax.random.split(key, 4)

    x = jax.random.normal(kx, (B, N, C), dtype=jnp.float32)
    # nn.Linear parameter shapes: (out_features, in_features).
    qkv_weight = 0.05 * jax.random.normal(kqkv, (3 * C, C), dtype=jnp.float32)
    proj_weight = 0.05 * jax.random.normal(kp, (C, C), dtype=jnp.float32)
    proj_bias = 0.01 * jax.random.normal(kb, (C,), dtype=jnp.float32)

    ref = _reference(x, qkv_weight, proj_weight, proj_bias, num_heads=num_heads)

    # 1) Exact path: f32 MXU operands, exact softmax division, 4 query tiles/batch
    #    (exercises the K/V scratch carry across query tiles).
    out_exact, attn = attention_forward(x, qkv_weight, proj_weight, proj_bias,
                                        num_heads=num_heads, tq=8,
                                        mxu_dtype=jnp.float32, approx_recip=False)
    out_exact = jax.block_until_ready(out_exact)
    assert out_exact.shape == (B, N, C)
    assert attn is None
    assert jnp.allclose(out_exact, ref, atol=5e-3, rtol=5e-3), "exact-path mismatch"

    # 2) Default path: bf16 MXU operands, approx reciprocal, auto query tile.
    out_def, _ = attention_forward(x, qkv_weight, proj_weight, proj_bias,
                                   num_heads=num_heads)
    out_def = jax.block_until_ready(out_def)
    assert out_def.dtype == x.dtype
    assert jnp.allclose(out_def, ref, atol=5e-2, rtol=5e-2), "bf16-MXU path mismatch"

    # 3) bf16 inputs / bf16 outputs, 2 query tiles per batch element.
    out_bf16, _ = attention_forward(x.astype(jnp.bfloat16), qkv_weight, proj_weight,
                                    proj_bias, num_heads=num_heads, tq=16)
    out_bf16 = jax.block_until_ready(out_bf16)
    assert out_bf16.dtype == jnp.bfloat16
    assert jnp.allclose(out_bf16.astype(jnp.float32), ref, atol=7e-2, rtol=7e-2), \
        "bf16 input path mismatch"

    print("KERNEL_OK")
</pallas_src>

<mosaic_0001>
module attributes {stable_mosaic.version = 11 : i64} {
  func.func @_attention_kernel(%arg0: i32, %arg1: i32, %arg2: memref<1x8x128xf32, #tpu.memory_space<vmem>>, %arg3: memref<1x32x128xf32, #tpu.memory_space<vmem>>, %arg4: memref<128x128xf32, #tpu.memory_space<vmem>>, %arg5: memref<128x256xf32, #tpu.memory_space<vmem>>, %arg6: memref<128x128xf32, #tpu.memory_space<vmem>>, %arg7: memref<1x128xf32, #tpu.memory_space<vmem>>, %arg8: memref<1x8x128xf32, #tpu.memory_space<vmem>>, %arg9: memref<8x32x16xf32, #tpu.memory_space<vmem>>, %arg10: memref<8x32x16xf32, #tpu.memory_space<vmem>>, %arg11: memref<8x128xf32, #tpu.memory_space<vmem>>) attributes {dimension_semantics = [#tpu.dimension_semantics<parallel>, #tpu.dimension_semantics<arbitrary>], iteration_bounds = array<i64: 2, 4>, scalar_prefetch = 0 : i64, scratch_operands = 3 : i64, tpu.core_type = #tpu.core_type<tc>, window_params = [{transform_indices = @transform_0, window_bounds = array<i64: 1, 8, 128>}, {transform_indices = @transform_1, window_bounds = array<i64: 1, 32, 128>}, {pipeline_mode = #tpu.pipeline_mode<synchronous>, transform_indices = @transform_2, window_bounds = array<i64: 128, 128>}, {pipeline_mode = #tpu.pipeline_mode<synchronous>, transform_indices = @transform_3, window_bounds = array<i64: 128, 256>}, {pipeline_mode = #tpu.pipeline_mode<synchronous>, transform_indices = @transform_4, window_bounds = array<i64: 128, 128>}, {pipeline_mode = #tpu.pipeline_mode<synchronous>, transform_indices = @transform_5, window_bounds = array<i64: 1, 128>}, {transform_indices = @transform_6, window_bounds = array<i64: 1, 8, 128>}]} {
    %c0_i32 = arith.constant 0 : i32
    %0 = arith.cmpi eq, %arg1, %c0_i32 : i32
    %1 = arith.extui %0 : i1 to i32
    %c0_i32_0 = arith.constant 0 : i32
    %2 = arith.cmpi ne, %1, %c0_i32_0 : i32
    scf.if %2 {
      %c0_105 = arith.constant 0 : index
      %c0_106 = arith.constant 0 : index
      %c0_107 = arith.constant 0 : index
      %178 = vector.load %arg3[%c0_105, %c0_106, %c0_107] : memref<1x32x128xf32, #tpu.memory_space<vmem>>, vector<1x32x128xf32>
      %179 = vector.shape_cast %178 : vector<1x32x128xf32> to vector<32x128xf32>
      %c0_108 = arith.constant 0 : index
      %c0_109 = arith.constant 0 : index
      %180 = vector.load %arg5[%c0_108, %c0_109] : memref<128x256xf32, #tpu.memory_space<vmem>>, vector<128x256xf32>
      %cst_110 = arith.constant dense<0.000000e+00> : vector<32x256xf32>
      %181 = tpu.matmul %179, %180, %cst_110 {dimension_numbers = #tpu.dot_dimension_numbers<[1], [0], [0], [1], [0, 0, 1, 1], [], []>} : vector<32x128xf32>, vector<128x256xf32>, vector<32x256xf32> -> vector<32x256xf32>
      %182 = vector.extract_strided_slice %181 {offsets = [0, 0], sizes = [32, 128], strides = [1, 1]} : vector<32x256xf32> to vector<32x128xf32>
      %183 = vector.shape_cast %182 : vector<32x128xf32> to vector<32x8x16xf32>
      %184 = tpu.transpose %183, [1, 0, 2] : vector<32x8x16xf32> -> vector<8x32x16xf32>
      %c0_111 = arith.constant 0 : index
      %c0_112 = arith.constant 0 : index
      %c0_113 = arith.constant 0 : index
      %185 = vector.load %arg9[%c0_111, %c0_112, %c0_113] : memref<8x32x16xf32, #tpu.memory_space<vmem>>, vector<8x32x16xf32>
      tpu.vector_store %arg9[%c0_111, %c0_112, %c0_113], %184 {strides = array<i32>} : memref<8x32x16xf32, #tpu.memory_space<vmem>>, vector<8x32x16xf32>,
      %186 = vector.extract_strided_slice %181 {offsets = [0, 128], sizes = [32, 128], strides = [1, 1]} : vector<32x256xf32> to vector<32x128xf32>
      %187 = vector.shape_cast %186 : vector<32x128xf32> to vector<32x8x16xf32>
      %188 = tpu.transpose %187, [1, 0, 2] : vector<32x8x16xf32> -> vector<8x32x16xf32>
      %c0_114 = arith.constant 0 : index
      %c0_115 = arith.constant 0 : index
      %c0_116 = arith.constant 0 : index
      %189 = vector.load %arg10[%c0_114, %c0_115, %c0_116] : memref<8x32x16xf32, #tpu.memory_space<vmem>>, vector<8x32x16xf32>
      tpu.vector_store %arg10[%c0_114, %c0_115, %c0_116], %188 {strides = array<i32>} : memref<8x32x16xf32, #tpu.memory_space<vmem>>, vector<8x32x16xf32>,
    } else {
    }
    %c0 = arith.constant 0 : index
    %c0_1 = arith.constant 0 : index
    %c0_2 = arith.constant 0 : index
    %3 = vector.load %arg2[%c0, %c0_1, %c0_2] : memref<1x8x128xf32, #tpu.memory_space<vmem>>, vector<1x8x128xf32>
    %4 = vector.shape_cast %3 : vector<1x8x128xf32> to vector<8x128xf32>
    %c0_3 = arith.constant 0 : index
    %c0_4 = arith.constant 0 : index
    %5 = vector.load %arg4[%c0_3, %c0_4] : memref<128x128xf32, #tpu.memory_space<vmem>>, vector<128x128xf32>
    %cst = arith.constant dense<0.000000e+00> : vector<8x128xf32>
    %6 = tpu.matmul %4, %5, %cst {dimension_numbers = #tpu.dot_dimension_numbers<[1], [0], [0], [1], [0, 0, 1, 1], [], []>} : vector<8x128xf32>, vector<128x128xf32>, vector<8x128xf32> -> vector<8x128xf32>
    %7 = vector.shape_cast %6 : vector<8x128xf32> to vector<8x8x16xf32>
    %8 = tpu.transpose %7, [1, 0, 2] : vector<8x8x16xf32> -> vector<8x8x16xf32>
    %9 = vector.extract_strided_slice %8 {offsets = [0, 0, 0], sizes = [1, 8, 16], strides = [1, 1, 1]} : vector<8x8x16xf32> to vector<1x8x16xf32>
    %10 = vector.shape_cast %9 : vector<1x8x16xf32> to vector<8x16xf32>
    %c0_5 = arith.constant 0 : index
    %c0_6 = arith.constant 0 : index
    %c0_7 = arith.constant 0 : index
    %11 = vector.load %arg9[%c0_5, %c0_6, %c0_7] : memref<8x32x16xf32, #tpu.memory_space<vmem>>, vector<1x32x16xf32>
    %12 = vector.shape_cast %11 : vector<1x32x16xf32> to vector<32x16xf32>
    %c0_8 = arith.constant 0 : index
    %c0_9 = arith.constant 0 : index
    %c0_10 = arith.constant 0 : index
    %13 = vector.load %arg10[%c0_8, %c0_9, %c0_10] : memref<8x32x16xf32, #tpu.memory_space<vmem>>, vector<1x32x16xf32>
    %14 = vector.shape_cast %13 : vector<1x32x16xf32> to vector<32x16xf32>
    %cst_11 = arith.constant dense<0.000000e+00> : vector<8x32xf32>
    %15 = tpu.matmul %10, %12, %cst_11 {dimension_numbers = #tpu.dot_dimension_numbers<[1], [1], [0], [0], [0, 0, 1, 0], [], []>} : vector<8x16xf32>, vector<32x16xf32>, vector<8x32xf32> -> vector<8x32xf32>
    %cst_12 = arith.constant dense<0xFF800000> : vector<8xf32>
    %16 = vector.multi_reduction <maximumf>, %15, %cst_12 [1] : vector<8x32xf32> to vector<8xf32>
    %17 = vector.shape_cast %16 : vector<8xf32> to vector<8x1xf32>
    %18 = vector.broadcast %17 : vector<8x1xf32> to vector<8x32xf32>
    %19 = arith.subf %15, %18 : vector<8x32xf32>
    %20 = math.exp %19 : vector<8x32xf32>
    %cst_13 = arith.constant dense<0.000000e+00> : vector<8xf32>
    %21 = vector.multi_reduction <add>, %20, %cst_13 [1] : vector<8x32xf32> to vector<8xf32>
    %22 = vector.shape_cast %21 : vector<8xf32> to vector<8x1xf32>
    %cst_14 = arith.constant dense<0.000000e+00> : vector<8x16xf32>
    %23 = tpu.matmul %20, %14, %cst_14 {dimension_numbers = #tpu.dot_dimension_numbers<[1], [0], [0], [1], [0, 0, 1, 1], [], []>} : vector<8x32xf32>, vector<32x16xf32>, vector<8x16xf32> -> vector<8x16xf32>
    %cst_15 = arith.constant 1.000000e+00 : f32
    %24 = vector.broadcast %cst_15 : f32 to vector<8x1xf32>
    %25 = arith.divf %24, %22 : vector<8x1xf32>
    %26 = vector.broadcast %25 : vector<8x1xf32> to vector<8x16xf32>
    %27 = arith.mulf %23, %26 : vector<8x16xf32>
    %c0_16 = arith.constant 0 : index
    %c0_17 = arith.constant 0 : index
    %28 = vector.load %arg11[%c0_16, %c0_17] : memref<8x128xf32, #tpu.memory_space<vmem>>, vector<8x16xf32>
    tpu.vector_store %arg11[%c0_16, %c0_17], %27 {strides = array<i32>} : memref<8x128xf32, #tpu.memory_space<vmem>>, vector<8x16xf32>,
    %29 = vector.extract_strided_slice %8 {offsets = [1, 0, 0], sizes = [1, 8, 16], strides = [1, 1, 1]} : vector<8x8x16xf32> to vector<1x8x16xf32>
    %30 = vector.shape_cast %29 : vector<1x8x16xf32> to vector<8x16xf32>
    %c1 = arith.constant 1 : index
    %c0_18 = arith.constant 0 : index
    %c0_19 = arith.constant 0 : index
    %31 = vector.load %arg9[%c1, %c0_18, %c0_19] : memref<8x32x16xf32, #tpu.memory_space<vmem>>, vector<1x32x16xf32>
    %32 = vector.shape_cast %31 : vector<1x32x16xf32> to vector<32x16xf32>
    %c1_20 = arith.constant 1 : index
    %c0_21 = arith.constant 0 : index
    %c0_22 = arith.constant 0 : index
    %33 = vector.load %arg10[%c1_20, %c0_21, %c0_22] : memref<8x32x16xf32, #tpu.memory_space<vmem>>, vector<1x32x16xf32>
    %34 = vector.shape_cast %33 : vector<1x32x16xf32> to vector<32x16xf32>
    %cst_23 = arith.constant dense<0.000000e+00> : vector<8x32xf32>
    %35 = tpu.matmul %30, %32, %cst_23 {dimension_numbers = #tpu.dot_dimension_numbers<[1], [1], [0], [0], [0, 0, 1, 0], [], []>} : vector<8x16xf32>, vector<32x16xf32>, vector<8x32xf32> -> vector<8x32xf32>
    %cst_24 = arith.constant dense<0xFF800000> : vector<8xf32>
    %36 = vector.multi_reduction <maximumf>, %35, %cst_24 [1] : vector<8x32xf32> to vector<8xf32>
    %37 = vector.shape_cast %36 : vector<8xf32> to vector<8x1xf32>
    %38 = vector.broadcast %37 : vector<8x1xf32> to vector<8x32xf32>
    %39 = arith.subf %35, %38 : vector<8x32xf32>
    %40 = math.exp %39 : vector<8x32xf32>
    %cst_25 = arith.constant dense<0.000000e+00> : vector<8xf32>
    %41 = vector.multi_reduction <add>, %40, %cst_25 [1] : vector<8x32xf32> to vector<8xf32>
    %42 = vector.shape_cast %41 : vector<8xf32> to vector<8x1xf32>
    %cst_26 = arith.constant dense<0.000000e+00> : vector<8x16xf32>
    %43 = tpu.matmul %40, %34, %cst_26 {dimension_numbers = #tpu.dot_dimension_numbers<[1], [0], [0], [1], [0, 0, 1, 1], [], []>} : vector<8x32xf32>, vector<32x16xf32>, vector<8x16xf32> -> vector<8x16xf32>
    %cst_27 = arith.constant 1.000000e+00 : f32
    %44 = vector.broadcast %cst_27 : f32 to vector<8x1xf32>
    %45 = arith.divf %44, %42 : vector<8x1xf32>
    %46 = vector.broadcast %45 : vector<8x1xf32> to vector<8x16xf32>
    %47 = arith.mulf %43, %46 : vector<8x16xf32>
    %c0_28 = arith.constant 0 : index
    %c16 = arith.constant 16 : index
    %48 = vector.load %arg11[%c0_28, %c16] : memref<8x128xf32, #tpu.memory_space<vmem>>, vector<8x16xf32>
    tpu.vector_store %arg11[%c0_28, %c16], %47 {strides = array<i32>} : memref<8x128xf32, #tpu.memory_space<vmem>>, vector<8x16xf32>,
    %49 = vector.extract_strided_slice %8 {offsets = [2, 0, 0], sizes = [1, 8, 16], strides = [1, 1, 1]} : vector<8x8x16xf32> to vector<1x8x16xf32>
    %50 = vector.shape_cast %49 : vector<1x8x16xf32> to vector<8x16xf32>
    %c2 = arith.constant 2 : index
    %c0_29 = arith.constant 0 : index
    %c0_30 = arith.constant 0 : index
    %51 = vector.load %arg9[%c2, %c0_29, %c0_30] : memref<8x32x16xf32, #tpu.memory_space<vmem>>, vector<1x32x16xf32>
    %52 = vector.shape_cast %51 : vector<1x32x16xf32> to vector<32x16xf32>
    %c2_31 = arith.constant 2 : index
    %c0_32 = arith.constant 0 : index
    %c0_33 = arith.constant 0 : index
    %53 = vector.load %arg10[%c2_31, %c0_32, %c0_33] : memref<8x32x16xf32, #tpu.memory_space<vmem>>, vector<1x32x16xf32>
    %54 = vector.shape_cast %53 : vector<1x32x16xf32> to vector<32x16xf32>
    %cst_34 = arith.constant dense<0.000000e+00> : vector<8x32xf32>
    %55 = tpu.matmul %50, %52, %cst_34 {dimension_numbers = #tpu.dot_dimension_numbers<[1], [1], [0], [0], [0, 0, 1, 0], [], []>} : vector<8x16xf32>, vector<32x16xf32>, vector<8x32xf32> -> vector<8x32xf32>
    %cst_35 = arith.constant dense<0xFF800000> : vector<8xf32>
    %56 = vector.multi_reduction <maximumf>, %55, %cst_35 [1] : vector<8x32xf32> to vector<8xf32>
    %57 = vector.shape_cast %56 : vector<8xf32> to vector<8x1xf32>
    %58 = vector.broadcast %57 : vector<8x1xf32> to vector<8x32xf32>
    %59 = arith.subf %55, %58 : vector<8x32xf32>
    %60 = math.exp %59 : vector<8x32xf32>
    %cst_36 = arith.constant dense<0.000000e+00> : vector<8xf32>
    %61 = vector.multi_reduction <add>, %60, %cst_36 [1] : vector<8x32xf32> to vector<8xf32>
    %62 = vector.shape_cast %61 : vector<8xf32> to vector<8x1xf32>
    %cst_37 = arith.constant dense<0.000000e+00> : vector<8x16xf32>
    %63 = tpu.matmul %60, %54, %cst_37 {dimension_numbers = #tpu.dot_dimension_numbers<[1], [0], [0], [1], [0, 0, 1, 1], [], []>} : vector<8x32xf32>, vector<32x16xf32>, vector<8x16xf32> -> vector<8x16xf32>
    %cst_38 = arith.constant 1.000000e+00 : f32
    %64 = vector.broadcast %cst_38 : f32 to vector<8x1xf32>
    %65 = arith.divf %64, %62 : vector<8x1xf32>
    %66 = vector.broadcast %65 : vector<8x1xf32> to vector<8x16xf32>
    %67 = arith.mulf %63, %66 : vector<8x16xf32>
    %c0_39 = arith.constant 0 : index
    %c32 = arith.constant 32 : index
    %68 = vector.load %arg11[%c0_39, %c32] : memref<8x128xf32, #tpu.memory_space<vmem>>, vector<8x16xf32>
    tpu.vector_store %arg11[%c0_39, %c32], %67 {strides = array<i32>} : memref<8x128xf32, #tpu.memory_space<vmem>>, vector<8x16xf32>,
    %69 = vector.extract_strided_slice %8 {offsets = [3, 0, 0], sizes = [1, 8, 16], strides = [1, 1, 1]} : vector<8x8x16xf32> to vector<1x8x16xf32>
    %70 = vector.shape_cast %69 : vector<1x8x16xf32> to vector<8x16xf32>
    %c3 = arith.constant 3 : index
    %c0_40 = arith.constant 0 : index
    %c0_41 = arith.constant 0 : index
    %71 = vector.load %arg9[%c3, %c0_40, %c0_41] : memref<8x32x16xf32, #tpu.memory_space<vmem>>, vector<1x32x16xf32>
    %72 = vector.shape_cast %71 : vector<1x32x16xf32> to vector<32x16xf32>
    %c3_42 = arith.constant 3 : index
    %c0_43 = arith.constant 0 : index
    %c0_44 = arith.constant 0 : index
    %73 = vector.load %arg10[%c3_42, %c0_43, %c0_44] : memref<8x32x16xf32, #tpu.memory_space<vmem>>, vector<1x32x16xf32>
    %74 = vector.shape_cast %73 : vector<1x32x16xf32> to vector<32x16xf32>
    %cst_45 = arith.constant dense<0.000000e+00> : vector<8x32xf32>
    %75 = tpu.matmul %70, %72, %cst_45 {dimension_numbers = #tpu.dot_dimension_numbers<[1], [1], [0], [0], [0, 0, 1, 0], [], []>} : vector<8x16xf32>, vector<32x16xf32>, vector<8x32xf32> -> vector<8x32xf32>
    %cst_46 = arith.constant dense<0xFF800000> : vector<8xf32>
    %76 = vector.multi_reduction <maximumf>, %75, %cst_46 [1] : vector<8x32xf32> to vector<8xf32>
    %77 = vector.shape_cast %76 : vector<8xf32> to vector<8x1xf32>
    %78 = vector.broadcast %77 : vector<8x1xf32> to vector<8x32xf32>
    %79 = arith.subf %75, %78 : vector<8x32xf32>
    %80 = math.exp %79 : vector<8x32xf32>
    %cst_47 = arith.constant dense<0.000000e+00> : vector<8xf32>
    %81 = vector.multi_reduction <add>, %80, %cst_47 [1] : vector<8x32xf32> to vector<8xf32>
    %82 = vector.shape_cast %81 : vector<8xf32> to vector<8x1xf32>
    %cst_48 = arith.constant dense<0.000000e+00> : vector<8x16xf32>
    %83 = tpu.matmul %80, %74, %cst_48 {dimension_numbers = #tpu.dot_dimension_numbers<[1], [0], [0], [1], [0, 0, 1, 1], [], []>} : vector<8x32xf32>, vector<32x16xf32>, vector<8x16xf32> -> vector<8x16xf32>
    %cst_49 = arith.constant 1.000000e+00 : f32
    %84 = vector.broadcast %cst_49 : f32 to vector<8x1xf32>
    %85 = arith.divf %84, %82 : vector<8x1xf32>
    %86 = vector.broadcast %85 : vector<8x1xf32> to vector<8x16xf32>
    %87 = arith.mulf %83, %86 : vector<8x16xf32>
    %c0_50 = arith.constant 0 : index
    %c48 = arith.constant 48 : index
    %88 = vector.load %arg11[%c0_50, %c48] : memref<8x128xf32, #tpu.memory_space<vmem>>, vector<8x16xf32>
    tpu.vector_store %arg11[%c0_50, %c48], %87 {strides = array<i32>} : memref<8x128xf32, #tpu.memory_space<vmem>>, vector<8x16xf32>,
    %89 = vector.extract_strided_slice %8 {offsets = [4, 0, 0], sizes = [1, 8, 16], strides = [1, 1, 1]} : vector<8x8x16xf32> to vector<1x8x16xf32>
    %90 = vector.shape_cast %89 : vector<1x8x16xf32> to vector<8x16xf32>
    %c4 = arith.constant 4 : index
    %c0_51 = arith.constant 0 : index
    %c0_52 = arith.constant 0 : index
    %91 = vector.load %arg9[%c4, %c0_51, %c0_52] : memref<8x32x16xf32, #tpu.memory_space<vmem>>, vector<1x32x16xf32>
    %92 = vector.shape_cast %91 : vector<1x32x16xf32> to vector<32x16xf32>
    %c4_53 = arith.constant 4 : index
    %c0_54 = arith.constant 0 : index
    %c0_55 = arith.constant 0 : index
    %93 = vector.load %arg10[%c4_53, %c0_54, %c0_55] : memref<8x32x16xf32, #tpu.memory_space<vmem>>, vector<1x32x16xf32>
    %94 = vector.shape_cast %93 : vector<1x32x16xf32> to vector<32x16xf32>
    %cst_56 = arith.constant dense<0.000000e+00> : vector<8x32xf32>
    %95 = tpu.matmul %90, %92, %cst_56 {dimension_numbers = #tpu.dot_dimension_numbers<[1], [1], [0], [0], [0, 0, 1, 0], [], []>} : vector<8x16xf32>, vector<32x16xf32>, vector<8x32xf32> -> vector<8x32xf32>
    %cst_57 = arith.constant dense<0xFF800000> : vector<8xf32>
    %96 = vector.multi_reduction <maximumf>, %95, %cst_57 [1] : vector<8x32xf32> to vector<8xf32>
    %97 = vector.shape_cast %96 : vector<8xf32> to vector<8x1xf32>
    %98 = vector.broadcast %97 : vector<8x1xf32> to vector<8x32xf32>
    %99 = arith.subf %95, %98 : vector<8x32xf32>
    %100 = math.exp %99 : vector<8x32xf32>
    %cst_58 = arith.constant dense<0.000000e+00> : vector<8xf32>
    %101 = vector.multi_reduction <add>, %100, %cst_58 [1] : vector<8x32xf32> to vector<8xf32>
    %102 = vector.shape_cast %101 : vector<8xf32> to vector<8x1xf32>
    %cst_59 = arith.constant dense<0.000000e+00> : vector<8x16xf32>
    %103 = tpu.matmul %100, %94, %cst_59 {dimension_numbers = #tpu.dot_dimension_numbers<[1], [0], [0], [1], [0, 0, 1, 1], [], []>} : vector<8x32xf32>, vector<32x16xf32>, vector<8x16xf32> -> vector<8x16xf32>
    %cst_60 = arith.constant 1.000000e+00 : f32
    %104 = vector.broadcast %cst_60 : f32 to vector<8x1xf32>
    %105 = arith.divf %104, %102 : vector<8x1xf32>
    %106 = vector.broadcast %105 : vector<8x1xf32> to vector<8x16xf32>
    %107 = arith.mulf %103, %106 : vector<8x16xf32>
    %c0_61 = arith.constant 0 : index
    %c64 = arith.constant 64 : index
    %108 = vector.load %arg11[%c0_61, %c64] : memref<8x128xf32, #tpu.memory_space<vmem>>, vector<8x16xf32>
    tpu.vector_store %arg11[%c0_61, %c64], %107 {strides = array<i32>} : memref<8x128xf32, #tpu.memory_space<vmem>>, vector<8x16xf32>,
    %109 = vector.extract_strided_slice %8 {offsets = [5, 0, 0], sizes = [1, 8, 16], strides = [1, 1, 1]} : vector<8x8x16xf32> to vector<1x8x16xf32>
    %110 = vector.shape_cast %109 : vector<1x8x16xf32> to vector<8x16xf32>
    %c5 = arith.constant 5 : index
    %c0_62 = arith.constant 0 : index
    %c0_63 = arith.constant 0 : index
    %111 = vector.load %arg9[%c5, %c0_62, %c0_63] : memref<8x32x16xf32, #tpu.memory_space<vmem>>, vector<1x32x16xf32>
    %112 = vector.shape_cast %111 : vector<1x32x16xf32> to vector<32x16xf32>
    %c5_64 = arith.constant 5 : index
    %c0_65 = arith.constant 0 : index
    %c0_66 = arith.constant 0 : index
    %113 = vector.load %arg10[%c5_64, %c0_65, %c0_66] : memref<8x32x16xf32, #tpu.memory_space<vmem>>, vector<1x32x16xf32>
    %114 = vector.shape_cast %113 : vector<1x32x16xf32> to vector<32x16xf32>
    %cst_67 = arith.constant dense<0.000000e+00> : vector<8x32xf32>
    %115 = tpu.matmul %110, %112, %cst_67 {dimension_numbers = #tpu.dot_dimension_numbers<[1], [1], [0], [0], [0, 0, 1, 0], [], []>} : vector<8x16xf32>, vector<32x16xf32>, vector<8x32xf32> -> vector<8x32xf32>
    %cst_68 = arith.constant dense<0xFF800000> : vector<8xf32>
    %116 = vector.multi_reduction <maximumf>, %115, %cst_68 [1] : vector<8x32xf32> to vector<8xf32>
    %117 = vector.shape_cast %116 : vector<8xf32> to vector<8x1xf32>
    %118 = vector.broadcast %117 : vector<8x1xf32> to vector<8x32xf32>
    %119 = arith.subf %115, %118 : vector<8x32xf32>
    %120 = math.exp %119 : vector<8x32xf32>
    %cst_69 = arith.constant dense<0.000000e+00> : vector<8xf32>
    %121 = vector.multi_reduction <add>, %120, %cst_69 [1] : vector<8x32xf32> to vector<8xf32>
    %122 = vector.shape_cast %121 : vector<8xf32> to vector<8x1xf32>
    %cst_70 = arith.constant dense<0.000000e+00> : vector<8x16xf32>
    %123 = tpu.matmul %120, %114, %cst_70 {dimension_numbers = #tpu.dot_dimension_numbers<[1], [0], [0], [1], [0, 0, 1, 1], [], []>} : vector<8x32xf32>, vector<32x16xf32>, vector<8x16xf32> -> vector<8x16xf32>
    %cst_71 = arith.constant 1.000000e+00 : f32
    %124 = vector.broadcast %cst_71 : f32 to vector<8x1xf32>
    %125 = arith.divf %124, %122 : vector<8x1xf32>
    %126 = vector.broadcast %125 : vector<8x1xf32> to vector<8x16xf32>
    %127 = arith.mulf %123, %126 : vector<8x16xf32>
    %c0_72 = arith.constant 0 : index
    %c80 = arith.constant 80 : index
    %128 = vector.load %arg11[%c0_72, %c80] : memref<8x128xf32, #tpu.memory_space<vmem>>, vector<8x16xf32>
    tpu.vector_store %arg11[%c0_72, %c80], %127 {strides = array<i32>} : memref<8x128xf32, #tpu.memory_space<vmem>>, vector<8x16xf32>,
    %129 = vector.extract_strided_slice %8 {offsets = [6, 0, 0], sizes = [1, 8, 16], strides = [1, 1, 1]} : vector<8x8x16xf32> to vector<1x8x16xf32>
    %130 = vector.shape_cast %129 : vector<1x8x16xf32> to vector<8x16xf32>
    %c6 = arith.constant 6 : index
    %c0_73 = arith.constant 0 : index
    %c0_74 = arith.constant 0 : index
    %131 = vector.load %arg9[%c6, %c0_73, %c0_74] : memref<8x32x16xf32, #tpu.memory_space<vmem>>, vector<1x32x16xf32>
    %132 = vector.shape_cast %131 : vector<1x32x16xf32> to vector<32x16xf32>
    %c6_75 = arith.constant 6 : index
    %c0_76 = arith.constant 0 : index
    %c0_77 = arith.constant 0 : index
    %133 = vector.load %arg10[%c6_75, %c0_76, %c0_77] : memref<8x32x16xf32, #tpu.memory_space<vmem>>, vector<1x32x16xf32>
    %134 = vector.shape_cast %133 : vector<1x32x16xf32> to vector<32x16xf32>
    %cst_78 = arith.constant dense<0.000000e+00> : vector<8x32xf32>
    %135 = tpu.matmul %130, %132, %cst_78 {dimension_numbers = #tpu.dot_dimension_numbers<[1], [1], [0], [0], [0, 0, 1, 0], [], []>} : vector<8x16xf32>, vector<32x16xf32>, vector<8x32xf32> -> vector<8x32xf32>
    %cst_79 = arith.constant dense<0xFF800000> : vector<8xf32>
    %136 = vector.multi_reduction <maximumf>, %135, %cst_79 [1] : vector<8x32xf32> to vector<8xf32>
    %137 = vector.shape_cast %136 : vector<8xf32> to vector<8x1xf32>
    %138 = vector.broadcast %137 : vector<8x1xf32> to vector<8x32xf32>
    %139 = arith.subf %135, %138 : vector<8x32xf32>
    %140 = math.exp %139 : vector<8x32xf32>
    %cst_80 = arith.constant dense<0.000000e+00> : vector<8xf32>
    %141 = vector.multi_reduction <add>, %140, %cst_80 [1] : vector<8x32xf32> to vector<8xf32>
    %142 = vector.shape_cast %141 : vector<8xf32> to vector<8x1xf32>
    %cst_81 = arith.constant dense<0.000000e+00> : vector<8x16xf32>
    %143 = tpu.matmul %140, %134, %cst_81 {dimension_numbers = #tpu.dot_dimension_numbers<[1], [0], [0], [1], [0, 0, 1, 1], [], []>} : vector<8x32xf32>, vector<32x16xf32>, vector<8x16xf32> -> vector<8x16xf32>
    %cst_82 = arith.constant 1.000000e+00 : f32
    %144 = vector.broadcast %cst_82 : f32 to vector<8x1xf32>
    %145 = arith.divf %144, %142 : vector<8x1xf32>
    %146 = vector.broadcast %145 : vector<8x1xf32> to vector<8x16xf32>
    %147 = arith.mulf %143, %146 : vector<8x16xf32>
    %c0_83 = arith.constant 0 : index
    %c96 = arith.constant 96 : index
    %148 = vector.load %arg11[%c0_83, %c96] : memref<8x128xf32, #tpu.memory_space<vmem>>, vector<8x16xf32>
    tpu.vector_store %arg11[%c0_83, %c96], %147 {strides = array<i32>} : memref<8x128xf32, #tpu.memory_space<vmem>>, vector<8x16xf32>,
    %149 = vector.extract_strided_slice %8 {offsets = [7, 0, 0], sizes = [1, 8, 16], strides = [1, 1, 1]} : vector<8x8x16xf32> to vector<1x8x16xf32>
    %150 = vector.shape_cast %149 : vector<1x8x16xf32> to vector<8x16xf32>
    %c7 = arith.constant 7 : index
    %c0_84 = arith.constant 0 : index
    %c0_85 = arith.constant 0 : index
    %151 = vector.load %arg9[%c7, %c0_84, %c0_85] : memref<8x32x16xf32, #tpu.memory_space<vmem>>, vector<1x32x16xf32>
    %152 = vector.shape_cast %151 : vector<1x32x16xf32> to vector<32x16xf32>
    %c7_86 = arith.constant 7 : index
    %c0_87 = arith.constant 0 : index
    %c0_88 = arith.constant 0 : index
    %153 = vector.load %arg10[%c7_86, %c0_87, %c0_88] : memref<8x32x16xf32, #tpu.memory_space<vmem>>, vector<1x32x16xf32>
    %154 = vector.shape_cast %153 : vector<1x32x16xf32> to vector<32x16xf32>
    %cst_89 = arith.constant dense<0.000000e+00> : vector<8x32xf32>
    %155 = tpu.matmul %150, %152, %cst_89 {dimension_numbers = #tpu.dot_dimension_numbers<[1], [1], [0], [0], [0, 0, 1, 0], [], []>} : vector<8x16xf32>, vector<32x16xf32>, vector<8x32xf32> -> vector<8x32xf32>
    %cst_90 = arith.constant dense<0xFF800000> : vector<8xf32>
    %156 = vector.multi_reduction <maximumf>, %155, %cst_90 [1] : vector<8x32xf32> to vector<8xf32>
    %157 = vector.shape_cast %156 : vector<8xf32> to vector<8x1xf32>
    %158 = vector.broadcast %157 : vector<8x1xf32> to vector<8x32xf32>
    %159 = arith.subf %155, %158 : vector<8x32xf32>
    %160 = math.exp %159 : vector<8x32xf32>
    %cst_91 = arith.constant dense<0.000000e+00> : vector<8xf32>
    %161 = vector.multi_reduction <add>, %160, %cst_91 [1] : vector<8x32xf32> to vector<8xf32>
    %162 = vector.shape_cast %161 : vector<8xf32> to vector<8x1xf32>
    %cst_92 = arith.constant dense<0.000000e+00> : vector<8x16xf32>
    %163 = tpu.matmul %160, %154, %cst_92 {dimension_numbers = #tpu.dot_dimension_numbers<[1], [0], [0], [1], [0, 0, 1, 1], [], []>} : vector<8x32xf32>, vector<32x16xf32>, vector<8x16xf32> -> vector<8x16xf32>
    %cst_93 = arith.constant 1.000000e+00 : f32
    %164 = vector.broadcast %cst_93 : f32 to vector<8x1xf32>
    %165 = arith.divf %164, %162 : vector<8x1xf32>
    %166 = vector.broadcast %165 : vector<8x1xf32> to vector<8x16xf32>
    %167 = arith.mulf %163, %166 : vector<8x16xf32>
    %c0_94 = arith.constant 0 : index
    %c112 = arith.constant 112 : index
    %168 = vector.load %arg11[%c0_94, %c112] : memref<8x128xf32, #tpu.memory_space<vmem>>, vector<8x16xf32>
    tpu.vector_store %arg11[%c0_94, %c112], %167 {strides = array<i32>} : memref<8x128xf32, #tpu.memory_space<vmem>>, vector<8x16xf32>,
    %c0_95 = arith.constant 0 : index
    %c0_96 = arith.constant 0 : index
    %169 = vector.load %arg11[%c0_95, %c0_96] : memref<8x128xf32, #tpu.memory_space<vmem>>, vector<8x128xf32>
    %c0_97 = arith.constant 0 : index
    %c0_98 = arith.constant 0 : index
    %170 = vector.load %arg6[%c0_97, %c0_98] : memref<128x128xf32, #tpu.memory_space<vmem>>, vector<128x128xf32>
    %cst_99 = arith.constant dense<0.000000e+00> : vector<8x128xf32>
    %171 = tpu.matmul %169, %170, %cst_99 {dimension_numbers = #tpu.dot_dimension_numbers<[1], [0], [0], [1], [0, 0, 1, 1], [], []>} : vector<8x128xf32>, vector<128x128xf32>, vector<8x128xf32> -> vector<8x128xf32>
    %c0_100 = arith.constant 0 : index
    %c0_101 = arith.constant 0 : index
    %172 = vector.load %arg7[%c0_100, %c0_101] : memref<1x128xf32, #tpu.memory_space<vmem>>, vector<1x128xf32>
    %173 = vector.broadcast %172 : vector<1x128xf32> to vector<8x128xf32>
    %174 = arith.addf %171, %173 : vector<8x128xf32>
    %c0_102 = arith.constant 0 : index
    %c0_103 = arith.constant 0 : index
    %c0_104 = arith.constant 0 : index
    %175 = vector.load %arg8[%c0_102, %c0_103, %c0_104] : memref<1x8x128xf32, #tpu.memory_space<vmem>>, vector<1x8x128xf32>
    %176 = vector.shape_cast %175 : vector<1x8x128xf32> to vector<8x128xf32>
    %177 = vector.shape_cast %174 : vector<8x128xf32> to vector<1x8x128xf32>
    tpu.vector_store %arg8[%c0_102, %c0_103, %c0_104], %177 {strides = array<i32>} : memref<1x8x128xf32, #tpu.memory_space<vmem>>, vector<1x8x128xf32>,
    return
  }
  func.func @transform_0(%arg0: i32, %arg1: i32) -> (i32, i32, i32) {
    %c0_i32 = arith.constant 0 : i32
    %c0_i32_0 = arith.constant 0 : i32
    return %arg0, %arg1, %c0_i32 : i32, i32, i32
  }
  func.func @transform_1(%arg0: i32, %arg1: i32) -> (i32, i32, i32) {
    %c0_i32 = arith.constant 0 : i32
    %c0_i32_0 = arith.constant 0 : i32
    %c0_i32_1 = arith.constant 0 : i32
    return %arg0, %c0_i32, %c0_i32_0 : i32, i32, i32
  }
  func.func @transform_2(%arg0: i32, %arg1: i32) -> (i32, i32) {
    %c0_i32 = arith.constant 0 : i32
    %c0_i32_0 = arith.constant 0 : i32
    %c0_i32_1 = arith.constant 0 : i32
    return %c0_i32, %c0_i32_0 : i32, i32
  }
  func.func @transform_3(%arg0: i32, %arg1: i32) -> (i32, i32) {
    %c0_i32 = arith.constant 0 : i32
    %c0_i32_0 = arith.constant 0 : i32
    %c0_i32_1 = arith.constant 0 : i32
    return %c0_i32, %c0_i32_0 : i32, i32
  }
  func.func @transform_4(%arg0: i32, %arg1: i32) -> (i32, i32) {
    %c0_i32 = arith.constant 0 : i32
    %c0_i32_0 = arith.constant 0 : i32
    %c0_i32_1 = arith.constant 0 : i32
    return %c0_i32, %c0_i32_0 : i32, i32
  }
  func.func @transform_5(%arg0: i32, %arg1: i32) -> (i32, i32) {
    %c0_i32 = arith.constant 0 : i32
    %c0_i32_0 = arith.constant 0 : i32
    %c0_i32_1 = arith.constant 0 : i32
    return %c0_i32, %c0_i32_0 : i32, i32
  }
  func.func @transform_6(%arg0: i32, %arg1: i32) -> (i32, i32, i32) {
    %c0_i32 = arith.constant 0 : i32
    %c0_i32_0 = arith.constant 0 : i32
    return %arg0, %arg1, %c0_i32 : i32, i32, i32
  }
}

</mosaic_0001>

<llo_original>
// kernel: tpu_custom_call.1
$region0: #{tpu_custom_call.1}
  #allocation0 [shape = 'u32[]', space=smem, size = 0x4, offset = 0x4, fixed_abs, tag = 'smem constant byte address 0x4 - core index']
  #allocation1 [shape = 'u32[144,128]{1,0:T(1,128)}', space=vmem, size = 0x12000, scoped, tag = 'internal scratch']
  #allocation2 [shape = 'f32[8,32,16]{2,1,0:T(8,128)}', space=vmem, size = 0x20000, scoped, tag = 'scratch operand']
  #allocation3 [shape = 'f32[8,32,16]{2,1,0:T(8,128)}', space=vmem, size = 0x20000, scoped, tag = 'scratch operand']
  #allocation4 [shape = 'f32[8,128]{1,0:T(8,128)}', space=vmem, size = 0x1000, scoped, tag = 'scratch operand']
  %s0 = inlined_call_operand.hbm [shape: f32[2,32,128], index: 0, kind: input, shape index: {}]
  %s1 = inlined_call_operand.hbm [shape: f32[2,32,128], index: 1, kind: input, shape index: {}]
  %s2 = inlined_call_operand.hbm [shape: f32[128,128], index: 2, kind: input, shape index: {}]
  %s3 = inlined_call_operand.hbm [shape: f32[128,256], index: 3, kind: input, shape index: {}]
  %s4 = inlined_call_operand.hbm [shape: f32[128,128], index: 4, kind: input, shape index: {}]
  %s5 = inlined_call_operand.vmem [shape: f32[1,128], index: 5, kind: input, shape index: {}]
  %s6 = inlined_call_operand.hbm [shape: f32[2,32,128], index: 6, kind: output, shape index: {}]
  %s7 = sld [smem:[#allocation0]]
  $region81: #{tpu_custom_call.1} parent=0
    _
  %s9 = ssub.s32 1, %s7
  %s10 = scalar_select 0, %s9, %s7
  $region1: #{tpu_custom_call.1} parent=0
    #allocation5 [shape = 'u8[8192]{0}', space=vmem, size = 0x2000, scoped, tag = 'input window, operand 0']
    #allocation6 [shape = 's32[2]{0}', space=sflag, size = 0x8, scoped, tag = 'scoped memory for tpu_custom_call.1']
    #allocation7 [shape = 's32[2]{0}', space=sflag, size = 0x8, scoped, tag = 'scoped memory for tpu_custom_call.1']
    #allocation8 [shape = 'u8[32768]{0}', space=vmem, size = 0x8000, scoped, tag = 'input window, operand 1']
    #allocation9 [shape = 's32[2]{0}', space=sflag, size = 0x8, scoped, tag = 'scoped memory for tpu_custom_call.1']
    #allocation10 [shape = 'u8[65536]{0}', space=vmem, size = 0x10000, scoped, tag = 'input window, operand 2, single buffered']
    #allocation11 [shape = 'u8[131072]{0}', space=vmem, size = 0x20000, scoped, tag = 'input window, operand 3, single buffered']
    #allocation12 [shape = 's32[1]{0}', space=sflag, size = 0x4, scoped, tag = 'scoped memory for tpu_custom_call.1']
    #allocation13 [shape = 'u8[65536]{0}', space=vmem, size = 0x10000, scoped, tag = 'input window, operand 4, single buffered']
    #allocation14 [shape = 'u8[8192]{0}', space=vmem, size = 0x2000, scoped, tag = 'output window, operand 0']
    %11 = vsyncpa [#allocation6], 0
    %s12 = scalar_lea.sflag [#allocation6], 1
    %13 = vsyncpa %s12, 0
    %14 = vsyncpa [#allocation9], 0
    %s15 = scalar_lea.sflag [#allocation9], 1
    %16 = vsyncpa %s15, 0
    %17 = vsyncpa [#allocation12], 0
    %18 = vsyncpa [#allocation7], 0
    %s19 = scalar_lea.sflag [#allocation7], 1
    %20 = vsyncpa %s19, 0
    loop: start=0, step=1, limit=10
    $region2: #{tpu_custom_call.1} parent=1 // loop_pre_header
      _
    $region3: #{tpu_custom_call.1} parent=1 // loop_header
      %s22 = sphi 0, %s26
      %p23 = scmp.ge.s32.totalorder %s22, 10
      %s29 = sphi 0, %s41
      %s30 = sphi 0, %s37
      %s31 = sphi 0, %s29
      %s32 = sphi 0, %s30
      %s33 = sphi 0, %s31
      %s34 = sphi 0, %s32
      %s46 = sphi 0, %s48
      %s49 = sphi 0, %s46
      %s50 = sphi 0, %s49
      %s66 = sphi 0, %s50
      %s72 = sphi 0, %s74
      %s75 = sphi 0, %s72
      %s76 = sphi 0, %s75
      %s92 = sphi 0, %s76
      %s96 = sphi 0, %s96
      %s98 = sphi 0, %s96
      %s99 = sphi 0, %s98
      %s113 = sphi 0, %s99
      %s117 = sphi 0, %s117
      %s119 = sphi 0, %s117
      %s120 = sphi 0, %s119
      %s134 = sphi 0, %s120
      %s138 = sphi 0, %s138
      %s140 = sphi 0, %s138
      %s141 = sphi 0, %s140
      %s155 = sphi 0, %s141
      %s159 = sphi 0, %s159
      %s161 = sphi 0, %s159
      %s162 = sphi 0, %s161
      %s176 = sphi 0, %s162
      %s184 = sphi 0, %s186
      %s187 = sphi 0, %s184
      %s188 = sphi 0, %s187
      %s204 = sphi 0, %s188
    $region4: #{tpu_custom_call.1} parent=1 // loop_header_branch
      %25 = sbr.rel (%p23) target = $region8
    $region5: #{tpu_custom_call.1} parent=1 // loop_body
      %s27 = ssub.s32 %s22, 1
      %s28 = ssub.s32 %s22, 2
      %s35 = sadd.s32 1, %s30
      %p36 = scmp.ge.s32.totalorder %s35, 4
      %s37 = scalar_select %p36, 0, %s35
      %s38 = sadd.s32 1, %s29
      %s39 = scalar_select %p36, %s38, %s29
      %p40 = scmp.ge.s32.totalorder %s39, 2
      %s41 = scalar_select %p40, 0, %s39
      %s42 = ssub.s32 %s29, %s41
      %s43 = ssub.s32 %s30, %s37
      %s44 = sor.u32 %s42, %s43
      %p45 = scmp.eq.s32.totalorder %s44, 0
      %s47 = sadd.s32 %s46, 1
      %s48 = scalar_select %p45, %s46, %s47
      %p51 = pneg %p45
      %p52 = scmp.eq.s32.totalorder %s22, 7
      %p53 = por %p51, %p52
      %p54 = scmp.ne.s32.totalorder %s46, %s49
      %p55 = scmp.eq.s32.totalorder %s22, 0
      %p56 = por %p54, %p55
      %p57 = scmp.ne.s32.totalorder %s46, %s49
      %p58 = scmp.eq.s32.totalorder %s27, 7
      %p59 = por %p57, %p58
      %p60 = scmp.ne.s32.totalorder %s49, %s50
      %p61 = scmp.eq.s32.totalorder %s27, 0
      %p62 = por %p60, %p61
      %p63 = scmp.ne.s32.totalorder %s49, %s50
      %p64 = scmp.eq.s32.totalorder %s28, 7
      %p65 = por %p63, %p64
      %p67 = scmp.ne.s32.totalorder %s50, %s66
      %p68 = scmp.eq.s32.totalorder %s28, 0
      %p69 = por %p67, %p68
      %s70 = ssub.s32 %s29, %s41
      %p71 = scmp.eq.s32.totalorder %s70, 0
      %s73 = sadd.s32 %s72, 1
      %s74 = scalar_select %p71, %s72, %s73
      %p77 = pneg %p71
      %p78 = scmp.eq.s32.totalorder %s22, 7
      %p79 = por %p77, %p78
      %p80 = scmp.ne.s32.totalorder %s72, %s75
      %p81 = scmp.eq.s32.totalorder %s22, 0
      %p82 = por %p80, %p81
      %p83 = scmp.ne.s32.totalorder %s72, %s75
      %p84 = scmp.eq.s32.totalorder %s27, 7
      %p85 = por %p83, %p84
      %p86 = scmp.ne.s32.totalorder %s75, %s76
      %p87 = scmp.eq.s32.totalorder %s27, 0
      %p88 = por %p86, %p87
      %p89 = scmp.ne.s32.totalorder %s75, %s76
      %p90 = scmp.eq.s32.totalorder %s28, 7
      %p91 = por %p89, %p90
      %p93 = scmp.ne.s32.totalorder %s76, %s92
      %p94 = scmp.eq.s32.totalorder %s28, 0
      %p95 = por %p93, %p94
      %s97 = sadd.s32 %s96, 1
      %p100 = scmp.eq.s32.totalorder %s22, 7
      %p101 = scmp.ne.s32.totalorder %s96, %s98
      %p102 = scmp.eq.s32.totalorder %s22, 0
      %p103 = por %p101, %p102
      %p104 = scmp.ne.s32.totalorder %s96, %s98
      %p105 = scmp.eq.s32.totalorder %s27, 7
      %p106 = por %p104, %p105
      %p107 = scmp.ne.s32.totalorder %s98, %s99
      %p108 = scmp.eq.s32.totalorder %s27, 0
      %p109 = por %p107, %p108
      %p110 = scmp.ne.s32.totalorder %s98, %s99
      %p111 = scmp.eq.s32.totalorder %s28, 7
      %p112 = por %p110, %p111
      %p114 = scmp.ne.s32.totalorder %s99, %s113
      %p115 = scmp.eq.s32.totalorder %s28, 0
      %p116 = por %p114, %p115
      %s118 = sadd.s32 %s117, 1
      %p121 = scmp.eq.s32.totalorder %s22, 7
      %p122 = scmp.ne.s32.totalorder %s117, %s119
      %p123 = scmp.eq.s32.totalorder %s22, 0
      %p124 = por %p122, %p123
      %p125 = scmp.ne.s32.totalorder %s117, %s119
      %p126 = scmp.eq.s32.totalorder %s27, 7
      %p127 = por %p125, %p126
      %p128 = scmp.ne.s32.totalorder %s119, %s120
      %p129 = scmp.eq.s32.totalorder %s27, 0
      %p130 = por %p128, %p129
      %p131 = scmp.ne.s32.totalorder %s119, %s120
      %p132 = scmp.eq.s32.totalorder %s28, 7
      %p133 = por %p131, %p132
      %p135 = scmp.ne.s32.totalorder %s120, %s134
      %p136 = scmp.eq.s32.totalorder %s28, 0
      %p137 = por %p135, %p136
      %s139 = sadd.s32 %s138, 1
      %p142 = scmp.eq.s32.totalorder %s22, 7
      %p143 = scmp.ne.s32.totalorder %s138, %s140
      %p144 = scmp.eq.s32.totalorder %s22, 0
      %p145 = por %p143, %p144
      %p146 = scmp.ne.s32.totalorder %s138, %s140
      %p147 = scmp.eq.s32.totalorder %s27, 7
      %p148 = por %p146, %p147
      %p149 = scmp.ne.s32.totalorder %s140, %s141
      %p150 = scmp.eq.s32.totalorder %s27, 0
      %p151 = por %p149, %p150
      %p152 = scmp.ne.s32.totalorder %s140, %s141
      %p153 = scmp.eq.s32.totalorder %s28, 7
      %p154 = por %p152, %p153
      %p156 = scmp.ne.s32.totalorder %s141, %s155
      %p157 = scmp.eq.s32.totalorder %s28, 0
      %p158 = por %p156, %p157
      %s160 = sadd.s32 %s159, 1
      %p163 = scmp.eq.s32.totalorder %s22, 7
      %p164 = scmp.ne.s32.totalorder %s159, %s161
      %p165 = scmp.eq.s32.totalorder %s22, 0
      %p166 = por %p164, %p165
      %p167 = scmp.ne.s32.totalorder %s159, %s161
      %p168 = scmp.eq.s32.totalorder %s27, 7
      %p169 = por %p167, %p168
      %p170 = scmp.ne.s32.totalorder %s161, %s162
      %p171 = scmp.eq.s32.totalorder %s27, 0
      %p172 = por %p170, %p171
      %p173 = scmp.ne.s32.totalorder %s161, %s162
      %p174 = scmp.eq.s32.totalorder %s28, 7
      %p175 = por %p173, %p174
      %p177 = scmp.ne.s32.totalorder %s162, %s176
      %p178 = scmp.eq.s32.totalorder %s28, 0
      %p179 = por %p177, %p178
      %s180 = ssub.s32 %s29, %s41
      %s181 = ssub.s32 %s30, %s37
      %s182 = sor.u32 %s180, %s181
      %p183 = scmp.eq.s32.totalorder %s182, 0
      %s185 = sadd.s32 %s184, 1
      %s186 = scalar_select %p183, %s184, %s185
      %p189 = pneg %p183
      %p190 = scmp.eq.s32.totalorder %s22, 7
      %p191 = por %p189, %p190
      %p192 = scmp.ne.s32.totalorder %s184, %s187
      %p193 = scmp.eq.s32.totalorder %s22, 0
      %p194 = por %p192, %p193
      %p195 = scmp.ne.s32.totalorder %s184, %s187
      %p196 = scmp.eq.s32.totalorder %s27, 7
      %p197 = por %p195, %p196
      %p198 = scmp.ne.s32.totalorder %s187, %s188
      %p199 = scmp.eq.s32.totalorder %s27, 0
      %p200 = por %p198, %p199
      %p201 = scmp.ne.s32.totalorder %s187, %s188
      %p202 = scmp.eq.s32.totalorder %s28, 7
      %p203 = por %p201, %p202
      %p205 = scmp.ne.s32.totalorder %s188, %s204
      %p206 = scmp.eq.s32.totalorder %s28, 0
      %p207 = por %p205, %p206
      %p208 = scmp.le.s32.totalorder 1, %s22
      %p209 = scmp.lt.s32.totalorder %s22, 9
      %p210 = pnand %p208, %p209
      %p211 = pneg %p210
      // Predicated region
      $region9: #{tpu_custom_call.1} parent=5 // pred_check
        _
      $region10: #{tpu_custom_call.1} parent=5 // pred_check_branch
        %213 = sbr.rel (%p210) target = $region12
      $region11: #{tpu_custom_call.1} parent=5 // pred_region
        %s214 = ssub.s32 %s22, 1
        // Predicated region
        $region13: #{tpu_custom_call.1} parent=11 // pred_check
          %p215 = pneg %p109
        $region14: #{tpu_custom_call.1} parent=11 // pred_check_branch
          %217 = sbr.rel (%p215) target = $region16
        $region15: #{tpu_custom_call.1} parent=11 // pred_region
          %s219 = ssub.s32 2048, 2048
          %220 = vsyncadd [#allocation9], %s219
          %s221 = sshll.u32 [#allocation10], 4
          %s222 = int_to_ptr.vmem [resolvable:$true] %s221
          %227 = dma.hbm_to_vmem [thread:$0]  %s2, 2048, %s222, [#allocation9], 128, 128, 8
        $region16: #{tpu_custom_call.1} parent=11 // pred_fallthru
          _
        // Predicated region
        $region17: #{tpu_custom_call.1} parent=11 // pred_check
          %p228 = pneg %p130
        $region18: #{tpu_custom_call.1} parent=11 // pred_check_branch
          %230 = sbr.rel (%p228) target = $region20
        $region19: #{tpu_custom_call.1} parent=11 // pred_region
          %s232 = ssub.s32 4096, 4096
          %233 = vsyncadd [#allocation12], %s232
          %s234 = sshll.u32 [#allocation11], 4
          %s235 = int_to_ptr.vmem [resolvable:$true] %s234
          %240 = dma.hbm_to_vmem [thread:$0]  %s3, 4096, %s235, [#allocation12], 256, 256, 16
        $region20: #{tpu_custom_call.1} parent=11 // pred_fallthru
          _
        // Predicated region
        $region21: #{tpu_custom_call.1} parent=11 // pred_check
          %p241 = pneg %p151
        $region22: #{tpu_custom_call.1} parent=11 // pred_check_branch
          %243 = sbr.rel (%p241) target = $region24
        $region23: #{tpu_custom_call.1} parent=11 // pred_region
          %s245 = ssub.s32 2048, 2048
          %246 = vsyncadd [#allocation12], %s245
          %s247 = sshll.u32 [#allocation13], 4
          %s248 = int_to_ptr.vmem [resolvable:$true] %s247
          %253 = dma.hbm_to_vmem [thread:$0]  %s4, 2048, %s248, [#allocation12], 128, 128, 8
        $region24: #{tpu_custom_call.1} parent=11 // pred_fallthru
          _
        // Predicated region
        $region25: #{tpu_custom_call.1} parent=11 // pred_check
          %p254 = pneg %p172
        $region26: #{tpu_custom_call.1} parent=11 // pred_check_branch
          %256 = sbr.rel (%p254) target = $region28
        $region27: #{tpu_custom_call.1} parent=11 // pred_region
          _
        $region28: #{tpu_custom_call.1} parent=11 // pred_fallthru
          _
      $region12: #{tpu_custom_call.1} parent=5 // pred_fallthru
        _
      %p257 = scmp.lt.s32.totalorder %s22, 8
      // Predicated region
      $region29: #{tpu_custom_call.1} parent=5 // pred_check
        %p258 = pneg %p257
      $region30: #{tpu_custom_call.1} parent=5 // pred_check_branch
        %260 = sbr.rel (%p258) target = $region32
      $region31: #{tpu_custom_call.1} parent=5 // pred_region
        // Predicated region
        $region33: #{tpu_custom_call.1} parent=31 // pred_check
          %p261 = pneg %p56
        $region34: #{tpu_custom_call.1} parent=31 // pred_check_branch
          %263 = sbr.rel (%p261) target = $region36
        $region35: #{tpu_custom_call.1} parent=31 // pred_region
          %s264 = sand.u32 %s46, 1
          %s265 = scalar_lea.sflag [#allocation6], %s264
          %s266 = sand.u32 %s46, 1
          %s267 = smul.addr %s266, 8
          %s268 = scalar_lea.vmem [#allocation5], %s267
          %s270 = ssub.s32 128, 128
          %271 = vsyncadd %s265, %s270
          %s272 = smul.addr %s29, 4
          %s273 = sadd.s32 %s30, %s272
          %s274 = smul.addr %s273, 128
          %s275 = scalar_lea.hbm %s0, %s274
          %s277 = sshll.u32 %s268, 4
          %s278 = int_to_ptr.vmem [resolvable:$true] %s277
          %280 = dma.hbm_to_vmem [thread:$0]  %s275, 128, %s278, %s265
        $region36: #{tpu_custom_call.1} parent=31 // pred_fallthru
          _
        // Predicated region
        $region37: #{tpu_custom_call.1} parent=31 // pred_check
          %p281 = pneg %p82
        $region38: #{tpu_custom_call.1} parent=31 // pred_check_branch
          %283 = sbr.rel (%p281) target = $region40
        $region39: #{tpu_custom_call.1} parent=31 // pred_region
          %s284 = sand.u32 %s22, 1
          %s285 = scalar_lea.sflag [#allocation9], %s284
          %s286 = sand.u32 %s72, 1
          %s287 = smul.addr %s286, 32
          %s288 = scalar_lea.vmem [#allocation8], %s287
          %s290 = ssub.s32 512, 512
          %291 = vsyncadd %s285, %s290
          %s292 = smul.addr %s29, 4
          %s293 = smul.addr %s292, 128
          %s294 = scalar_lea.hbm %s1, %s293
          %s295 = sshll.u32 %s288, 4
          %s296 = int_to_ptr.vmem [resolvable:$true] %s295
          %301 = dma.hbm_to_vmem [thread:$0]  %s294, 512, %s296, %s285, 128, 128, 8
        $region40: #{tpu_custom_call.1} parent=31 // pred_fallthru
          _
      $region32: #{tpu_custom_call.1} parent=5 // pred_fallthru
        _
      %p302 = scmp.le.s32.totalorder 1, %s22
      %p303 = scmp.lt.s32.totalorder %s22, 9
      %p304 = pnand %p302, %p303
      %p305 = pneg %p304
      // Predicated region
      $region41: #{tpu_custom_call.1} parent=5 // pred_check
        _
      $region42: #{tpu_custom_call.1} parent=5 // pred_check_branch
        %307 = sbr.rel (%p304) target = $region44
      $region43: #{tpu_custom_call.1} parent=5 // pred_region
        %s308 = ssub.s32 %s22, 1
        %s309 = sand.u32 %s49, 1
        %s310 = scalar_lea.sflag [#allocation6], %s309
        %s311 = sand.u32 %s49, 1
        %s312 = smul.addr %s311, 8
        %s313 = scalar_lea.vmem [#allocation5], %s312
        // Predicated region
        $region45: #{tpu_custom_call.1} parent=43 // pred_check
          %p314 = pneg %p62
        $region46: #{tpu_custom_call.1} parent=43 // pred_check_branch
          %316 = sbr.rel (%p314) target = $region48
        $region47: #{tpu_custom_call.1} parent=43 // pred_region
          %317 = dma.done %s310, 128
        $region48: #{tpu_custom_call.1} parent=43 // pred_fallthru
          _
        %s318 = sand.u32 %s27, 1
        %s319 = scalar_lea.sflag [#allocation9], %s318
        %s320 = sand.u32 %s75, 1
        %s321 = smul.addr %s320, 32
        %s322 = scalar_lea.vmem [#allocation8], %s321
        // Predicated region
        $region49: #{tpu_custom_call.1} parent=43 // pred_check
          %p323 = pneg %p88
        $region50: #{tpu_custom_call.1} parent=43 // pred_check_branch
          %325 = sbr.rel (%p323) target = $region52
        $region51: #{tpu_custom_call.1} parent=43 // pred_region
          %326 = dma.done %s319, 512
        $region52: #{tpu_custom_call.1} parent=43 // pred_fallthru
          _
        // Predicated region
        $region53: #{tpu_custom_call.1} parent=43 // pred_check
          %p327 = pneg %p109
        $region54: #{tpu_custom_call.1} parent=43 // pred_check_branch
          %329 = sbr.rel (%p327) target = $region56
        $region55: #{tpu_custom_call.1} parent=43 // pred_region
          %330 = dma.done [#allocation9], 2048
        $region56: #{tpu_custom_call.1} parent=43 // pred_fallthru
          _
        // Predicated region
        $region57: #{tpu_custom_call.1} parent=43 // pred_check
          %p331 = pneg %p130
        $region58: #{tpu_custom_call.1} parent=43 // pred_check_branch
          %333 = sbr.rel (%p331) target = $region60
        $region59: #{tpu_custom_call.1} parent=43 // pred_region
          %334 = dma.done [#allocation12], 4096
        $region60: #{tpu_custom_call.1} parent=43 // pred_fallthru
          _
        // Predicated region
        $region61: #{tpu_custom_call.1} parent=43 // pred_check
          %p335 = pneg %p151
        $region62: #{tpu_custom_call.1} parent=43 // pred_check_branch
          %337 = sbr.rel (%p335) target = $region64
        $region63: #{tpu_custom_call.1} parent=43 // pred_region
          %338 = dma.done [#allocation12], 2048
        $region64: #{tpu_custom_call.1} parent=43 // pred_fallthru
          _
        %s339 = sand.u32 %s49, 1
        %s340 = scalar_lea.sflag [#allocation6], %s339
        %s341 = sand.u32 %s49, 1
        %s342 = smul.addr %s341, 8
        %s343 = scalar_lea.vmem [#allocation5], %s342
        %p344 = pneg %p62
        %p345 = pneg %p59
        %s346 = sand.u32 %s27, 1
        %s347 = scalar_lea.sflag [#allocation9], %s346
        %s348 = sand.u32 %s75, 1
        %s349 = smul.addr %s348, 32
        %s350 = scalar_lea.vmem [#allocation8], %s349
        %p351 = pneg %p88
        %p352 = pneg %p85
        %p353 = pneg %p109
        %p354 = pneg %p106
        %p355 = pneg %p130
        %p356 = pneg %p127
        %p357 = pneg %p151
        %p358 = pneg %p148
        %p359 = pneg %p172
        %p360 = pneg %p169
        %p361 = pneg %p200
        %p362 = pneg %p197
        %s363 = sand.u32 %s187, 1
        %s364 = scalar_lea.sflag [#allocation7], %s363
        %s365 = sand.u32 %s187, 1
        %s366 = smul.addr %s365, 8
        %s367 = scalar_lea.vmem [#allocation14], %s366
        %p368 = scmp.eq.s32.totalorder %s32, 0
        // Predicated region
        $region65: #{tpu_custom_call.1} parent=43 // pred_check
          %p369 = pneg %p368
        $region66: #{tpu_custom_call.1} parent=43 // pred_check_branch
          %371 = sbr.rel (%p369) target = $region68
        $region67: #{tpu_custom_call.1} parent=43 // pred_region
          %v372 = vld [vmem:[%s322] sm:$0xff]
          %v373 = vld [vmem:[%s322 + $0x8] sm:$0xff]
          %v374 = vld [vmem:[%s322 + $0x10] sm:$0xff]
          %v375 = vld [vmem:[%s322 + $0x18] sm:$0xff]
          %v376 = vld [vmem:[#allocation11] sm:$0xff]
          %v377 = vld [vmem:[#allocation11 + $0x8] sm:$0xff]
          %v378 = vld [vmem:[#allocation11 + $0x10] sm:$0xff]
          %v379 = vld [vmem:[#allocation11 + $0x18] sm:$0xff]
          %v380 = vld [vmem:[#allocation11 + $0x20] sm:$0xff]
          %v381 = vld [vmem:[#allocation11 + $0x28] sm:$0xff]
          %v382 = vld [vmem:[#allocation11 + $0x30] sm:$0xff]
          %v383 = vld [vmem:[#allocation11 + $0x38] sm:$0xff]
          %v384 = vld [vmem:[#allocation11 + $0x40] sm:$0xff]
          %v385 = vld [vmem:[#allocation11 + $0x48] sm:$0xff]
          %v386 = vld [vmem:[#allocation11 + $0x50] sm:$0xff]
          %v387 = vld [vmem:[#allocation11 + $0x58] sm:$0xff]
          %v388 = vld [vmem:[#allocation11 + $0x60] sm:$0xff]
          %v389 = vld [vmem:[#allocation11 + $0x68] sm:$0xff]
          %v390 = vld [vmem:[#allocation11 + $0x70] sm:$0xff]
          %v391 = vld [vmem:[#allocation11 + $0x78] sm:$0xff]
          %v392 = vld [vmem:[#allocation11 + $0x80] sm:$0xff]
          %v393 = vld [vmem:[#allocation11 + $0x88] sm:$0xff]
          %v394 = vld [vmem:[#allocation11 + $0x90] sm:$0xff]
          %v395 = vld [vmem:[#allocation11 + $0x98] sm:$0xff]
          %v396 = vld [vmem:[#allocation11 + $0xa0] sm:$0xff]
          %v397 = vld [vmem:[#allocation11 + $0xa8] sm:$0xff]
          %v398 = vld [vmem:[#allocation11 + $0xb0] sm:$0xff]
          %v399 = vld [vmem:[#allocation11 + $0xb8] sm:$0xff]
          %v400 = vld [vmem:[#allocation11 + $0xc0] sm:$0xff]
          %v401 = vld [vmem:[#allocation11 + $0xc8] sm:$0xff]
          %v402 = vld [vmem:[#allocation11 + $0xd0] sm:$0xff]
          %v403 = vld [vmem:[#allocation11 + $0xd8] sm:$0xff]
          %v404 = vld [vmem:[#allocation11 + $0xe0] sm:$0xff]
          %v405 = vld [vmem:[#allocation11 + $0xe8] sm:$0xff]
          %v406 = vld [vmem:[#allocation11 + $0xf0] sm:$0xff]
          %v407 = vld [vmem:[#allocation11 + $0xf8] sm:$0xff]
          %408 = vmatprep.subr.mxu0 %v377
          %409 = vmatpush1.msra.mxu0 %v376
          %410 = vmatprep.subr.mxu0 %v379
          %411 = vmatpush1.msra.mxu0 %v378
          %412 = vmatprep.subr.mxu0 %v381
          %413 = vmatpush1.msra.mxu0 %v380
          %414 = vmatprep.subr.mxu0 %v383
          %415 = vmatpush1.msra.mxu0 %v382
          %416 = vmatprep.subr.mxu0 %v385
          %417 = vmatpush1.msra.mxu0 %v384
          %418 = vmatprep.subr.mxu0 %v387
          %419 = vmatpush1.msra.mxu0 %v386
          %420 = vmatprep.subr.mxu0 %v389
          %421 = vmatpush1.msra.mxu0 %v388
          %422 = vmatprep.subr.mxu0 %v391
          %423 = vmatpush1.msra.mxu0 %v390
          %424 = vmatprep.subr.mxu0 %v393
          %425 = vmatpush1.msra.mxu0 %v392
          %426 = vmatprep.subr.mxu0 %v395
          %427 = vmatpush1.msra.mxu0 %v394
          %428 = vmatprep.subr.mxu0 %v397
          %429 = vmatpush1.msra.mxu0 %v396
          %430 = vmatprep.subr.mxu0 %v399
          %431 = vmatpush1.msra.mxu0 %v398
          %432 = vmatprep.subr.mxu0 %v401
          %433 = vmatpush1.msra.mxu0 %v400
          %434 = vmatprep.subr.mxu0 %v403
          %435 = vmatpush1.msra.mxu0 %v402
          %436 = vmatprep.subr.mxu0 %v405
          %437 = vmatpush1.msra.mxu0 %v404
          %438 = vmatprep.subr.mxu0 %v407
          %439 = vmatpush1.msra.mxu0 %v406
          %440 = vmatprep.subr.mxu0 0.0
          %441 = vmatpush1.msra.mxu0 0.0
          %442 = vmatprep.subr.mxu0 0.0
          %443 = vmatpush1.msra.mxu0 0.0
          %444 = vmatprep.subr.mxu0 0.0
          %445 = vmatpush1.msra.mxu0 0.0
          %446 = vmatprep.subr.mxu0 0.0
          %447 = vmatpush1.msra.mxu0 0.0
          %448 = vmatprep.subr.mxu0 0.0
          %449 = vmatpush1.msra.mxu0 0.0
          %450 = vmatprep.subr.mxu0 0.0
          %451 = vmatpush1.msra.mxu0 0.0
          %452 = vmatprep.subr.mxu0 0.0
          %453 = vmatpush1.msra.mxu0 0.0
          %454 = vmatprep.subr.mxu0 0.0
          %455 = vmatpush1.msra.mxu0 0.0
          %456 = vmatprep.subr.mxu0 0.0
          %457 = vmatpush1.msra.mxu0 0.0
          %458 = vmatprep.subr.mxu0 0.0
          %459 = vmatpush1.msra.mxu0 0.0
          %460 = vmatprep.subr.mxu0 0.0
          %461 = vmatpush1.msra.mxu0 0.0
          %462 = vmatprep.subr.mxu0 0.0
          %463 = vmatpush1.msra.mxu0 0.0
          %464 = vmatprep.subr.mxu0 0.0
          %465 = vmatpush1.msra.mxu0 0.0
          %466 = vmatprep.subr.mxu0 0.0
          %467 = vmatpush1.msra.mxu0 0.0
          %468 = vmatprep.subr.mxu0 0.0
          %469 = vmatpush1.msra.mxu0 0.0
          %470 = vmatprep.subr.mxu0 0.0
          %471 = vmatpush1.msra.mxu0 0.0
          %472 = vmatprep.mubr.f32.mxu0 0.0
          %473 = vmatmul.mubr.f32.gmra.mrb[0].mxu0 %v372
          %v474 = vpop.f32.mrb[0].mxu0
          %v475 = vadd.f32 0.0, %v474
          %v476 = vpop.f32.mrb[0].mxu0
          %v477 = vadd.f32 0.0, %v476
          %478 = vmatprep.mubr.f32.mxu0 0.0
          %479 = vmatmul.mubr.f32.gmra.mrb[0].mxu0 %v373
          %v480 = vpop.f32.mrb[0].mxu0
          %v481 = vadd.f32 0.0, %v480
          %v482 = vpop.f32.mrb[0].mxu0
          %v483 = vadd.f32 0.0, %v482
          %484 = vmatprep.mubr.f32.mxu0 0.0
          %485 = vmatmul.mubr.f32.gmra.mrb[0].mxu0 %v374
          %v486 = vpop.f32.mrb[0].mxu0
          %v487 = vadd.f32 0.0, %v486
          %v488 = vpop.f32.mrb[0].mxu0
          %v489 = vadd.f32 0.0, %v488
          %490 = vmatprep.mubr.f32.mxu0 0.0
          %491 = vmatmul.mubr.f32.gmra.mrb[0].mxu0 %v375
          %v492 = vpop.f32.mrb[0].mxu0
          %v493 = vadd.f32 0.0, %v492
          %v494 = vpop.f32.mrb[0].mxu0
          %v495 = vadd.f32 0.0, %v494
          %496 = vdwg.mxu0
          %501 = vrot.lane.b32.xlu0 %v475, 112
          %v502 = vpop.permute.xlu0 %501
          %503 = vrot.lane.b32.xlu0 %v481, 112
          %v504 = vpop.permute.xlu0 %503
          %505 = vrot.lane.b32.xlu0 %v487, 112
          %v506 = vpop.permute.xlu0 %505
          %507 = vrot.lane.b32.xlu0 %v493, 112
          %v508 = vpop.permute.xlu0 %507
          %513 = vrot.lane.b32.xlu0 %v475, 96
          %v514 = vpop.permute.xlu0 %513
          %515 = vrot.lane.b32.xlu0 %v481, 96
          %v516 = vpop.permute.xlu0 %515
          %517 = vrot.lane.b32.xlu0 %v487, 96
          %v518 = vpop.permute.xlu0 %517
          %519 = vrot.lane.b32.xlu0 %v493, 96
          %v520 = vpop.permute.xlu0 %519
          %525 = vrot.lane.b32.xlu0 %v475, 80
          %v526 = vpop.permute.xlu0 %525
          %527 = vrot.lane.b32.xlu0 %v481, 80
          %v528 = vpop.permute.xlu0 %527
          %529 = vrot.lane.b32.xlu0 %v487, 80
          %v530 = vpop.permute.xlu0 %529
          %531 = vrot.lane.b32.xlu0 %v493, 80
          %v532 = vpop.permute.xlu0 %531
          %537 = vrot.lane.b32.xlu0 %v475, 64
          %v538 = vpop.permute.xlu0 %537
          %539 = vrot.lane.b32.xlu0 %v481, 64
          %v540 = vpop.permute.xlu0 %539
          %541 = vrot.lane.b32.xlu0 %v487, 64
          %v542 = vpop.permute.xlu0 %541
          %543 = vrot.lane.b32.xlu0 %v493, 64
          %v544 = vpop.permute.xlu0 %543
          %549 = vrot.lane.b32.xlu0 %v475, 48
          %v550 = vpop.permute.xlu0 %549
          %551 = vrot.lane.b32.xlu0 %v481, 48
          %v552 = vpop.permute.xlu0 %551
          %553 = vrot.lane.b32.xlu0 %v487, 48
          %v554 = vpop.permute.xlu0 %553
          %555 = vrot.lane.b32.xlu0 %v493, 48
          %v556 = vpop.permute.xlu0 %555
          %561 = vrot.lane.b32.xlu0 %v475, 32
          %v562 = vpop.permute.xlu0 %561
          %563 = vrot.lane.b32.xlu0 %v481, 32
          %v564 = vpop.permute.xlu0 %563
          %565 = vrot.lane.b32.xlu0 %v487, 32
          %v566 = vpop.permute.xlu0 %565
          %567 = vrot.lane.b32.xlu0 %v493, 32
          %v568 = vpop.permute.xlu0 %567
          %573 = vrot.lane.b32.xlu0 %v475, 16
          %v574 = vpop.permute.xlu0 %573
          %575 = vrot.lane.b32.xlu0 %v481, 16
          %v576 = vpop.permute.xlu0 %575
          %577 = vrot.lane.b32.xlu0 %v487, 16
          %v578 = vpop.permute.xlu0 %577
          %579 = vrot.lane.b32.xlu0 %v493, 16
          %v580 = vpop.permute.xlu0 %579
          %v585 = vcombine.low %v475, %v514
          %v586 = vcombine.high %v475, %v514
          %v588 = vunpack.c.l.s4 1983009808
          %v589 = vunpack.c.0.s8 %v588
          %v590 = vlaneseq
          %v591 = vshrl.u32 %v590, 7
          %v592 = vsub.s32 %v589, %v591
          %v593 = vrot.slane %v585, %v592
          %v595 = vunpack.c.l.s4 1983009808
          %v596 = vunpack.c.0.s8 %v595
          %v597 = vlaneseq
          %v598 = vshrl.u32 %v597, 7
          %v599 = vsub.s32 %v596, %v598
          %v600 = vrot.slane %v586, %v599
          %v601 = vcombine.low %v502, %v526
          %v602 = vcombine.high %v502, %v526
          %v604 = vunpack.c.l.s4 1983009808
          %v605 = vunpack.c.0.s8 %v604
          %v606 = vlaneseq
          %v607 = vshrl.u32 %v606, 7
          %v608 = vsub.s32 %v605, %v607
          %v609 = vrot.slane %v601, %v608
          %v611 = vunpack.c.l.s4 1983009808
          %v612 = vunpack.c.0.s8 %v611
          %v613 = vlaneseq
          %v614 = vshrl.u32 %v613, 7
          %v615 = vsub.s32 %v612, %v614
          %v616 = vrot.slane %v602, %v615
          %v617 = vcombine.low %v538, %v562
          %v618 = vcombine.high %v538, %v562
          %v620 = vunpack.c.l.s4 1983009808
          %v621 = vunpack.c.0.s8 %v620
          %v622 = vlaneseq
          %v623 = vshrl.u32 %v622, 7
          %v624 = vsub.s32 %v621, %v623
          %v625 = vrot.slane %v617, %v624
          %v627 = vunpack.c.l.s4 1983009808
          %v628 = vunpack.c.0.s8 %v627
          %v629 = vlaneseq
          %v630 = vshrl.u32 %v629, 7
          %v631 = vsub.s32 %v628, %v630
          %v632 = vrot.slane %v618, %v631
          %v633 = vcombine.low %v550, %v574
          %v634 = vcombine.high %v550, %v574
          %v636 = vunpack.c.l.s4 1983009808
          %v637 = vunpack.c.0.s8 %v636
          %v638 = vlaneseq
          %v639 = vshrl.u32 %v638, 7
          %v640 = vsub.s32 %v637, %v639
          %v641 = vrot.slane %v633, %v640
          %v643 = vunpack.c.l.s4 1983009808
          %v644 = vunpack.c.0.s8 %v643
          %v645 = vlaneseq
          %v646 = vshrl.u32 %v645, 7
          %v647 = vsub.s32 %v644, %v646
          %v648 = vrot.slane %v634, %v647
          %v649 = vcombine.low %v593, %v609
          %v650 = vcombine.high %v593, %v609
          %v652 = vunpack.c.l.s4 1934713408
          %v653 = vunpack.c.0.s8 %v652
          %v654 = vlaneseq
          %v655 = vshrl.u32 %v654, 7
          %v656 = vsub.s32 %v653, %v655
          %v657 = vrot.slane %v649, %v656
          %v659 = vunpack.c.l.s4 1934713408
          %v660 = vunpack.c.0.s8 %v659
          %v661 = vlaneseq
          %v662 = vshrl.u32 %v661, 7
          %v663 = vsub.s32 %v660, %v662
          %v664 = vrot.slane %v650, %v663
          %v665 = vcombine.low %v600, %v616
          %v666 = vcombine.high %v600, %v616
          %v668 = vunpack.c.l.s4 1934713408
          %v669 = vunpack.c.0.s8 %v668
          %v670 = vlaneseq
          %v671 = vshrl.u32 %v670, 7
          %v672 = vsub.s32 %v669, %v671
          %v673 = vrot.slane %v665, %v672
          %v675 = vunpack.c.l.s4 1934713408
          %v676 = vunpack.c.0.s8 %v675
          %v677 = vlaneseq
          %v678 = vshrl.u32 %v677, 7
          %v679 = vsub.s32 %v676, %v678
          %v680 = vrot.slane %v666, %v679
          %v681 = vcombine.low %v625, %v641
          %v682 = vcombine.high %v625, %v641
          %v684 = vunpack.c.l.s4 1934713408
          %v685 = vunpack.c.0.s8 %v684
          %v686 = vlaneseq
          %v687 = vshrl.u32 %v686, 7
          %v688 = vsub.s32 %v685, %v687
          %v689 = vrot.slane %v681, %v688
          %v691 = vunpack.c.l.s4 1934713408
          %v692 = vunpack.c.0.s8 %v691
          %v693 = vlaneseq
          %v694 = vshrl.u32 %v693, 7
          %v695 = vsub.s32 %v692, %v694
          %v696 = vrot.slane %v682, %v695
          %v697 = vcombine.low %v632, %v648
          %v698 = vcombine.high %v632, %v648
          %v700 = vunpack.c.l.s4 1934713408
          %v701 = vunpack.c.0.s8 %v700
          %v702 = vlaneseq
          %v703 = vshrl.u32 %v702, 7
          %v704 = vsub.s32 %v701, %v703
          %v705 = vrot.slane %v697, %v704
          %v707 = vunpack.c.l.s4 1934713408
          %v708 = vunpack.c.0.s8 %v707
          %v709 = vlaneseq
          %v710 = vshrl.u32 %v709, 7
          %v711 = vsub.s32 %v708, %v710
          %v712 = vrot.slane %v698, %v711
          %v713 = vcombine.low %v657, %v689
          %v714 = vcombine.high %v657, %v689
          %v715 = vcombine.low %v664, %v696
          %v716 = vcombine.high %v664, %v696
          %v717 = vcombine.low %v673, %v705
          %v718 = vcombine.high %v673, %v705
          %v719 = vcombine.low %v680, %v712
          %v720 = vcombine.high %v680, %v712
          %v721 = vcombine.low %v481, %v516
          %v722 = vcombine.high %v481, %v516
          %v724 = vunpack.c.l.s4 1983009808
          %v725 = vunpack.c.0.s8 %v724
          %v726 = vlaneseq
          %v727 = vshrl.u32 %v726, 7
          %v728 = vsub.s32 %v725, %v727
          %v729 = vrot.slane %v721, %v728
          %v731 = vunpack.c.l.s4 1983009808
          %v732 = vunpack.c.0.s8 %v731
          %v733 = vlaneseq
          %v734 = vshrl.u32 %v733, 7
          %v735 = vsub.s32 %v732, %v734
          %v736 = vrot.slane %v722, %v735
          %v737 = vcombine.low %v504, %v528
          %v738 = vcombine.high %v504, %v528
          %v740 = vunpack.c.l.s4 1983009808
          %v741 = vunpack.c.0.s8 %v740
          %v742 = vlaneseq
          %v743 = vshrl.u32 %v742, 7
          %v744 = vsub.s32 %v741, %v743
          %v745 = vrot.slane %v737, %v744
          %v747 = vunpack.c.l.s4 1983009808
          %v748 = vunpack.c.0.s8 %v747
          %v749 = vlaneseq
          %v750 = vshrl.u32 %v749, 7
          %v751 = vsub.s32 %v748, %v750
          %v752 = vrot.slane %v738, %v751
          %v753 = vcombine.low %v540, %v564
          %v754 = vcombine.high %v540, %v564
          %v756 = vunpack.c.l.s4 1983009808
          %v757 = vunpack.c.0.s8 %v756
          %v758 = vlaneseq
          %v759 = vshrl.u32 %v758, 7
          %v760 = vsub.s32 %v757, %v759
          %v761 = vrot.slane %v753, %v760
          %v763 = vunpack.c.l.s4 1983009808
          %v764 = vunpack.c.0.s8 %v763
          %v765 = vlaneseq
          %v766 = vshrl.u32 %v765, 7
          %v767 = vsub.s32 %v764, %v766
          %v768 = vrot.slane %v754, %v767
          %v769 = vcombine.low %v552, %v576
          %v770 = vcombine.high %v552, %v576
          %v772 = vunpack.c.l.s4 1983009808
          %v773 = vunpack.c.0.s8 %v772
          %v774 = vlaneseq
          %v775 = vshrl.u32 %v774, 7
          %v776 = vsub.s32 %v773, %v775
          %v777 = vrot.slane %v769, %v776
          %v779 = vunpack.c.l.s4 1983009808
          %v780 = vunpack.c.0.s8 %v779
          %v781 = vlaneseq
          %v782 = vshrl.u32 %v781, 7
          %v783 = vsub.s32 %v780, %v782
          %v784 = vrot.slane %v770, %v783
          %v785 = vcombine.low %v729, %v745
          %v786 = vcombine.high %v729, %v745
          %v788 = vunpack.c.l.s4 1934713408
          %v789 = vunpack.c.0.s8 %v788
          %v790 = vlaneseq
          %v791 = vshrl.u32 %v790, 7
          %v792 = vsub.s32 %v789, %v791
          %v793 = vrot.slane %v785, %v792
          %v795 = vunpack.c.l.s4 1934713408
          %v796 = vunpack.c.0.s8 %v795
          %v797 = vlaneseq
          %v798 = vshrl.u32 %v797, 7
          %v799 = vsub.s32 %v796, %v798
          %v800 = vrot.slane %v786, %v799
          %v801 = vcombine.low %v736, %v752
          %v802 = vcombine.high %v736, %v752
          %v804 = vunpack.c.l.s4 1934713408
          %v805 = vunpack.c.0.s8 %v804
          %v806 = vlaneseq
          %v807 = vshrl.u32 %v806, 7
          %v808 = vsub.s32 %v805, %v807
          %v809 = vrot.slane %v801, %v808
          %v811 = vunpack.c.l.s4 1934713408
          %v812 = vunpack.c.0.s8 %v811
          %v813 = vlaneseq
          %v814 = vshrl.u32 %v813, 7
          %v815 = vsub.s32 %v812, %v814
          %v816 = vrot.slane %v802, %v815
          %v817 = vcombine.low %v761, %v777
          %v818 = vcombine.high %v761, %v777
          %v820 = vunpack.c.l.s4 1934713408
          %v821 = vunpack.c.0.s8 %v820
          %v822 = vlaneseq
          %v823 = vshrl.u32 %v822, 7
          %v824 = vsub.s32 %v821, %v823
          %v825 = vrot.slane %v817, %v824
          %v827 = vunpack.c.l.s4 1934713408
          %v828 = vunpack.c.0.s8 %v827
          %v829 = vlaneseq
          %v830 = vshrl.u32 %v829, 7
          %v831 = vsub.s32 %v828, %v830
          %v832 = vrot.slane %v818, %v831
          %v833 = vcombine.low %v768, %v784
          %v834 = vcombine.high %v768, %v784
          %v836 = vunpack.c.l.s4 1934713408
          %v837 = vunpack.c.0.s8 %v836
          %v838 = vlaneseq
          %v839 = vshrl.u32 %v838, 7
          %v840 = vsub.s32 %v837, %v839
          %v841 = vrot.slane %v833, %v840
          %v843 = vunpack.c.l.s4 1934713408
          %v844 = vunpack.c.0.s8 %v843
          %v845 = vlaneseq
          %v846 = vshrl.u32 %v845, 7
          %v847 = vsub.s32 %v844, %v846
          %v848 = vrot.slane %v834, %v847
          %v849 = vcombine.low %v793, %v825
          %v850 = vcombine.high %v793, %v825
          %v851 = vcombine.low %v800, %v832
          %v852 = vcombine.high %v800, %v832
          %v853 = vcombine.low %v809, %v841
          %v854 = vcombine.high %v809, %v841
          %v855 = vcombine.low %v816, %v848
          %v856 = vcombine.high %v816, %v848
          %v857 = vcombine.low %v487, %v518
          %v858 = vcombine.high %v487, %v518
          %v860 = vunpack.c.l.s4 1983009808
          %v861 = vunpack.c.0.s8 %v860
          %v862 = vlaneseq
          %v863 = vshrl.u32 %v862, 7
          %v864 = vsub.s32 %v861, %v863
          %v865 = vrot.slane %v857, %v864
          %v867 = vunpack.c.l.s4 1983009808
          %v868 = vunpack.c.0.s8 %v867
          %v869 = vlaneseq
          %v870 = vshrl.u32 %v869, 7
          %v871 = vsub.s32 %v868, %v870
          %v872 = vrot.slane %v858, %v871
          %v873 = vcombine.low %v506, %v530
          %v874 = vcombine.high %v506, %v530
          %v876 = vunpack.c.l.s4 1983009808
          %v877 = vunpack.c.0.s8 %v876
          %v878 = vlaneseq
          %v879 = vshrl.u32 %v878, 7
          %v880 = vsub.s32 %v877, %v879
          %v881 = vrot.slane %v873, %v880
          %v883 = vunpack.c.l.s4 1983009808
          %v884 = vunpack.c.0.s8 %v883
          %v885 = vlaneseq
          %v886 = vshrl.u32 %v885, 7
          %v887 = vsub.s32 %v884, %v886
          %v888 = vrot.slane %v874, %v887
          %v889 = vcombine.low %v542, %v566
          %v890 = vcombine.high %v542, %v566
          %v892 = vunpack.c.l.s4 1983009808
          %v893 = vunpack.c.0.s8 %v892
          %v894 = vlaneseq
          %v895 = vshrl.u32 %v894, 7
          %v896 = vsub.s32 %v893, %v895
          %v897 = vrot.slane %v889, %v896
          %v899 = vunpack.c.l.s4 1983009808
          %v900 = vunpack.c.0.s8 %v899
          %v901 = vlaneseq
          %v902 = vshrl.u32 %v901, 7
          %v903 = vsub.s32 %v900, %v902
          %v904 = vrot.slane %v890, %v903
          %v905 = vcombine.low %v554, %v578
          %v906 = vcombine.high %v554, %v578
          %v908 = vunpack.c.l.s4 1983009808
          %v909 = vunpack.c.0.s8 %v908
          %v910 = vlaneseq
          %v911 = vshrl.u32 %v910, 7
          %v912 = vsub.s32 %v909, %v911
          %v913 = vrot.slane %v905, %v912
          %v915 = vunpack.c.l.s4 1983009808
          %v916 = vunpack.c.0.s8 %v915
          %v917 = vlaneseq
          %v918 = vshrl.u32 %v917, 7
          %v919 = vsub.s32 %v916, %v918
          %v920 = vrot.slane %v906, %v919
          %v921 = vcombine.low %v865, %v881
          %v922 = vcombine.high %v865, %v881
          %v924 = vunpack.c.l.s4 1934713408
          %v925 = vunpack.c.0.s8 %v924
          %v926 = vlaneseq
          %v927 = vshrl.u32 %v926, 7
          %v928 = vsub.s32 %v925, %v927
          %v929 = vrot.slane %v921, %v928
          %v931 = vunpack.c.l.s4 1934713408
          %v932 = vunpack.c.0.s8 %v931
          %v933 = vlaneseq
          %v934 = vshrl.u32 %v933, 7
          %v935 = vsub.s32 %v932, %v934
          %v936 = vrot.slane %v922, %v935
          %v937 = vcombine.low %v872, %v888
          %v938 = vcombine.high %v872, %v888
          %v940 = vunpack.c.l.s4 1934713408
          %v941 = vunpack.c.0.s8 %v940
          %v942 = vlaneseq
          %v943 = vshrl.u32 %v942, 7
          %v944 = vsub.s32 %v941, %v943
          %v945 = vrot.slane %v937, %v944
          %v947 = vunpack.c.l.s4 1934713408
          %v948 = vunpack.c.0.s8 %v947
          %v949 = vlaneseq
          %v950 = vshrl.u32 %v949, 7
          %v951 = vsub.s32 %v948, %v950
          %v952 = vrot.slane %v938, %v951
          %v953 = vcombine.low %v897, %v913
          %v954 = vcombine.high %v897, %v913
          %v956 = vunpack.c.l.s4 1934713408
          %v957 = vunpack.c.0.s8 %v956
          %v958 = vlaneseq
          %v959 = vshrl.u32 %v958, 7
          %v960 = vsub.s32 %v957, %v959
          %v961 = vrot.slane %v953, %v960
          %v963 = vunpack.c.l.s4 1934713408
          %v964 = vunpack.c.0.s8 %v963
          %v965 = vlaneseq
          %v966 = vshrl.u32 %v965, 7
          %v967 = vsub.s32 %v964, %v966
          %v968 = vrot.slane %v954, %v967
          %v969 = vcombine.low %v904, %v920
          %v970 = vcombine.high %v904, %v920
          %v972 = vunpack.c.l.s4 1934713408
          %v973 = vunpack.c.0.s8 %v972
          %v974 = vlaneseq
          %v975 = vshrl.u32 %v974, 7
          %v976 = vsub.s32 %v973, %v975
          %v977 = vrot.slane %v969, %v976
          %v979 = vunpack.c.l.s4 1934713408
          %v980 = vunpack.c.0.s8 %v979
          %v981 = vlaneseq
          %v982 = vshrl.u32 %v981, 7
          %v983 = vsub.s32 %v980, %v982
          %v984 = vrot.slane %v970, %v983
          %v985 = vcombine.low %v929, %v961
          %v986 = vcombine.high %v929, %v961
          %v987 = vcombine.low %v936, %v968
          %v988 = vcombine.high %v936, %v968
          %v989 = vcombine.low %v945, %v977
          %v990 = vcombine.high %v945, %v977
          %v991 = vcombine.low %v952, %v984
          %v992 = vcombine.high %v952, %v984
          %v993 = vcombine.low %v493, %v520
          %v994 = vcombine.high %v493, %v520
          %v996 = vunpack.c.l.s4 1983009808
          %v997 = vunpack.c.0.s8 %v996
          %v998 = vlaneseq
          %v999 = vshrl.u32 %v998, 7
          %v1000 = vsub.s32 %v997, %v999
          %v1001 = vrot.slane %v993, %v1000
          %v1003 = vunpack.c.l.s4 1983009808
          %v1004 = vunpack.c.0.s8 %v1003
          %v1005 = vlaneseq
          %v1006 = vshrl.u32 %v1005, 7
          %v1007 = vsub.s32 %v1004, %v1006
          %v1008 = vrot.slane %v994, %v1007
          %v1009 = vcombine.low %v508, %v532
          %v1010 = vcombine.high %v508, %v532
          %v1012 = vunpack.c.l.s4 1983009808
          %v1013 = vunpack.c.0.s8 %v1012
          %v1014 = vlaneseq
          %v1015 = vshrl.u32 %v1014, 7
          %v1016 = vsub.s32 %v1013, %v1015
          %v1017 = vrot.slane %v1009, %v1016
          %v1019 = vunpack.c.l.s4 1983009808
          %v1020 = vunpack.c.0.s8 %v1019
          %v1021 = vlaneseq
          %v1022 = vshrl.u32 %v1021, 7
          %v1023 = vsub.s32 %v1020, %v1022
          %v1024 = vrot.slane %v1010, %v1023
          %v1025 = vcombine.low %v544, %v568
          %v1026 = vcombine.high %v544, %v568
          %v1028 = vunpack.c.l.s4 1983009808
          %v1029 = vunpack.c.0.s8 %v1028
          %v1030 = vlaneseq
          %v1031 = vshrl.u32 %v1030, 7
          %v1032 = vsub.s32 %v1029, %v1031
          %v1033 = vrot.slane %v1025, %v1032
          %v1035 = vunpack.c.l.s4 1983009808
          %v1036 = vunpack.c.0.s8 %v1035
          %v1037 = vlaneseq
          %v1038 = vshrl.u32 %v1037, 7
          %v1039 = vsub.s32 %v1036, %v1038
          %v1040 = vrot.slane %v1026, %v1039
          %v1041 = vcombine.low %v556, %v580
          %v1042 = vcombine.high %v556, %v580
          %v1044 = vunpack.c.l.s4 1983009808
          %v1045 = vunpack.c.0.s8 %v1044
          %v1046 = vlaneseq
          %v1047 = vshrl.u32 %v1046, 7
          %v1048 = vsub.s32 %v1045, %v1047
          %v1049 = vrot.slane %v1041, %v1048
          %v1051 = vunpack.c.l.s4 1983009808
          %v1052 = vunpack.c.0.s8 %v1051
          %v1053 = vlaneseq
          %v1054 = vshrl.u32 %v1053, 7
          %v1055 = vsub.s32 %v1052, %v1054
          %v1056 = vrot.slane %v1042, %v1055
          %v1057 = vcombine.low %v1001, %v1017
          %v1058 = vcombine.high %v1001, %v1017
          %v1060 = vunpack.c.l.s4 1934713408
          %v1061 = vunpack.c.0.s8 %v1060
          %v1062 = vlaneseq
          %v1063 = vshrl.u32 %v1062, 7
          %v1064 = vsub.s32 %v1061, %v1063
          %v1065 = vrot.slane %v1057, %v1064
          %v1067 = vunpack.c.l.s4 1934713408
          %v1068 = vunpack.c.0.s8 %v1067
          %v1069 = vlaneseq
          %v1070 = vshrl.u32 %v1069, 7
          %v1071 = vsub.s32 %v1068, %v1070
          %v1072 = vrot.slane %v1058, %v1071
          %v1073 = vcombine.low %v1008, %v1024
          %v1074 = vcombine.high %v1008, %v1024
          %v1076 = vunpack.c.l.s4 1934713408
          %v1077 = vunpack.c.0.s8 %v1076
          %v1078 = vlaneseq
          %v1079 = vshrl.u32 %v1078, 7
          %v1080 = vsub.s32 %v1077, %v1079
          %v1081 = vrot.slane %v1073, %v1080
          %v1083 = vunpack.c.l.s4 1934713408
          %v1084 = vunpack.c.0.s8 %v1083
          %v1085 = vlaneseq
          %v1086 = vshrl.u32 %v1085, 7
          %v1087 = vsub.s32 %v1084, %v1086
          %v1088 = vrot.slane %v1074, %v1087
          %v1089 = vcombine.low %v1033, %v1049
          %v1090 = vcombine.high %v1033, %v1049
          %v1092 = vunpack.c.l.s4 1934713408
          %v1093 = vunpack.c.0.s8 %v1092
          %v1094 = vlaneseq
          %v1095 = vshrl.u32 %v1094, 7
          %v1096 = vsub.s32 %v1093, %v1095
          %v1097 = vrot.slane %v1089, %v1096
          %v1099 = vunpack.c.l.s4 1934713408
          %v1100 = vunpack.c.0.s8 %v1099
          %v1101 = vlaneseq
          %v1102 = vshrl.u32 %v1101, 7
          %v1103 = vsub.s32 %v1100, %v1102
          %v1104 = vrot.slane %v1090, %v1103
          %v1105 = vcombine.low %v1040, %v1056
          %v1106 = vcombine.high %v1040, %v1056
          %v1108 = vunpack.c.l.s4 1934713408
          %v1109 = vunpack.c.0.s8 %v1108
          %v1110 = vlaneseq
          %v1111 = vshrl.u32 %v1110, 7
          %v1112 = vsub.s32 %v1109, %v1111
          %v1113 = vrot.slane %v1105, %v1112
          %v1115 = vunpack.c.l.s4 1934713408
          %v1116 = vunpack.c.0.s8 %v1115
          %v1117 = vlaneseq
          %v1118 = vshrl.u32 %v1117, 7
          %v1119 = vsub.s32 %v1116, %v1118
          %v1120 = vrot.slane %v1106, %v1119
          %v1121 = vcombine.low %v1065, %v1097
          %v1122 = vcombine.high %v1065, %v1097
          %v1123 = vcombine.low %v1072, %v1104
          %v1124 = vcombine.high %v1072, %v1104
          %v1125 = vcombine.low %v1081, %v1113
          %v1126 = vcombine.high %v1081, %v1113
          %v1127 = vcombine.low %v1088, %v1120
          %v1128 = vcombine.high %v1088, %v1120
          %v1129 = vcombine.low %v713, %v715
          %v1130 = vcombine.high %v713, %v715
          %v1132 = vunpack.c.l.s4 1983009808
          %v1133 = vunpack.c.0.s8 %v1132
          %v1134 = vlaneseq
          %v1135 = vshrl.u32 %v1134, 7
          %v1136 = vsub.s32 %v1133, %v1135
          %v1137 = vrot.slane %v1129, %v1136
          %v1139 = vunpack.c.l.s4 1983009808
          %v1140 = vunpack.c.0.s8 %v1139
          %v1141 = vlaneseq
          %v1142 = vshrl.u32 %v1141, 7
          %v1143 = vsub.s32 %v1140, %v1142
          %v1144 = vrot.slane %v1130, %v1143
          %v1145 = vcombine.low %v714, %v716
          %v1146 = vcombine.high %v714, %v716
          %v1148 = vunpack.c.l.s4 1983009808
          %v1149 = vunpack.c.0.s8 %v1148
          %v1150 = vlaneseq
          %v1151 = vshrl.u32 %v1150, 7
          %v1152 = vsub.s32 %v1149, %v1151
          %v1153 = vrot.slane %v1145, %v1152
          %v1155 = vunpack.c.l.s4 1983009808
          %v1156 = vunpack.c.0.s8 %v1155
          %v1157 = vlaneseq
          %v1158 = vshrl.u32 %v1157, 7
          %v1159 = vsub.s32 %v1156, %v1158
          %v1160 = vrot.slane %v1146, %v1159
          %v1161 = vcombine.low %v717, %v719
          %v1162 = vcombine.high %v717, %v719
          %v1164 = vunpack.c.l.s4 1983009808
          %v1165 = vunpack.c.0.s8 %v1164
          %v1166 = vlaneseq
          %v1167 = vshrl.u32 %v1166, 7
          %v1168 = vsub.s32 %v1165, %v1167
          %v1169 = vrot.slane %v1161, %v1168
          %v1171 = vunpack.c.l.s4 1983009808
          %v1172 = vunpack.c.0.s8 %v1171
          %v1173 = vlaneseq
          %v1174 = vshrl.u32 %v1173, 7
          %v1175 = vsub.s32 %v1172, %v1174
          %v1176 = vrot.slane %v1162, %v1175
          %v1177 = vcombine.low %v718, %v720
          %v1178 = vcombine.high %v718, %v720
          %v1180 = vunpack.c.l.s4 1983009808
          %v1181 = vunpack.c.0.s8 %v1180
          %v1182 = vlaneseq
          %v1183 = vshrl.u32 %v1182, 7
          %v1184 = vsub.s32 %v1181, %v1183
          %v1185 = vrot.slane %v1177, %v1184
          %v1187 = vunpack.c.l.s4 1983009808
          %v1188 = vunpack.c.0.s8 %v1187
          %v1189 = vlaneseq
          %v1190 = vshrl.u32 %v1189, 7
          %v1191 = vsub.s32 %v1188, %v1190
          %v1192 = vrot.slane %v1178, %v1191
          %v1193 = vcombine.low %v1137, %v1153
          %v1194 = vcombine.high %v1137, %v1153
          %v1196 = vunpack.c.l.s4 1934713408
          %v1197 = vunpack.c.0.s8 %v1196
          %v1198 = vlaneseq
          %v1199 = vshrl.u32 %v1198, 7
          %v1200 = vsub.s32 %v1197, %v1199
          %v1201 = vrot.slane %v1193, %v1200
          %v1203 = vunpack.c.l.s4 1934713408
          %v1204 = vunpack.c.0.s8 %v1203
          %v1205 = vlaneseq
          %v1206 = vshrl.u32 %v1205, 7
          %v1207 = vsub.s32 %v1204, %v1206
          %v1208 = vrot.slane %v1194, %v1207
          %v1209 = vcombine.low %v1144, %v1160
          %v1210 = vcombine.high %v1144, %v1160
          %v1212 = vunpack.c.l.s4 1934713408
          %v1213 = vunpack.c.0.s8 %v1212
          %v1214 = vlaneseq
          %v1215 = vshrl.u32 %v1214, 7
          %v1216 = vsub.s32 %v1213, %v1215
          %v1217 = vrot.slane %v1209, %v1216
          %v1219 = vunpack.c.l.s4 1934713408
          %v1220 = vunpack.c.0.s8 %v1219
          %v1221 = vlaneseq
          %v1222 = vshrl.u32 %v1221, 7
          %v1223 = vsub.s32 %v1220, %v1222
          %v1224 = vrot.slane %v1210, %v1223
          %v1225 = vcombine.low %v1169, %v1185
          %v1226 = vcombine.high %v1169, %v1185
          %v1228 = vunpack.c.l.s4 1934713408
          %v1229 = vunpack.c.0.s8 %v1228
          %v1230 = vlaneseq
          %v1231 = vshrl.u32 %v1230, 7
          %v1232 = vsub.s32 %v1229, %v1231
          %v1233 = vrot.slane %v1225, %v1232
          %v1235 = vunpack.c.l.s4 1934713408
          %v1236 = vunpack.c.0.s8 %v1235
          %v1237 = vlaneseq
          %v1238 = vshrl.u32 %v1237, 7
          %v1239 = vsub.s32 %v1236, %v1238
          %v1240 = vrot.slane %v1226, %v1239
          %v1241 = vcombine.low %v1176, %v1192
          %v1242 = vcombine.high %v1176, %v1192
          %v1244 = vunpack.c.l.s4 1934713408
          %v1245 = vunpack.c.0.s8 %v1244
          %v1246 = vlaneseq
          %v1247 = vshrl.u32 %v1246, 7
          %v1248 = vsub.s32 %v1245, %v1247
          %v1249 = vrot.slane %v1241, %v1248
          %v1251 = vunpack.c.l.s4 1934713408
          %v1252 = vunpack.c.0.s8 %v1251
          %v1253 = vlaneseq
          %v1254 = vshrl.u32 %v1253, 7
          %v1255 = vsub.s32 %v1252, %v1254
          %v1256 = vrot.slane %v1242, %v1255
          %v1257 = vcombine.low %v1201, %v1233
          %v1258 = vcombine.high %v1201, %v1233
          %v1259 = vcombine.low %v1208, %v1240
          %v1260 = vcombine.high %v1208, %v1240
          %v1261 = vcombine.low %v1217, %v1249
          %v1262 = vcombine.high %v1217, %v1249
          %v1263 = vcombine.low %v1224, %v1256
          %v1264 = vcombine.high %v1224, %v1256
          %v1265 = vcombine.low %v849, %v851
          %v1266 = vcombine.high %v849, %v851
          %v1268 = vunpack.c.l.s4 1983009808
          %v1269 = vunpack.c.0.s8 %v1268
          %v1270 = vlaneseq
          %v1271 = vshrl.u32 %v1270, 7
          %v1272 = vsub.s32 %v1269, %v1271
          %v1273 = vrot.slane %v1265, %v1272
          %v1275 = vunpack.c.l.s4 1983009808
          %v1276 = vunpack.c.0.s8 %v1275
          %v1277 = vlaneseq
          %v1278 = vshrl.u32 %v1277, 7
          %v1279 = vsub.s32 %v1276, %v1278
          %v1280 = vrot.slane %v1266, %v1279
          %v1281 = vcombine.low %v850, %v852
          %v1282 = vcombine.high %v850, %v852
          %v1284 = vunpack.c.l.s4 1983009808
          %v1285 = vunpack.c.0.s8 %v1284
          %v1286 = vlaneseq
          %v1287 = vshrl.u32 %v1286, 7
          %v1288 = vsub.s32 %v1285, %v1287
          %v1289 = vrot.slane %v1281, %v1288
          %v1291 = vunpack.c.l.s4 1983009808
          %v1292 = vunpack.c.0.s8 %v1291
          %v1293 = vlaneseq
          %v1294 = vshrl.u32 %v1293, 7
          %v1295 = vsub.s32 %v1292, %v1294
          %v1296 = vrot.slane %v1282, %v1295
          %v1297 = vcombine.low %v853, %v855
          %v1298 = vcombine.high %v853, %v855
          %v1300 = vunpack.c.l.s4 1983009808
          %v1301 = vunpack.c.0.s8 %v1300
          %v1302 = vlaneseq
          %v1303 = vshrl.u32 %v1302, 7
          %v1304 = vsub.s32 %v1301, %v1303
          %v1305 = vrot.slane %v1297, %v1304
          %v1307 = vunpack.c.l.s4 1983009808
          %v1308 = vunpack.c.0.s8 %v1307
          %v1309 = vlaneseq
          %v1310 = vshrl.u32 %v1309, 7
          %v1311 = vsub.s32 %v1308, %v1310
          %v1312 = vrot.slane %v1298, %v1311
          %v1313 = vcombine.low %v854, %v856
          %v1314 = vcombine.high %v854, %v856
          %v1316 = vunpack.c.l.s4 1983009808
          %v1317 = vunpack.c.0.s8 %v1316
          %v1318 = vlaneseq
          %v1319 = vshrl.u32 %v1318, 7
          %v1320 = vsub.s32 %v1317, %v1319
          %v1321 = vrot.slane %v1313, %v1320
          %v1323 = vunpack.c.l.s4 1983009808
          %v1324 = vunpack.c.0.s8 %v1323
          %v1325 = vlaneseq
          %v1326 = vshrl.u32 %v1325, 7
          %v1327 = vsub.s32 %v1324, %v1326
          %v1328 = vrot.slane %v1314, %v1327
          %v1329 = vcombine.low %v1273, %v1289
          %v1330 = vcombine.high %v1273, %v1289
          %v1332 = vunpack.c.l.s4 1934713408
          %v1333 = vunpack.c.0.s8 %v1332
          %v1334 = vlaneseq
          %v1335 = vshrl.u32 %v1334, 7
          %v1336 = vsub.s32 %v1333, %v1335
          %v1337 = vrot.slane %v1329, %v1336
          %v1339 = vunpack.c.l.s4 1934713408
          %v1340 = vunpack.c.0.s8 %v1339
          %v1341 = vlaneseq
          %v1342 = vshrl.u32 %v1341, 7
          %v1343 = vsub.s32 %v1340, %v1342
          %v1344 = vrot.slane %v1330, %v1343
          %v1345 = vcombine.low %v1280, %v1296
          %v1346 = vcombine.high %v1280, %v1296
          %v1348 = vunpack.c.l.s4 1934713408
          %v1349 = vunpack.c.0.s8 %v1348
          %v1350 = vlaneseq
          %v1351 = vshrl.u32 %v1350, 7
          %v1352 = vsub.s32 %v1349, %v1351
          %v1353 = vrot.slane %v1345, %v1352
          %v1355 = vunpack.c.l.s4 1934713408
          %v1356 = vunpack.c.0.s8 %v1355
          %v1357 = vlaneseq
          %v1358 = vshrl.u32 %v1357, 7
          %v1359 = vsub.s32 %v1356, %v1358
          %v1360 = vrot.slane %v1346, %v1359
          %v1361 = vcombine.low %v1305, %v1321
          %v1362 = vcombine.high %v1305, %v1321
          %v1364 = vunpack.c.l.s4 1934713408
          %v1365 = vunpack.c.0.s8 %v1364
          %v1366 = vlaneseq
          %v1367 = vshrl.u32 %v1366, 7
          %v1368 = vsub.s32 %v1365, %v1367
          %v1369 = vrot.slane %v1361, %v1368
          %v1371 = vunpack.c.l.s4 1934713408
          %v1372 = vunpack.c.0.s8 %v1371
          %v1373 = vlaneseq
          %v1374 = vshrl.u32 %v1373, 7
          %v1375 = vsub.s32 %v1372, %v1374
          %v1376 = vrot.slane %v1362, %v1375
          %v1377 = vcombine.low %v1312, %v1328
          %v1378 = vcombine.high %v1312, %v1328
          %v1380 = vunpack.c.l.s4 1934713408
          %v1381 = vunpack.c.0.s8 %v1380
          %v1382 = vlaneseq
          %v1383 = vshrl.u32 %v1382, 7
          %v1384 = vsub.s32 %v1381, %v1383
          %v1385 = vrot.slane %v1377, %v1384
          %v1387 = vunpack.c.l.s4 1934713408
          %v1388 = vunpack.c.0.s8 %v1387
          %v1389 = vlaneseq
          %v1390 = vshrl.u32 %v1389, 7
          %v1391 = vsub.s32 %v1388, %v1390
          %v1392 = vrot.slane %v1378, %v1391
          %v1393 = vcombine.low %v1337, %v1369
          %v1394 = vcombine.high %v1337, %v1369
          %v1395 = vcombine.low %v1344, %v1376
          %v1396 = vcombine.high %v1344, %v1376
          %v1397 = vcombine.low %v1353, %v1385
          %v1398 = vcombine.high %v1353, %v1385
          %v1399 = vcombine.low %v1360, %v1392
          %v1400 = vcombine.high %v1360, %v1392
          %v1401 = vcombine.low %v985, %v987
          %v1402 = vcombine.high %v985, %v987
          %v1404 = vunpack.c.l.s4 1983009808
          %v1405 = vunpack.c.0.s8 %v1404
          %v1406 = vlaneseq
          %v1407 = vshrl.u32 %v1406, 7
          %v1408 = vsub.s32 %v1405, %v1407
          %v1409 = vrot.slane %v1401, %v1408
          %v1411 = vunpack.c.l.s4 1983009808
          %v1412 = vunpack.c.0.s8 %v1411
          %v1413 = vlaneseq
          %v1414 = vshrl.u32 %v1413, 7
          %v1415 = vsub.s32 %v1412, %v1414
          %v1416 = vrot.slane %v1402, %v1415
          %v1417 = vcombine.low %v986, %v988
          %v1418 = vcombine.high %v986, %v988
          %v1420 = vunpack.c.l.s4 1983009808
          %v1421 = vunpack.c.0.s8 %v1420
          %v1422 = vlaneseq
          %v1423 = vshrl.u32 %v1422, 7
          %v1424 = vsub.s32 %v1421, %v1423
          %v1425 = vrot.slane %v1417, %v1424
          %v1427 = vunpack.c.l.s4 1983009808
          %v1428 = vunpack.c.0.s8 %v1427
          %v1429 = vlaneseq
          %v1430 = vshrl.u32 %v1429, 7
          %v1431 = vsub.s32 %v1428, %v1430
          %v1432 = vrot.slane %v1418, %v1431
          %v1433 = vcombine.low %v989, %v991
          %v1434 = vcombine.high %v989, %v991
          %v1436 = vunpack.c.l.s4 1983009808
          %v1437 = vunpack.c.0.s8 %v1436
          %v1438 = vlaneseq
          %v1439 = vshrl.u32 %v1438, 7
          %v1440 = vsub.s32 %v1437, %v1439
          %v1441 = vrot.slane %v1433, %v1440
          %v1443 = vunpack.c.l.s4 1983009808
          %v1444 = vunpack.c.0.s8 %v1443
          %v1445 = vlaneseq
          %v1446 = vshrl.u32 %v1445, 7
          %v1447 = vsub.s32 %v1444, %v1446
          %v1448 = vrot.slane %v1434, %v1447
          %v1449 = vcombine.low %v990, %v992
          %v1450 = vcombine.high %v990, %v992
          %v1452 = vunpack.c.l.s4 1983009808
          %v1453 = vunpack.c.0.s8 %v1452
          %v1454 = vlaneseq
          %v1455 = vshrl.u32 %v1454, 7
          %v1456 = vsub.s32 %v1453, %v1455
          %v1457 = vrot.slane %v1449, %v1456
          %v1459 = vunpack.c.l.s4 1983009808
          %v1460 = vunpack.c.0.s8 %v1459
          %v1461 = vlaneseq
          %v1462 = vshrl.u32 %v1461, 7
          %v1463 = vsub.s32 %v1460, %v1462
          %v1464 = vrot.slane %v1450, %v1463
          %v1465 = vcombine.low %v1409, %v1425
          %v1466 = vcombine.high %v1409, %v1425
          %v1468 = vunpack.c.l.s4 1934713408
          %v1469 = vunpack.c.0.s8 %v1468
          %v1470 = vlaneseq
          %v1471 = vshrl.u32 %v1470, 7
          %v1472 = vsub.s32 %v1469, %v1471
          %v1473 = vrot.slane %v1465, %v1472
          %v1475 = vunpack.c.l.s4 1934713408
          %v1476 = vunpack.c.0.s8 %v1475
          %v1477 = vlaneseq
          %v1478 = vshrl.u32 %v1477, 7
          %v1479 = vsub.s32 %v1476, %v1478
          %v1480 = vrot.slane %v1466, %v1479
          %v1481 = vcombine.low %v1416, %v1432
          %v1482 = vcombine.high %v1416, %v1432
          %v1484 = vunpack.c.l.s4 1934713408
          %v1485 = vunpack.c.0.s8 %v1484
          %v1486 = vlaneseq
          %v1487 = vshrl.u32 %v1486, 7
          %v1488 = vsub.s32 %v1485, %v1487
          %v1489 = vrot.slane %v1481, %v1488
          %v1491 = vunpack.c.l.s4 1934713408
          %v1492 = vunpack.c.0.s8 %v1491
          %v1493 = vlaneseq
          %v1494 = vshrl.u32 %v1493, 7
          %v1495 = vsub.s32 %v1492, %v1494
          %v1496 = vrot.slane %v1482, %v1495
          %v1497 = vcombine.low %v1441, %v1457
          %v1498 = vcombine.high %v1441, %v1457
          %v1500 = vunpack.c.l.s4 1934713408
          %v1501 = vunpack.c.0.s8 %v1500
          %v1502 = vlaneseq
          %v1503 = vshrl.u32 %v1502, 7
          %v1504 = vsub.s32 %v1501, %v1503
          %v1505 = vrot.slane %v1497, %v1504
          %v1507 = vunpack.c.l.s4 1934713408
          %v1508 = vunpack.c.0.s8 %v1507
          %v1509 = vlaneseq
          %v1510 = vshrl.u32 %v1509, 7
          %v1511 = vsub.s32 %v1508, %v1510
          %v1512 = vrot.slane %v1498, %v1511
          %v1513 = vcombine.low %v1448, %v1464
          %v1514 = vcombine.high %v1448, %v1464
          %v1516 = vunpack.c.l.s4 1934713408
          %v1517 = vunpack.c.0.s8 %v1516
          %v1518 = vlaneseq
          %v1519 = vshrl.u32 %v1518, 7
          %v1520 = vsub.s32 %v1517, %v1519
          %v1521 = vrot.slane %v1513, %v1520
          %v1523 = vunpack.c.l.s4 1934713408
          %v1524 = vunpack.c.0.s8 %v1523
          %v1525 = vlaneseq
          %v1526 = vshrl.u32 %v1525, 7
          %v1527 = vsub.s32 %v1524, %v1526
          %v1528 = vrot.slane %v1514, %v1527
          %v1529 = vcombine.low %v1473, %v1505
          %v1530 = vcombine.high %v1473, %v1505
          %v1531 = vcombine.low %v1480, %v1512
          %v1532 = vcombine.high %v1480, %v1512
          %v1533 = vcombine.low %v1489, %v1521
          %v1534 = vcombine.high %v1489, %v1521
          %v1535 = vcombine.low %v1496, %v1528
          %v1536 = vcombine.high %v1496, %v1528
          %v1537 = vcombine.low %v1121, %v1123
          %v1538 = vcombine.high %v1121, %v1123
          %v1540 = vunpack.c.l.s4 1983009808
          %v1541 = vunpack.c.0.s8 %v1540
          %v1542 = vlaneseq
          %v1543 = vshrl.u32 %v1542, 7
          %v1544 = vsub.s32 %v1541, %v1543
          %v1545 = vrot.slane %v1537, %v1544
          %v1547 = vunpack.c.l.s4 1983009808
          %v1548 = vunpack.c.0.s8 %v1547
          %v1549 = vlaneseq
          %v1550 = vshrl.u32 %v1549, 7
          %v1551 = vsub.s32 %v1548, %v1550
          %v1552 = vrot.slane %v1538, %v1551
          %v1553 = vcombine.low %v1122, %v1124
          %v1554 = vcombine.high %v1122, %v1124
          %v1556 = vunpack.c.l.s4 1983009808
          %v1557 = vunpack.c.0.s8 %v1556
          %v1558 = vlaneseq
          %v1559 = vshrl.u32 %v1558, 7
          %v1560 = vsub.s32 %v1557, %v1559
          %v1561 = vrot.slane %v1553, %v1560
          %v1563 = vunpack.c.l.s4 1983009808
          %v1564 = vunpack.c.0.s8 %v1563
          %v1565 = vlaneseq
          %v1566 = vshrl.u32 %v1565, 7
          %v1567 = vsub.s32 %v1564, %v1566
          %v1568 = vrot.slane %v1554, %v1567
          %v1569 = vcombine.low %v1125, %v1127
          %v1570 = vcombine.high %v1125, %v1127
          %v1572 = vunpack.c.l.s4 1983009808
          %v1573 = vunpack.c.0.s8 %v1572
          %v1574 = vlaneseq
          %v1575 = vshrl.u32 %v1574, 7
          %v1576 = vsub.s32 %v1573, %v1575
          %v1577 = vrot.slane %v1569, %v1576
          %v1579 = vunpack.c.l.s4 1983009808
          %v1580 = vunpack.c.0.s8 %v1579
          %v1581 = vlaneseq
          %v1582 = vshrl.u32 %v1581, 7
          %v1583 = vsub.s32 %v1580, %v1582
          %v1584 = vrot.slane %v1570, %v1583
          %v1585 = vcombine.low %v1126, %v1128
          %v1586 = vcombine.high %v1126, %v1128
          %v1588 = vunpack.c.l.s4 1983009808
          %v1589 = vunpack.c.0.s8 %v1588
          %v1590 = vlaneseq
          %v1591 = vshrl.u32 %v1590, 7
          %v1592 = vsub.s32 %v1589, %v1591
          %v1593 = vrot.slane %v1585, %v1592
          %v1595 = vunpack.c.l.s4 1983009808
          %v1596 = vunpack.c.0.s8 %v1595
          %v1597 = vlaneseq
          %v1598 = vshrl.u32 %v1597, 7
          %v1599 = vsub.s32 %v1596, %v1598
          %v1600 = vrot.slane %v1586, %v1599
          %v1601 = vcombine.low %v1545, %v1561
          %v1602 = vcombine.high %v1545, %v1561
          %v1604 = vunpack.c.l.s4 1934713408
          %v1605 = vunpack.c.0.s8 %v1604
          %v1606 = vlaneseq
          %v1607 = vshrl.u32 %v1606, 7
          %v1608 = vsub.s32 %v1605, %v1607
          %v1609 = vrot.slane %v1601, %v1608
          %v1611 = vunpack.c.l.s4 1934713408
          %v1612 = vunpack.c.0.s8 %v1611
          %v1613 = vlaneseq
          %v1614 = vshrl.u32 %v1613, 7
          %v1615 = vsub.s32 %v1612, %v1614
          %v1616 = vrot.slane %v1602, %v1615
          %v1617 = vcombine.low %v1552, %v1568
          %v1618 = vcombine.high %v1552, %v1568
          %v1620 = vunpack.c.l.s4 1934713408
          %v1621 = vunpack.c.0.s8 %v1620
          %v1622 = vlaneseq
          %v1623 = vshrl.u32 %v1622, 7
          %v1624 = vsub.s32 %v1621, %v1623
          %v1625 = vrot.slane %v1617, %v1624
          %v1627 = vunpack.c.l.s4 1934713408
          %v1628 = vunpack.c.0.s8 %v1627
          %v1629 = vlaneseq
          %v1630 = vshrl.u32 %v1629, 7
          %v1631 = vsub.s32 %v1628, %v1630
          %v1632 = vrot.slane %v1618, %v1631
          %v1633 = vcombine.low %v1577, %v1593
          %v1634 = vcombine.high %v1577, %v1593
          %v1636 = vunpack.c.l.s4 1934713408
          %v1637 = vunpack.c.0.s8 %v1636
          %v1638 = vlaneseq
          %v1639 = vshrl.u32 %v1638, 7
          %v1640 = vsub.s32 %v1637, %v1639
          %v1641 = vrot.slane %v1633, %v1640
          %v1643 = vunpack.c.l.s4 1934713408
          %v1644 = vunpack.c.0.s8 %v1643
          %v1645 = vlaneseq
          %v1646 = vshrl.u32 %v1645, 7
          %v1647 = vsub.s32 %v1644, %v1646
          %v1648 = vrot.slane %v1634, %v1647
          %v1649 = vcombine.low %v1584, %v1600
          %v1650 = vcombine.high %v1584, %v1600
          %v1652 = vunpack.c.l.s4 1934713408
          %v1653 = vunpack.c.0.s8 %v1652
          %v1654 = vlaneseq
          %v1655 = vshrl.u32 %v1654, 7
          %v1656 = vsub.s32 %v1653, %v1655
          %v1657 = vrot.slane %v1649, %v1656
          %v1659 = vunpack.c.l.s4 1934713408
          %v1660 = vunpack.c.0.s8 %v1659
          %v1661 = vlaneseq
          %v1662 = vshrl.u32 %v1661, 7
          %v1663 = vsub.s32 %v1660, %v1662
          %v1664 = vrot.slane %v1650, %v1663
          %v1665 = vcombine.low %v1609, %v1641
          %v1666 = vcombine.high %v1609, %v1641
          %v1667 = vcombine.low %v1616, %v1648
          %v1668 = vcombine.high %v1616, %v1648
          %v1669 = vcombine.low %v1625, %v1657
          %v1670 = vcombine.high %v1625, %v1657
          %v1671 = vcombine.low %v1632, %v1664
          %v1672 = vcombine.high %v1632, %v1664
          %vm1673 = vcmask 130048
          %1674 = vst.msk [vmem:[#allocation2] sm:$0xff] %vm1673, %v1257
          %1675 = vst.msk [vmem:[#allocation2 + $0x8] sm:$0xff] %vm1673, %v1393
          %1676 = vst.msk [vmem:[#allocation2 + $0x10] sm:$0xff] %vm1673, %v1529
          %1677 = vst.msk [vmem:[#allocation2 + $0x18] sm:$0xff] %vm1673, %v1665
          %1678 = vst.msk [vmem:[#allocation2 + $0x20] sm:$0xff] %vm1673, %v1258
          %1679 = vst.msk [vmem:[#allocation2 + $0x28] sm:$0xff] %vm1673, %v1394
          %1680 = vst.msk [vmem:[#allocation2 + $0x30] sm:$0xff] %vm1673, %v1530
          %1681 = vst.msk [vmem:[#allocation2 + $0x38] sm:$0xff] %vm1673, %v1666
          %1682 = vst.msk [vmem:[#allocation2 + $0x40] sm:$0xff] %vm1673, %v1259
          %1683 = vst.msk [vmem:[#allocation2 + $0x48] sm:$0xff] %vm1673, %v1395
          %1684 = vst.msk [vmem:[#allocation2 + $0x50] sm:$0xff] %vm1673, %v1531
          %1685 = vst.msk [vmem:[#allocation2 + $0x58] sm:$0xff] %vm1673, %v1667
          %1686 = vst.msk [vmem:[#allocation2 + $0x60] sm:$0xff] %vm1673, %v1260
          %1687 = vst.msk [vmem:[#allocation2 + $0x68] sm:$0xff] %vm1673, %v1396
          %1688 = vst.msk [vmem:[#allocation2 + $0x70] sm:$0xff] %vm1673, %v1532
          %1689 = vst.msk [vmem:[#allocation2 + $0x78] sm:$0xff] %vm1673, %v1668
          %1690 = vst.msk [vmem:[#allocation2 + $0x80] sm:$0xff] %vm1673, %v1261
          %1691 = vst.msk [vmem:[#allocation2 + $0x88] sm:$0xff] %vm1673, %v1397
          %1692 = vst.msk [vmem:[#allocation2 + $0x90] sm:$0xff] %vm1673, %v1533
          %1693 = vst.msk [vmem:[#allocation2 + $0x98] sm:$0xff] %vm1673, %v1669
          %1694 = vst.msk [vmem:[#allocation2 + $0xa0] sm:$0xff] %vm1673, %v1262
          %1695 = vst.msk [vmem:[#allocation2 + $0xa8] sm:$0xff] %vm1673, %v1398
          %1696 = vst.msk [vmem:[#allocation2 + $0xb0] sm:$0xff] %vm1673, %v1534
          %1697 = vst.msk [vmem:[#allocation2 + $0xb8] sm:$0xff] %vm1673, %v1670
          %1698 = vst.msk [vmem:[#allocation2 + $0xc0] sm:$0xff] %vm1673, %v1263
          %1699 = vst.msk [vmem:[#allocation2 + $0xc8] sm:$0xff] %vm1673, %v1399
          %1700 = vst.msk [vmem:[#allocation2 + $0xd0] sm:$0xff] %vm1673, %v1535
          %1701 = vst.msk [vmem:[#allocation2 + $0xd8] sm:$0xff] %vm1673, %v1671
          %1702 = vst.msk [vmem:[#allocation2 + $0xe0] sm:$0xff] %vm1673, %v1264
          %1703 = vst.msk [vmem:[#allocation2 + $0xe8] sm:$0xff] %vm1673, %v1400
          %1704 = vst.msk [vmem:[#allocation2 + $0xf0] sm:$0xff] %vm1673, %v1536
          %1705 = vst.msk [vmem:[#allocation2 + $0xf8] sm:$0xff] %vm1673, %v1672
          %1710 = vrot.lane.b32.xlu0 %v477, 112
          %v1711 = vpop.permute.xlu0 %1710
          %1712 = vrot.lane.b32.xlu0 %v483, 112
          %v1713 = vpop.permute.xlu0 %1712
          %1714 = vrot.lane.b32.xlu0 %v489, 112
          %v1715 = vpop.permute.xlu0 %1714
          %1716 = vrot.lane.b32.xlu0 %v495, 112
          %v1717 = vpop.permute.xlu0 %1716
          %1722 = vrot.lane.b32.xlu0 %v477, 96
          %v1723 = vpop.permute.xlu0 %1722
          %1724 = vrot.lane.b32.xlu0 %v483, 96
          %v1725 = vpop.permute.xlu0 %1724
          %1726 = vrot.lane.b32.xlu0 %v489, 96
          %v1727 = vpop.permute.xlu0 %1726
          %1728 = vrot.lane.b32.xlu0 %v495, 96
          %v1729 = vpop.permute.xlu0 %1728
          %1734 = vrot.lane.b32.xlu0 %v477, 80
          %v1735 = vpop.permute.xlu0 %1734
          %1736 = vrot.lane.b32.xlu0 %v483, 80
          %v1737 = vpop.permute.xlu0 %1736
          %1738 = vrot.lane.b32.xlu0 %v489, 80
          %v1739 = vpop.permute.xlu0 %1738
          %1740 = vrot.lane.b32.xlu0 %v495, 80
          %v1741 = vpop.permute.xlu0 %1740
          %1746 = vrot.lane.b32.xlu0 %v477, 64
          %v1747 = vpop.permute.xlu0 %1746
          %1748 = vrot.lane.b32.xlu0 %v483, 64
          %v1749 = vpop.permute.xlu0 %1748
          %1750 = vrot.lane.b32.xlu0 %v489, 64
          %v1751 = vpop.permute.xlu0 %1750
          %1752 = vrot.lane.b32.xlu0 %v495, 64
          %v1753 = vpop.permute.xlu0 %1752
          %1758 = vrot.lane.b32.xlu0 %v477, 48
          %v1759 = vpop.permute.xlu0 %1758
          %1760 = vrot.lane.b32.xlu0 %v483, 48
          %v1761 = vpop.permute.xlu0 %1760
          %1762 = vrot.lane.b32.xlu0 %v489, 48
          %v1763 = vpop.permute.xlu0 %1762
          %1764 = vrot.lane.b32.xlu0 %v495, 48
          %v1765 = vpop.permute.xlu0 %1764
          %1770 = vrot.lane.b32.xlu0 %v477, 32
          %v1771 = vpop.permute.xlu0 %1770
          %1772 = vrot.lane.b32.xlu0 %v483, 32
          %v1773 = vpop.permute.xlu0 %1772
          %1774 = vrot.lane.b32.xlu0 %v489, 32
          %v1775 = vpop.permute.xlu0 %1774
          %1776 = vrot.lane.b32.xlu0 %v495, 32
          %v1777 = vpop.permute.xlu0 %1776
          %1782 = vrot.lane.b32.xlu0 %v477, 16
          %v1783 = vpop.permute.xlu0 %1782
          %1784 = vrot.lane.b32.xlu0 %v483, 16
          %v1785 = vpop.permute.xlu0 %1784
          %1786 = vrot.lane.b32.xlu0 %v489, 16
          %v1787 = vpop.permute.xlu0 %1786
          %1788 = vrot.lane.b32.xlu0 %v495, 16
          %v1789 = vpop.permute.xlu0 %1788
          %v1794 = vcombine.low %v477, %v1723
          %v1795 = vcombine.high %v477, %v1723
          %v1797 = vunpack.c.l.s4 1983009808
          %v1798 = vunpack.c.0.s8 %v1797
          %v1799 = vlaneseq
          %v1800 = vshrl.u32 %v1799, 7
          %v1801 = vsub.s32 %v1798, %v1800
          %v1802 = vrot.slane %v1794, %v1801
          %v1804 = vunpack.c.l.s4 1983009808
          %v1805 = vunpack.c.0.s8 %v1804
          %v1806 = vlaneseq
          %v1807 = vshrl.u32 %v1806, 7
          %v1808 = vsub.s32 %v1805, %v1807
          %v1809 = vrot.slane %v1795, %v1808
          %v1810 = vcombine.low %v1711, %v1735
          %v1811 = vcombine.high %v1711, %v1735
          %v1813 = vunpack.c.l.s4 1983009808
          %v1814 = vunpack.c.0.s8 %v1813
          %v1815 = vlaneseq
          %v1816 = vshrl.u32 %v1815, 7
          %v1817 = vsub.s32 %v1814, %v1816
          %v1818 = vrot.slane %v1810, %v1817
          %v1820 = vunpack.c.l.s4 1983009808
          %v1821 = vunpack.c.0.s8 %v1820
          %v1822 = vlaneseq
          %v1823 = vshrl.u32 %v1822, 7
          %v1824 = vsub.s32 %v1821, %v1823
          %v1825 = vrot.slane %v1811, %v1824
          %v1826 = vcombine.low %v1747, %v1771
          %v1827 = vcombine.high %v1747, %v1771
          %v1829 = vunpack.c.l.s4 1983009808
          %v1830 = vunpack.c.0.s8 %v1829
          %v1831 = vlaneseq
          %v1832 = vshrl.u32 %v1831, 7
          %v1833 = vsub.s32 %v1830, %v1832
          %v1834 = vrot.slane %v1826, %v1833
          %v1836 = vunpack.c.l.s4 1983009808
          %v1837 = vunpack.c.0.s8 %v1836
          %v1838 = vlaneseq
          %v1839 = vshrl.u32 %v1838, 7
          %v1840 = vsub.s32 %v1837, %v1839
          %v1841 = vrot.slane %v1827, %v1840
          %v1842 = vcombine.low %v1759, %v1783
          %v1843 = vcombine.high %v1759, %v1783
          %v1845 = vunpack.c.l.s4 1983009808
          %v1846 = vunpack.c.0.s8 %v1845
          %v1847 = vlaneseq
          %v1848 = vshrl.u32 %v1847, 7
          %v1849 = vsub.s32 %v1846, %v1848
          %v1850 = vrot.slane %v1842, %v1849
          %v1852 = vunpack.c.l.s4 1983009808
          %v1853 = vunpack.c.0.s8 %v1852
          %v1854 = vlaneseq
          %v1855 = vshrl.u32 %v1854, 7
          %v1856 = vsub.s32 %v1853, %v1855
          %v1857 = vrot.slane %v1843, %v1856
          %v1858 = vcombine.low %v1802, %v1818
          %v1859 = vcombine.high %v1802, %v1818
          %v1861 = vunpack.c.l.s4 1934713408
          %v1862 = vunpack.c.0.s8 %v1861
          %v1863 = vlaneseq
          %v1864 = vshrl.u32 %v1863, 7
          %v1865 = vsub.s32 %v1862, %v1864
          %v1866 = vrot.slane %v1858, %v1865
          %v1868 = vunpack.c.l.s4 1934713408
          %v1869 = vunpack.c.0.s8 %v1868
          %v1870 = vlaneseq
          %v1871 = vshrl.u32 %v1870, 7
          %v1872 = vsub.s32 %v1869, %v1871
          %v1873 = vrot.slane %v1859, %v1872
          %v1874 = vcombine.low %v1809, %v1825
          %v1875 = vcombine.high %v1809, %v1825
          %v1877 = vunpack.c.l.s4 1934713408
          %v1878 = vunpack.c.0.s8 %v1877
          %v1879 = vlaneseq
          %v1880 = vshrl.u32 %v1879, 7
          %v1881 = vsub.s32 %v1878, %v1880
          %v1882 = vrot.slane %v1874, %v1881
          %v1884 = vunpack.c.l.s4 1934713408
          %v1885 = vunpack.c.0.s8 %v1884
          %v1886 = vlaneseq
          %v1887 = vshrl.u32 %v1886, 7
          %v1888 = vsub.s32 %v1885, %v1887
          %v1889 = vrot.slane %v1875, %v1888
          %v1890 = vcombine.low %v1834, %v1850
          %v1891 = vcombine.high %v1834, %v1850
          %v1893 = vunpack.c.l.s4 1934713408
          %v1894 = vunpack.c.0.s8 %v1893
          %v1895 = vlaneseq
          %v1896 = vshrl.u32 %v1895, 7
          %v1897 = vsub.s32 %v1894, %v1896
          %v1898 = vrot.slane %v1890, %v1897
          %v1900 = vunpack.c.l.s4 1934713408
          %v1901 = vunpack.c.0.s8 %v1900
          %v1902 = vlaneseq
          %v1903 = vshrl.u32 %v1902, 7
          %v1904 = vsub.s32 %v1901, %v1903
          %v1905 = vrot.slane %v1891, %v1904
          %v1906 = vcombine.low %v1841, %v1857
          %v1907 = vcombine.high %v1841, %v1857
          %v1909 = vunpack.c.l.s4 1934713408
          %v1910 = vunpack.c.0.s8 %v1909
          %v1911 = vlaneseq
          %v1912 = vshrl.u32 %v1911, 7
          %v1913 = vsub.s32 %v1910, %v1912
          %v1914 = vrot.slane %v1906, %v1913
          %v1916 = vunpack.c.l.s4 1934713408
          %v1917 = vunpack.c.0.s8 %v1916
          %v1918 = vlaneseq
          %v1919 = vshrl.u32 %v1918, 7
          %v1920 = vsub.s32 %v1917, %v1919
          %v1921 = vrot.slane %v1907, %v1920
          %v1922 = vcombine.low %v1866, %v1898
          %v1923 = vcombine.high %v1866, %v1898
          %v1924 = vcombine.low %v1873, %v1905
          %v1925 = vcombine.high %v1873, %v1905
          %v1926 = vcombine.low %v1882, %v1914
          %v1927 = vcombine.high %v1882, %v1914
          %v1928 = vcombine.low %v1889, %v1921
          %v1929 = vcombine.high %v1889, %v1921
          %v1930 = vcombine.low %v483, %v1725
          %v1931 = vcombine.high %v483, %v1725
          %v1933 = vunpack.c.l.s4 1983009808
          %v1934 = vunpack.c.0.s8 %v1933
          %v1935 = vlaneseq
          %v1936 = vshrl.u32 %v1935, 7
          %v1937 = vsub.s32 %v1934, %v1936
          %v1938 = vrot.slane %v1930, %v1937
          %v1940 = vunpack.c.l.s4 1983009808
          %v1941 = vunpack.c.0.s8 %v1940
          %v1942 = vlaneseq
          %v1943 = vshrl.u32 %v1942, 7
          %v1944 = vsub.s32 %v1941, %v1943
          %v1945 = vrot.slane %v1931, %v1944
          %v1946 = vcombine.low %v1713, %v1737
          %v1947 = vcombine.high %v1713, %v1737
          %v1949 = vunpack.c.l.s4 1983009808
          %v1950 = vunpack.c.0.s8 %v1949
          %v1951 = vlaneseq
          %v1952 = vshrl.u32 %v1951, 7
          %v1953 = vsub.s32 %v1950, %v1952
          %v1954 = vrot.slane %v1946, %v1953
          %v1956 = vunpack.c.l.s4 1983009808
          %v1957 = vunpack.c.0.s8 %v1956
          %v1958 = vlaneseq
          %v1959 = vshrl.u32 %v1958, 7
          %v1960 = vsub.s32 %v1957, %v1959
          %v1961 = vrot.slane %v1947, %v1960
          %v1962 = vcombine.low %v1749, %v1773
          %v1963 = vcombine.high %v1749, %v1773
          %v1965 = vunpack.c.l.s4 1983009808
          %v1966 = vunpack.c.0.s8 %v1965
          %v1967 = vlaneseq
          %v1968 = vshrl.u32 %v1967, 7
          %v1969 = vsub.s32 %v1966, %v1968
          %v1970 = vrot.slane %v1962, %v1969
          %v1972 = vunpack.c.l.s4 1983009808
          %v1973 = vunpack.c.0.s8 %v1972
          %v1974 = vlaneseq
          %v1975 = vshrl.u32 %v1974, 7
          %v1976 = vsub.s32 %v1973, %v1975
          %v1977 = vrot.slane %v1963, %v1976
          %v1978 = vcombine.low %v1761, %v1785
          %v1979 = vcombine.high %v1761, %v1785
          %v1981 = vunpack.c.l.s4 1983009808
          %v1982 = vunpack.c.0.s8 %v1981
          %v1983 = vlaneseq
          %v1984 = vshrl.u32 %v1983, 7
          %v1985 = vsub.s32 %v1982, %v1984
          %v1986 = vrot.slane %v1978, %v1985
          %v1988 = vunpack.c.l.s4 1983009808
          %v1989 = vunpack.c.0.s8 %v1988
          %v1990 = vlaneseq
          %v1991 = vshrl.u32 %v1990, 7
          %v1992 = vsub.s32 %v1989, %v1991
          %v1993 = vrot.slane %v1979, %v1992
          %v1994 = vcombine.low %v1938, %v1954
          %v1995 = vcombine.high %v1938, %v1954
          %v1997 = vunpack.c.l.s4 1934713408
          %v1998 = vunpack.c.0.s8 %v1997
          %v1999 = vlaneseq
          %v2000 = vshrl.u32 %v1999, 7
          %v2001 = vsub.s32 %v1998, %v2000
          %v2002 = vrot.slane %v1994, %v2001
          %v2004 = vunpack.c.l.s4 1934713408
          %v2005 = vunpack.c.0.s8 %v2004
          %v2006 = vlaneseq
          %v2007 = vshrl.u32 %v2006, 7
          %v2008 = vsub.s32 %v2005, %v2007
          %v2009 = vrot.slane %v1995, %v2008
          %v2010 = vcombine.low %v1945, %v1961
          %v2011 = vcombine.high %v1945, %v1961
          %v2013 = vunpack.c.l.s4 1934713408
          %v2014 = vunpack.c.0.s8 %v2013
          %v2015 = vlaneseq
          %v2016 = vshrl.u32 %v2015, 7
          %v2017 = vsub.s32 %v2014, %v2016
          %v2018 = vrot.slane %v2010, %v2017
          %v2020 = vunpack.c.l.s4 1934713408
          %v2021 = vunpack.c.0.s8 %v2020
          %v2022 = vlaneseq
          %v2023 = vshrl.u32 %v2022, 7
          %v2024 = vsub.s32 %v2021, %v2023
          %v2025 = vrot.slane %v2011, %v2024
          %v2026 = vcombine.low %v1970, %v1986
          %v2027 = vcombine.high %v1970, %v1986
          %v2029 = vunpack.c.l.s4 1934713408
          %v2030 = vunpack.c.0.s8 %v2029
          %v2031 = vlaneseq
          %v2032 = vshrl.u32 %v2031, 7
          %v2033 = vsub.s32 %v2030, %v2032
          %v2034 = vrot.slane %v2026, %v2033
          %v2036 = vunpack.c.l.s4 1934713408
          %v2037 = vunpack.c.0.s8 %v2036
          %v2038 = vlaneseq
          %v2039 = vshrl.u32 %v2038, 7
          %v2040 = vsub.s32 %v2037, %v2039
          %v2041 = vrot.slane %v2027, %v2040
          %v2042 = vcombine.low %v1977, %v1993
          %v2043 = vcombine.high %v1977, %v1993
          %v2045 = vunpack.c.l.s4 1934713408
          %v2046 = vunpack.c.0.s8 %v2045
          %v2047 = vlaneseq
          %v2048 = vshrl.u32 %v2047, 7
          %v2049 = vsub.s32 %v2046, %v2048
          %v2050 = vrot.slane %v2042, %v2049
          %v2052 = vunpack.c.l.s4 1934713408
          %v2053 = vunpack.c.0.s8 %v2052
          %v2054 = vlaneseq
          %v2055 = vshrl.u32 %v2054, 7
          %v2056 = vsub.s32 %v2053, %v2055
          %v2057 = vrot.slane %v2043, %v2056
          %v2058 = vcombine.low %v2002, %v2034
          %v2059 = vcombine.high %v2002, %v2034
          %v2060 = vcombine.low %v2009, %v2041
          %v2061 = vcombine.high %v2009, %v2041
          %v2062 = vcombine.low %v2018, %v2050
          %v2063 = vcombine.high %v2018, %v2050
          %v2064 = vcombine.low %v2025, %v2057
          %v2065 = vcombine.high %v2025, %v2057
          %v2066 = vcombine.low %v489, %v1727
          %v2067 = vcombine.high %v489, %v1727
          %v2069 = vunpack.c.l.s4 1983009808
          %v2070 = vunpack.c.0.s8 %v2069
          %v2071 = vlaneseq
          %v2072 = vshrl.u32 %v2071, 7
          %v2073 = vsub.s32 %v2070, %v2072
          %v2074 = vrot.slane %v2066, %v2073
          %v2076 = vunpack.c.l.s4 1983009808
          %v2077 = vunpack.c.0.s8 %v2076
          %v2078 = vlaneseq
          %v2079 = vshrl.u32 %v2078, 7
          %v2080 = vsub.s32 %v2077, %v2079
          %v2081 = vrot.slane %v2067, %v2080
          %v2082 = vcombine.low %v1715, %v1739
          %v2083 = vcombine.high %v1715, %v1739
          %v2085 = vunpack.c.l.s4 1983009808
          %v2086 = vunpack.c.0.s8 %v2085
          %v2087 = vlaneseq
          %v2088 = vshrl.u32 %v2087, 7
          %v2089 = vsub.s32 %v2086, %v2088
          %v2090 = vrot.slane %v2082, %v2089
          %v2092 = vunpack.c.l.s4 1983009808
          %v2093 = vunpack.c.0.s8 %v2092
          %v2094 = vlaneseq
          %v2095 = vshrl.u32 %v2094, 7
          %v2096 = vsub.s32 %v2093, %v2095
          %v2097 = vrot.slane %v2083, %v2096
          %v2098 = vcombine.low %v1751, %v1775
          %v2099 = vcombine.high %v1751, %v1775
          %v2101 = vunpack.c.l.s4 1983009808
          %v2102 = vunpack.c.0.s8 %v2101
          %v2103 = vlaneseq
          %v2104 = vshrl.u32 %v2103, 7
          %v2105 = vsub.s32 %v2102, %v2104
          %v2106 = vrot.slane %v2098, %v2105
          %v2108 = vunpack.c.l.s4 1983009808
          %v2109 = vunpack.c.0.s8 %v2108
          %v2110 = vlaneseq
          %v2111 = vshrl.u32 %v2110, 7
          %v2112 = vsub.s32 %v2109, %v2111
          %v2113 = vrot.slane %v2099, %v2112
          %v2114 = vcombine.low %v1763, %v1787
          %v2115 = vcombine.high %v1763, %v1787
          %v2117 = vunpack.c.l.s4 1983009808
          %v2118 = vunpack.c.0.s8 %v2117
          %v2119 = vlaneseq
          %v2120 = vshrl.u32 %v2119, 7
          %v2121 = vsub.s32 %v2118, %v2120
          %v2122 = vrot.slane %v2114, %v2121
          %v2124 = vunpack.c.l.s4 1983009808
          %v2125 = vunpack.c.0.s8 %v2124
          %v2126 = vlaneseq
          %v2127 = vshrl.u32 %v2126, 7
          %v2128 = vsub.s32 %v2125, %v2127
          %v2129 = vrot.slane %v2115, %v2128
          %v2130 = vcombine.low %v2074, %v2090
          %v2131 = vcombine.high %v2074, %v2090
          %v2133 = vunpack.c.l.s4 1934713408
          %v2134 = vunpack.c.0.s8 %v2133
          %v2135 = vlaneseq
          %v2136 = vshrl.u32 %v2135, 7
          %v2137 = vsub.s32 %v2134, %v2136
          %v2138 = vrot.slane %v2130, %v2137
          %v2140 = vunpack.c.l.s4 1934713408
          %v2141 = vunpack.c.0.s8 %v2140
          %v2142 = vlaneseq
          %v2143 = vshrl.u32 %v2142, 7
          %v2144 = vsub.s32 %v2141, %v2143
          %v2145 = vrot.slane %v2131, %v2144
          %v2146 = vcombine.low %v2081, %v2097
          %v2147 = vcombine.high %v2081, %v2097
          %v2149 = vunpack.c.l.s4 1934713408
          %v2150 = vunpack.c.0.s8 %v2149
          %v2151 = vlaneseq
          %v2152 = vshrl.u32 %v2151, 7
          %v2153 = vsub.s32 %v2150, %v2152
          %v2154 = vrot.slane %v2146, %v2153
          %v2156 = vunpack.c.l.s4 1934713408
          %v2157 = vunpack.c.0.s8 %v2156
          %v2158 = vlaneseq
          %v2159 = vshrl.u32 %v2158, 7
          %v2160 = vsub.s32 %v2157, %v2159
          %v2161 = vrot.slane %v2147, %v2160
          %v2162 = vcombine.low %v2106, %v2122
          %v2163 = vcombine.high %v2106, %v2122
          %v2165 = vunpack.c.l.s4 1934713408
          %v2166 = vunpack.c.0.s8 %v2165
          %v2167 = vlaneseq
          %v2168 = vshrl.u32 %v2167, 7
          %v2169 = vsub.s32 %v2166, %v2168
          %v2170 = vrot.slane %v2162, %v2169
          %v2172 = vunpack.c.l.s4 1934713408
          %v2173 = vunpack.c.0.s8 %v2172
          %v2174 = vlaneseq
          %v2175 = vshrl.u32 %v2174, 7
          %v2176 = vsub.s32 %v2173, %v2175
          %v2177 = vrot.slane %v2163, %v2176
          %v2178 = vcombine.low %v2113, %v2129
          %v2179 = vcombine.high %v2113, %v2129
          %v2181 = vunpack.c.l.s4 1934713408
          %v2182 = vunpack.c.0.s8 %v2181
          %v2183 = vlaneseq
          %v2184 = vshrl.u32 %v2183, 7
          %v2185 = vsub.s32 %v2182, %v2184
          %v2186 = vrot.slane %v2178, %v2185
          %v2188 = vunpack.c.l.s4 1934713408
          %v2189 = vunpack.c.0.s8 %v2188
          %v2190 = vlaneseq
          %v2191 = vshrl.u32 %v2190, 7
          %v2192 = vsub.s32 %v2189, %v2191
          %v2193 = vrot.slane %v2179, %v2192
          %v2194 = vcombine.low %v2138, %v2170
          %v2195 = vcombine.high %v2138, %v2170
          %v2196 = vcombine.low %v2145, %v2177
          %v2197 = vcombine.high %v2145, %v2177
          %v2198 = vcombine.low %v2154, %v2186
          %v2199 = vcombine.high %v2154, %v2186
          %v2200 = vcombine.low %v2161, %v2193
          %v2201 = vcombine.high %v2161, %v2193
          %v2202 = vcombine.low %v495, %v1729
          %v2203 = vcombine.high %v495, %v1729
          %v2205 = vunpack.c.l.s4 1983009808
          %v2206 = vunpack.c.0.s8 %v2205
          %v2207 = vlaneseq
          %v2208 = vshrl.u32 %v2207, 7
          %v2209 = vsub.s32 %v2206, %v2208
          %v2210 = vrot.slane %v2202, %v2209
          %v2212 = vunpack.c.l.s4 1983009808
          %v2213 = vunpack.c.0.s8 %v2212
          %v2214 = vlaneseq
          %v2215 = vshrl.u32 %v2214, 7
          %v2216 = vsub.s32 %v2213, %v2215
          %v2217 = vrot.slane %v2203, %v2216
          %v2218 = vcombine.low %v1717, %v1741
          %v2219 = vcombine.high %v1717, %v1741
          %v2221 = vunpack.c.l.s4 1983009808
          %v2222 = vunpack.c.0.s8 %v2221
          %v2223 = vlaneseq
          %v2224 = vshrl.u32 %v2223, 7
          %v2225 = vsub.s32 %v2222, %v2224
          %v2226 = vrot.slane %v2218, %v2225
          %v2228 = vunpack.c.l.s4 1983009808
          %v2229 = vunpack.c.0.s8 %v2228
          %v2230 = vlaneseq
          %v2231 = vshrl.u32 %v2230, 7
          %v2232 = vsub.s32 %v2229, %v2231
          %v2233 = vrot.slane %v2219, %v2232
          %v2234 = vcombine.low %v1753, %v1777
          %v2235 = vcombine.high %v1753, %v1777
          %v2237 = vunpack.c.l.s4 1983009808
          %v2238 = vunpack.c.0.s8 %v2237
          %v2239 = vlaneseq
          %v2240 = vshrl.u32 %v2239, 7
          %v2241 = vsub.s32 %v2238, %v2240
          %v2242 = vrot.slane %v2234, %v2241
          %v2244 = vunpack.c.l.s4 1983009808
          %v2245 = vunpack.c.0.s8 %v2244
          %v2246 = vlaneseq
          %v2247 = vshrl.u32 %v2246, 7
          %v2248 = vsub.s32 %v2245, %v2247
          %v2249 = vrot.slane %v2235, %v2248
          %v2250 = vcombine.low %v1765, %v1789
          %v2251 = vcombine.high %v1765, %v1789
          %v2253 = vunpack.c.l.s4 1983009808
          %v2254 = vunpack.c.0.s8 %v2253
          %v2255 = vlaneseq
          %v2256 = vshrl.u32 %v2255, 7
          %v2257 = vsub.s32 %v2254, %v2256
          %v2258 = vrot.slane %v2250, %v2257
          %v2260 = vunpack.c.l.s4 1983009808
          %v2261 = vunpack.c.0.s8 %v2260
          %v2262 = vlaneseq
          %v2263 = vshrl.u32 %v2262, 7
          %v2264 = vsub.s32 %v2261, %v2263
          %v2265 = vrot.slane %v2251, %v2264
          %v2266 = vcombine.low %v2210, %v2226
          %v2267 = vcombine.high %v2210, %v2226
          %v2269 = vunpack.c.l.s4 1934713408
          %v2270 = vunpack.c.0.s8 %v2269
          %v2271 = vlaneseq
          %v2272 = vshrl.u32 %v2271, 7
          %v2273 = vsub.s32 %v2270, %v2272
          %v2274 = vrot.slane %v2266, %v2273
          %v2276 = vunpack.c.l.s4 1934713408
          %v2277 = vunpack.c.0.s8 %v2276
          %v2278 = vlaneseq
          %v2279 = vshrl.u32 %v2278, 7
          %v2280 = vsub.s32 %v2277, %v2279
          %v2281 = vrot.slane %v2267, %v2280
          %v2282 = vcombine.low %v2217, %v2233
          %v2283 = vcombine.high %v2217, %v2233
          %v2285 = vunpack.c.l.s4 1934713408
          %v2286 = vunpack.c.0.s8 %v2285
          %v2287 = vlaneseq
          %v2288 = vshrl.u32 %v2287, 7
          %v2289 = vsub.s32 %v2286, %v2288
          %v2290 = vrot.slane %v2282, %v2289
          %v2292 = vunpack.c.l.s4 1934713408
          %v2293 = vunpack.c.0.s8 %v2292
          %v2294 = vlaneseq
          %v2295 = vshrl.u32 %v2294, 7
          %v2296 = vsub.s32 %v2293, %v2295
          %v2297 = vrot.slane %v2283, %v2296
          %v2298 = vcombine.low %v2242, %v2258
          %v2299 = vcombine.high %v2242, %v2258
          %v2301 = vunpack.c.l.s4 1934713408
          %v2302 = vunpack.c.0.s8 %v2301
          %v2303 = vlaneseq
          %v2304 = vshrl.u32 %v2303, 7
          %v2305 = vsub.s32 %v2302, %v2304
          %v2306 = vrot.slane %v2298, %v2305
          %v2308 = vunpack.c.l.s4 1934713408
          %v2309 = vunpack.c.0.s8 %v2308
          %v2310 = vlaneseq
          %v2311 = vshrl.u32 %v2310, 7
          %v2312 = vsub.s32 %v2309, %v2311
          %v2313 = vrot.slane %v2299, %v2312
          %v2314 = vcombine.low %v2249, %v2265
          %v2315 = vcombine.high %v2249, %v2265
          %v2317 = vunpack.c.l.s4 1934713408
          %v2318 = vunpack.c.0.s8 %v2317
          %v2319 = vlaneseq
          %v2320 = vshrl.u32 %v2319, 7
          %v2321 = vsub.s32 %v2318, %v2320
          %v2322 = vrot.slane %v2314, %v2321
          %v2324 = vunpack.c.l.s4 1934713408
          %v2325 = vunpack.c.0.s8 %v2324
          %v2326 = vlaneseq
          %v2327 = vshrl.u32 %v2326, 7
          %v2328 = vsub.s32 %v2325, %v2327
          %v2329 = vrot.slane %v2315, %v2328
          %v2330 = vcombine.low %v2274, %v2306
          %v2331 = vcombine.high %v2274, %v2306
          %v2332 = vcombine.low %v2281, %v2313
          %v2333 = vcombine.high %v2281, %v2313
          %v2334 = vcombine.low %v2290, %v2322
          %v2335 = vcombine.high %v2290, %v2322
          %v2336 = vcombine.low %v2297, %v2329
          %v2337 = vcombine.high %v2297, %v2329
          %v2338 = vcombine.low %v1922, %v1924
          %v2339 = vcombine.high %v1922, %v1924
          %v2341 = vunpack.c.l.s4 1983009808
          %v2342 = vunpack.c.0.s8 %v2341
          %v2343 = vlaneseq
          %v2344 = vshrl.u32 %v2343, 7
          %v2345 = vsub.s32 %v2342, %v2344
          %v2346 = vrot.slane %v2338, %v2345
          %v2348 = vunpack.c.l.s4 1983009808
          %v2349 = vunpack.c.0.s8 %v2348
          %v2350 = vlaneseq
          %v2351 = vshrl.u32 %v2350, 7
          %v2352 = vsub.s32 %v2349, %v2351
          %v2353 = vrot.slane %v2339, %v2352
          %v2354 = vcombine.low %v1923, %v1925
          %v2355 = vcombine.high %v1923, %v1925
          %v2357 = vunpack.c.l.s4 1983009808
          %v2358 = vunpack.c.0.s8 %v2357
          %v2359 = vlaneseq
          %v2360 = vshrl.u32 %v2359, 7
          %v2361 = vsub.s32 %v2358, %v2360
          %v2362 = vrot.slane %v2354, %v2361
          %v2364 = vunpack.c.l.s4 1983009808
          %v2365 = vunpack.c.0.s8 %v2364
          %v2366 = vlaneseq
          %v2367 = vshrl.u32 %v2366, 7
          %v2368 = vsub.s32 %v2365, %v2367
          %v2369 = vrot.slane %v2355, %v2368
          %v2370 = vcombine.low %v1926, %v1928
          %v2371 = vcombine.high %v1926, %v1928
          %v2373 = vunpack.c.l.s4 1983009808
          %v2374 = vunpack.c.0.s8 %v2373
          %v2375 = vlaneseq
          %v2376 = vshrl.u32 %v2375, 7
          %v2377 = vsub.s32 %v2374, %v2376
          %v2378 = vrot.slane %v2370, %v2377
          %v2380 = vunpack.c.l.s4 1983009808
          %v2381 = vunpack.c.0.s8 %v2380
          %v2382 = vlaneseq
          %v2383 = vshrl.u32 %v2382, 7
          %v2384 = vsub.s32 %v2381, %v2383
          %v2385 = vrot.slane %v2371, %v2384
          %v2386 = vcombine.low %v1927, %v1929
          %v2387 = vcombine.high %v1927, %v1929
          %v2389 = vunpack.c.l.s4 1983009808
          %v2390 = vunpack.c.0.s8 %v2389
          %v2391 = vlaneseq
          %v2392 = vshrl.u32 %v2391, 7
          %v2393 = vsub.s32 %v2390, %v2392
          %v2394 = vrot.slane %v2386, %v2393
          %v2396 = vunpack.c.l.s4 1983009808
          %v2397 = vunpack.c.0.s8 %v2396
          %v2398 = vlaneseq
          %v2399 = vshrl.u32 %v2398, 7
          %v2400 = vsub.s32 %v2397, %v2399
          %v2401 = vrot.slane %v2387, %v2400
          %v2402 = vcombine.low %v2346, %v2362
          %v2403 = vcombine.high %v2346, %v2362
          %v2405 = vunpack.c.l.s4 1934713408
          %v2406 = vunpack.c.0.s8 %v2405
          %v2407 = vlaneseq
          %v2408 = vshrl.u32 %v2407, 7
          %v2409 = vsub.s32 %v2406, %v2408
          %v2410 = vrot.slane %v2402, %v2409
          %v2412 = vunpack.c.l.s4 1934713408
          %v2413 = vunpack.c.0.s8 %v2412
          %v2414 = vlaneseq
          %v2415 = vshrl.u32 %v2414, 7
          %v2416 = vsub.s32 %v2413, %v2415
          %v2417 = vrot.slane %v2403, %v2416
          %v2418 = vcombine.low %v2353, %v2369
          %v2419 = vcombine.high %v2353, %v2369
          %v2421 = vunpack.c.l.s4 1934713408
          %v2422 = vunpack.c.0.s8 %v2421
          %v2423 = vlaneseq
          %v2424 = vshrl.u32 %v2423, 7
          %v2425 = vsub.s32 %v2422, %v2424
          %v2426 = vrot.slane %v2418, %v2425
          %v2428 = vunpack.c.l.s4 1934713408
          %v2429 = vunpack.c.0.s8 %v2428
          %v2430 = vlaneseq
          %v2431 = vshrl.u32 %v2430, 7
          %v2432 = vsub.s32 %v2429, %v2431
          %v2433 = vrot.slane %v2419, %v2432
          %v2434 = vcombine.low %v2378, %v2394
          %v2435 = vcombine.high %v2378, %v2394
          %v2437 = vunpack.c.l.s4 1934713408
          %v2438 = vunpack.c.0.s8 %v2437
          %v2439 = vlaneseq
          %v2440 = vshrl.u32 %v2439, 7
          %v2441 = vsub.s32 %v2438, %v2440
          %v2442 = vrot.slane %v2434, %v2441
          %v2444 = vunpack.c.l.s4 1934713408
          %v2445 = vunpack.c.0.s8 %v2444
          %v2446 = vlaneseq
          %v2447 = vshrl.u32 %v2446, 7
          %v2448 = vsub.s32 %v2445, %v2447
          %v2449 = vrot.slane %v2435, %v2448
          %v2450 = vcombine.low %v2385, %v2401
          %v2451 = vcombine.high %v2385, %v2401
          %v2453 = vunpack.c.l.s4 1934713408
          %v2454 = vunpack.c.0.s8 %v2453
          %v2455 = vlaneseq
          %v2456 = vshrl.u32 %v2455, 7
          %v2457 = vsub.s32 %v2454, %v2456
          %v2458 = vrot.slane %v2450, %v2457
          %v2460 = vunpack.c.l.s4 1934713408
          %v2461 = vunpack.c.0.s8 %v2460
          %v2462 = vlaneseq
          %v2463 = vshrl.u32 %v2462, 7
          %v2464 = vsub.s32 %v2461, %v2463
          %v2465 = vrot.slane %v2451, %v2464
          %v2466 = vcombine.low %v2410, %v2442
          %v2467 = vcombine.high %v2410, %v2442
          %v2468 = vcombine.low %v2417, %v2449
          %v2469 = vcombine.high %v2417, %v2449
          %v2470 = vcombine.low %v2426, %v2458
          %v2471 = vcombine.high %v2426, %v2458
          %v2472 = vcombine.low %v2433, %v2465
          %v2473 = vcombine.high %v2433, %v2465
          %v2474 = vcombine.low %v2058, %v2060
          %v2475 = vcombine.high %v2058, %v2060
          %v2477 = vunpack.c.l.s4 1983009808
          %v2478 = vunpack.c.0.s8 %v2477
          %v2479 = vlaneseq
          %v2480 = vshrl.u32 %v2479, 7
          %v2481 = vsub.s32 %v2478, %v2480
          %v2482 = vrot.slane %v2474, %v2481
          %v2484 = vunpack.c.l.s4 1983009808
          %v2485 = vunpack.c.0.s8 %v2484
          %v2486 = vlaneseq
          %v2487 = vshrl.u32 %v2486, 7
          %v2488 = vsub.s32 %v2485, %v2487
          %v2489 = vrot.slane %v2475, %v2488
          %v2490 = vcombine.low %v2059, %v2061
          %v2491 = vcombine.high %v2059, %v2061
          %v2493 = vunpack.c.l.s4 1983009808
          %v2494 = vunpack.c.0.s8 %v2493
          %v2495 = vlaneseq
          %v2496 = vshrl.u32 %v2495, 7
          %v2497 = vsub.s32 %v2494, %v2496
          %v2498 = vrot.slane %v2490, %v2497
          %v2500 = vunpack.c.l.s4 1983009808
          %v2501 = vunpack.c.0.s8 %v2500
          %v2502 = vlaneseq
          %v2503 = vshrl.u32 %v2502, 7
          %v2504 = vsub.s32 %v2501, %v2503
          %v2505 = vrot.slane %v2491, %v2504
          %v2506 = vcombine.low %v2062, %v2064
          %v2507 = vcombine.high %v2062, %v2064
          %v2509 = vunpack.c.l.s4 1983009808
          %v2510 = vunpack.c.0.s8 %v2509
          %v2511 = vlaneseq
          %v2512 = vshrl.u32 %v2511, 7
          %v2513 = vsub.s32 %v2510, %v2512
          %v2514 = vrot.slane %v2506, %v2513
          %v2516 = vunpack.c.l.s4 1983009808
          %v2517 = vunpack.c.0.s8 %v2516
          %v2518 = vlaneseq
          %v2519 = vshrl.u32 %v2518, 7
          %v2520 = vsub.s32 %v2517, %v2519
          %v2521 = vrot.slane %v2507, %v2520
          %v2522 = vcombine.low %v2063, %v2065
          %v2523 = vcombine.high %v2063, %v2065
          %v2525 = vunpack.c.l.s4 1983009808
          %v2526 = vunpack.c.0.s8 %v2525
          %v2527 = vlaneseq
          %v2528 = vshrl.u32 %v2527, 7
          %v2529 = vsub.s32 %v2526, %v2528
          %v2530 = vrot.slane %v2522, %v2529
          %v2532 = vunpack.c.l.s4 1983009808
          %v2533 = vunpack.c.0.s8 %v2532
          %v2534 = vlaneseq
          %v2535 = vshrl.u32 %v2534, 7
          %v2536 = vsub.s32 %v2533, %v2535
          %v2537 = vrot.slane %v2523, %v2536
          %v2538 = vcombine.low %v2482, %v2498
          %v2539 = vcombine.high %v2482, %v2498
          %v2541 = vunpack.c.l.s4 1934713408
          %v2542 = vunpack.c.0.s8 %v2541
          %v2543 = vlaneseq
          %v2544 = vshrl.u32 %v2543, 7
          %v2545 = vsub.s32 %v2542, %v2544
          %v2546 = vrot.slane %v2538, %v2545
          %v2548 = vunpack.c.l.s4 1934713408
          %v2549 = vunpack.c.0.s8 %v2548
          %v2550 = vlaneseq
          %v2551 = vshrl.u32 %v2550, 7
          %v2552 = vsub.s32 %v2549, %v2551
          %v2553 = vrot.slane %v2539, %v2552
          %v2554 = vcombine.low %v2489, %v2505
          %v2555 = vcombine.high %v2489, %v2505
          %v2557 = vunpack.c.l.s4 1934713408
          %v2558 = vunpack.c.0.s8 %v2557
          %v2559 = vlaneseq
          %v2560 = vshrl.u32 %v2559, 7
          %v2561 = vsub.s32 %v2558, %v2560
          %v2562 = vrot.slane %v2554, %v2561
          %v2564 = vunpack.c.l.s4 1934713408
          %v2565 = vunpack.c.0.s8 %v2564
          %v2566 = vlaneseq
          %v2567 = vshrl.u32 %v2566, 7
          %v2568 = vsub.s32 %v2565, %v2567
          %v2569 = vrot.slane %v2555, %v2568
          %v2570 = vcombine.low %v2514, %v2530
          %v2571 = vcombine.high %v2514, %v2530
          %v2573 = vunpack.c.l.s4 1934713408
          %v2574 = vunpack.c.0.s8 %v2573
          %v2575 = vlaneseq
          %v2576 = vshrl.u32 %v2575, 7
          %v2577 = vsub.s32 %v2574, %v2576
          %v2578 = vrot.slane %v2570, %v2577
          %v2580 = vunpack.c.l.s4 1934713408
          %v2581 = vunpack.c.0.s8 %v2580
          %v2582 = vlaneseq
          %v2583 = vshrl.u32 %v2582, 7
          %v2584 = vsub.s32 %v2581, %v2583
          %v2585 = vrot.slane %v2571, %v2584
          %v2586 = vcombine.low %v2521, %v2537
          %v2587 = vcombine.high %v2521, %v2537
          %v2589 = vunpack.c.l.s4 1934713408
          %v2590 = vunpack.c.0.s8 %v2589
          %v2591 = vlaneseq
          %v2592 = vshrl.u32 %v2591, 7
          %v2593 = vsub.s32 %v2590, %v2592
          %v2594 = vrot.slane %v2586, %v2593
          %v2596 = vunpack.c.l.s4 1934713408
          %v2597 = vunpack.c.0.s8 %v2596
          %v2598 = vlaneseq
          %v2599 = vshrl.u32 %v2598, 7
          %v2600 = vsub.s32 %v2597, %v2599
          %v2601 = vrot.slane %v2587, %v2600
          %v2602 = vcombine.low %v2546, %v2578
          %v2603 = vcombine.high %v2546, %v2578
          %v2604 = vcombine.low %v2553, %v2585
          %v2605 = vcombine.high %v2553, %v2585
          %v2606 = vcombine.low %v2562, %v2594
          %v2607 = vcombine.high %v2562, %v2594
          %v2608 = vcombine.low %v2569, %v2601
          %v2609 = vcombine.high %v2569, %v2601
          %v2610 = vcombine.low %v2194, %v2196
          %v2611 = vcombine.high %v2194, %v2196
          %v2613 = vunpack.c.l.s4 1983009808
          %v2614 = vunpack.c.0.s8 %v2613
          %v2615 = vlaneseq
          %v2616 = vshrl.u32 %v2615, 7
          %v2617 = vsub.s32 %v2614, %v2616
          %v2618 = vrot.slane %v2610, %v2617
          %v2620 = vunpack.c.l.s4 1983009808
          %v2621 = vunpack.c.0.s8 %v2620
          %v2622 = vlaneseq
          %v2623 = vshrl.u32 %v2622, 7
          %v2624 = vsub.s32 %v2621, %v2623
          %v2625 = vrot.slane %v2611, %v2624
          %v2626 = vcombine.low %v2195, %v2197
          %v2627 = vcombine.high %v2195, %v2197
          %v2629 = vunpack.c.l.s4 1983009808
          %v2630 = vunpack.c.0.s8 %v2629
          %v2631 = vlaneseq
          %v2632 = vshrl.u32 %v2631, 7
          %v2633 = vsub.s32 %v2630, %v2632
          %v2634 = vrot.slane %v2626, %v2633
          %v2636 = vunpack.c.l.s4 1983009808
          %v2637 = vunpack.c.0.s8 %v2636
          %v2638 = vlaneseq
          %v2639 = vshrl.u32 %v2638, 7
          %v2640 = vsub.s32 %v2637, %v2639
          %v2641 = vrot.slane %v2627, %v2640
          %v2642 = vcombine.low %v2198, %v2200
          %v2643 = vcombine.high %v2198, %v2200
          %v2645 = vunpack.c.l.s4 1983009808
          %v2646 = vunpack.c.0.s8 %v2645
          %v2647 = vlaneseq
          %v2648 = vshrl.u32 %v2647, 7
          %v2649 = vsub.s32 %v2646, %v2648
          %v2650 = vrot.slane %v2642, %v2649
          %v2652 = vunpack.c.l.s4 1983009808
          %v2653 = vunpack.c.0.s8 %v2652
          %v2654 = vlaneseq
          %v2655 = vshrl.u32 %v2654, 7
          %v2656 = vsub.s32 %v2653, %v2655
          %v2657 = vrot.slane %v2643, %v2656
          %v2658 = vcombine.low %v2199, %v2201
          %v2659 = vcombine.high %v2199, %v2201
          %v2661 = vunpack.c.l.s4 1983009808
          %v2662 = vunpack.c.0.s8 %v2661
          %v2663 = vlaneseq
          %v2664 = vshrl.u32 %v2663, 7
          %v2665 = vsub.s32 %v2662, %v2664
          %v2666 = vrot.slane %v2658, %v2665
          %v2668 = vunpack.c.l.s4 1983009808
          %v2669 = vunpack.c.0.s8 %v2668
          %v2670 = vlaneseq
          %v2671 = vshrl.u32 %v2670, 7
          %v2672 = vsub.s32 %v2669, %v2671
          %v2673 = vrot.slane %v2659, %v2672
          %v2674 = vcombine.low %v2618, %v2634
          %v2675 = vcombine.high %v2618, %v2634
          %v2677 = vunpack.c.l.s4 1934713408
          %v2678 = vunpack.c.0.s8 %v2677
          %v2679 = vlaneseq
          %v2680 = vshrl.u32 %v2679, 7
          %v2681 = vsub.s32 %v2678, %v2680
          %v2682 = vrot.slane %v2674, %v2681
          %v2684 = vunpack.c.l.s4 1934713408
          %v2685 = vunpack.c.0.s8 %v2684
          %v2686 = vlaneseq
          %v2687 = vshrl.u32 %v2686, 7
          %v2688 = vsub.s32 %v2685, %v2687
          %v2689 = vrot.slane %v2675, %v2688
          %v2690 = vcombine.low %v2625, %v2641
          %v2691 = vcombine.high %v2625, %v2641
          %v2693 = vunpack.c.l.s4 1934713408
          %v2694 = vunpack.c.0.s8 %v2693
          %v2695 = vlaneseq
          %v2696 = vshrl.u32 %v2695, 7
          %v2697 = vsub.s32 %v2694, %v2696
          %v2698 = vrot.slane %v2690, %v2697
          %v2700 = vunpack.c.l.s4 1934713408
          %v2701 = vunpack.c.0.s8 %v2700
          %v2702 = vlaneseq
          %v2703 = vshrl.u32 %v2702, 7
          %v2704 = vsub.s32 %v2701, %v2703
          %v2705 = vrot.slane %v2691, %v2704
          %v2706 = vcombine.low %v2650, %v2666
          %v2707 = vcombine.high %v2650, %v2666
          %v2709 = vunpack.c.l.s4 1934713408
          %v2710 = vunpack.c.0.s8 %v2709
          %v2711 = vlaneseq
          %v2712 = vshrl.u32 %v2711, 7
          %v2713 = vsub.s32 %v2710, %v2712
          %v2714 = vrot.slane %v2706, %v2713
          %v2716 = vunpack.c.l.s4 1934713408
          %v2717 = vunpack.c.0.s8 %v2716
          %v2718 = vlaneseq
          %v2719 = vshrl.u32 %v2718, 7
          %v2720 = vsub.s32 %v2717, %v2719
          %v2721 = vrot.slane %v2707, %v2720
          %v2722 = vcombine.low %v2657, %v2673
          %v2723 = vcombine.high %v2657, %v2673
          %v2725 = vunpack.c.l.s4 1934713408
          %v2726 = vunpack.c.0.s8 %v2725
          %v2727 = vlaneseq
          %v2728 = vshrl.u32 %v2727, 7
          %v2729 = vsub.s32 %v2726, %v2728
          %v2730 = vrot.slane %v2722, %v2729
          %v2732 = vunpack.c.l.s4 1934713408
          %v2733 = vunpack.c.0.s8 %v2732
          %v2734 = vlaneseq
          %v2735 = vshrl.u32 %v2734, 7
          %v2736 = vsub.s32 %v2733, %v2735
          %v2737 = vrot.slane %v2723, %v2736
          %v2738 = vcombine.low %v2682, %v2714
          %v2739 = vcombine.high %v2682, %v2714
          %v2740 = vcombine.low %v2689, %v2721
          %v2741 = vcombine.high %v2689, %v2721
          %v2742 = vcombine.low %v2698, %v2730
          %v2743 = vcombine.high %v2698, %v2730
          %v2744 = vcombine.low %v2705, %v2737
          %v2745 = vcombine.high %v2705, %v2737
          %v2746 = vcombine.low %v2330, %v2332
          %v2747 = vcombine.high %v2330, %v2332
          %v2749 = vunpack.c.l.s4 1983009808
          %v2750 = vunpack.c.0.s8 %v2749
          %v2751 = vlaneseq
          %v2752 = vshrl.u32 %v2751, 7
          %v2753 = vsub.s32 %v2750, %v2752
          %v2754 = vrot.slane %v2746, %v2753
          %v2756 = vunpack.c.l.s4 1983009808
          %v2757 = vunpack.c.0.s8 %v2756
          %v2758 = vlaneseq
          %v2759 = vshrl.u32 %v2758, 7
          %v2760 = vsub.s32 %v2757, %v2759
          %v2761 = vrot.slane %v2747, %v2760
          %v2762 = vcombine.low %v2331, %v2333
          %v2763 = vcombine.high %v2331, %v2333
          %v2765 = vunpack.c.l.s4 1983009808
          %v2766 = vunpack.c.0.s8 %v2765
          %v2767 = vlaneseq
          %v2768 = vshrl.u32 %v2767, 7
          %v2769 = vsub.s32 %v2766, %v2768
          %v2770 = vrot.slane %v2762, %v2769
          %v2772 = vunpack.c.l.s4 1983009808
          %v2773 = vunpack.c.0.s8 %v2772
          %v2774 = vlaneseq
          %v2775 = vshrl.u32 %v2774, 7
          %v2776 = vsub.s32 %v2773, %v2775
          %v2777 = vrot.slane %v2763, %v2776
          %v2778 = vcombine.low %v2334, %v2336
          %v2779 = vcombine.high %v2334, %v2336
          %v2781 = vunpack.c.l.s4 1983009808
          %v2782 = vunpack.c.0.s8 %v2781
          %v2783 = vlaneseq
          %v2784 = vshrl.u32 %v2783, 7
          %v2785 = vsub.s32 %v2782, %v2784
          %v2786 = vrot.slane %v2778, %v2785
          %v2788 = vunpack.c.l.s4 1983009808
          %v2789 = vunpack.c.0.s8 %v2788
          %v2790 = vlaneseq
          %v2791 = vshrl.u32 %v2790, 7
          %v2792 = vsub.s32 %v2789, %v2791
          %v2793 = vrot.slane %v2779, %v2792
          %v2794 = vcombine.low %v2335, %v2337
          %v2795 = vcombine.high %v2335, %v2337
          %v2797 = vunpack.c.l.s4 1983009808
          %v2798 = vunpack.c.0.s8 %v2797
          %v2799 = vlaneseq
          %v2800 = vshrl.u32 %v2799, 7
          %v2801 = vsub.s32 %v2798, %v2800
          %v2802 = vrot.slane %v2794, %v2801
          %v2804 = vunpack.c.l.s4 1983009808
          %v2805 = vunpack.c.0.s8 %v2804
          %v2806 = vlaneseq
          %v2807 = vshrl.u32 %v2806, 7
          %v2808 = vsub.s32 %v2805, %v2807
          %v2809 = vrot.slane %v2795, %v2808
          %v2810 = vcombine.low %v2754, %v2770
          %v2811 = vcombine.high %v2754, %v2770
          %v2813 = vunpack.c.l.s4 1934713408
          %v2814 = vunpack.c.0.s8 %v2813
          %v2815 = vlaneseq
          %v2816 = vshrl.u32 %v2815, 7
          %v2817 = vsub.s32 %v2814, %v2816
          %v2818 = vrot.slane %v2810, %v2817
          %v2820 = vunpack.c.l.s4 1934713408
          %v2821 = vunpack.c.0.s8 %v2820
          %v2822 = vlaneseq
          %v2823 = vshrl.u32 %v2822, 7
          %v2824 = vsub.s32 %v2821, %v2823
          %v2825 = vrot.slane %v2811, %v2824
          %v2826 = vcombine.low %v2761, %v2777
          %v2827 = vcombine.high %v2761, %v2777
          %v2829 = vunpack.c.l.s4 1934713408
          %v2830 = vunpack.c.0.s8 %v2829
          %v2831 = vlaneseq
          %v2832 = vshrl.u32 %v2831, 7
          %v2833 = vsub.s32 %v2830, %v2832
          %v2834 = vrot.slane %v2826, %v2833
          %v2836 = vunpack.c.l.s4 1934713408
          %v2837 = vunpack.c.0.s8 %v2836
          %v2838 = vlaneseq
          %v2839 = vshrl.u32 %v2838, 7
          %v2840 = vsub.s32 %v2837, %v2839
          %v2841 = vrot.slane %v2827, %v2840
          %v2842 = vcombine.low %v2786, %v2802
          %v2843 = vcombine.high %v2786, %v2802
          %v2845 = vunpack.c.l.s4 1934713408
          %v2846 = vunpack.c.0.s8 %v2845
          %v2847 = vlaneseq
          %v2848 = vshrl.u32 %v2847, 7
          %v2849 = vsub.s32 %v2846, %v2848
          %v2850 = vrot.slane %v2842, %v2849
          %v2852 = vunpack.c.l.s4 1934713408
          %v2853 = vunpack.c.0.s8 %v2852
          %v2854 = vlaneseq
          %v2855 = vshrl.u32 %v2854, 7
          %v2856 = vsub.s32 %v2853, %v2855
          %v2857 = vrot.slane %v2843, %v2856
          %v2858 = vcombine.low %v2793, %v2809
          %v2859 = vcombine.high %v2793, %v2809
          %v2861 = vunpack.c.l.s4 1934713408
          %v2862 = vunpack.c.0.s8 %v2861
          %v2863 = vlaneseq
          %v2864 = vshrl.u32 %v2863, 7
          %v2865 = vsub.s32 %v2862, %v2864
          %v2866 = vrot.slane %v2858, %v2865
          %v2868 = vunpack.c.l.s4 1934713408
          %v2869 = vunpack.c.0.s8 %v2868
          %v2870 = vlaneseq
          %v2871 = vshrl.u32 %v2870, 7
          %v2872 = vsub.s32 %v2869, %v2871
          %v2873 = vrot.slane %v2859, %v2872
          %v2874 = vcombine.low %v2818, %v2850
          %v2875 = vcombine.high %v2818, %v2850
          %v2876 = vcombine.low %v2825, %v2857
          %v2877 = vcombine.high %v2825, %v2857
          %v2878 = vcombine.low %v2834, %v2866
          %v2879 = vcombine.high %v2834, %v2866
          %v2880 = vcombine.low %v2841, %v2873
          %v2881 = vcombine.high %v2841, %v2873
          %2882 = vst.msk [vmem:[#allocation3] sm:$0xff] %vm1673, %v2466
          %2883 = vst.msk [vmem:[#allocation3 + $0x8] sm:$0xff] %vm1673, %v2602
          %2884 = vst.msk [vmem:[#allocation3 + $0x10] sm:$0xff] %vm1673, %v2738
          %2885 = vst.msk [vmem:[#allocation3 + $0x18] sm:$0xff] %vm1673, %v2874
          %2886 = vst.msk [vmem:[#allocation3 + $0x20] sm:$0xff] %vm1673, %v2467
          %2887 = vst.msk [vmem:[#allocation3 + $0x28] sm:$0xff] %vm1673, %v2603
          %2888 = vst.msk [vmem:[#allocation3 + $0x30] sm:$0xff] %vm1673, %v2739
          %2889 = vst.msk [vmem:[#allocation3 + $0x38] sm:$0xff] %vm1673, %v2875
          %2890 = vst.msk [vmem:[#allocation3 + $0x40] sm:$0xff] %vm1673, %v2468
          %2891 = vst.msk [vmem:[#allocation3 + $0x48] sm:$0xff] %vm1673, %v2604
          %2892 = vst.msk [vmem:[#allocation3 + $0x50] sm:$0xff] %vm1673, %v2740
          %2893 = vst.msk [vmem:[#allocation3 + $0x58] sm:$0xff] %vm1673, %v2876
          %2894 = vst.msk [vmem:[#allocation3 + $0x60] sm:$0xff] %vm1673, %v2469
          %2895 = vst.msk [vmem:[#allocation3 + $0x68] sm:$0xff] %vm1673, %v2605
          %2896 = vst.msk [vmem:[#allocation3 + $0x70] sm:$0xff] %vm1673, %v2741
          %2897 = vst.msk [vmem:[#allocation3 + $0x78] sm:$0xff] %vm1673, %v2877
          %2898 = vst.msk [vmem:[#allocation3 + $0x80] sm:$0xff] %vm1673, %v2470
          %2899 = vst.msk [vmem:[#allocation3 + $0x88] sm:$0xff] %vm1673, %v2606
          %2900 = vst.msk [vmem:[#allocation3 + $0x90] sm:$0xff] %vm1673, %v2742
          %2901 = vst.msk [vmem:[#allocation3 + $0x98] sm:$0xff] %vm1673, %v2878
          %2902 = vst.msk [vmem:[#allocation3 + $0xa0] sm:$0xff] %vm1673, %v2471
          %2903 = vst.msk [vmem:[#allocation3 + $0xa8] sm:$0xff] %vm1673, %v2607
          %2904 = vst.msk [vmem:[#allocation3 + $0xb0] sm:$0xff] %vm1673, %v2743
          %2905 = vst.msk [vmem:[#allocation3 + $0xb8] sm:$0xff] %vm1673, %v2879
          %2906 = vst.msk [vmem:[#allocation3 + $0xc0] sm:$0xff] %vm1673, %v2472
          %2907 = vst.msk [vmem:[#allocation3 + $0xc8] sm:$0xff] %vm1673, %v2608
          %2908 = vst.msk [vmem:[#allocation3 + $0xd0] sm:$0xff] %vm1673, %v2744
          %2909 = vst.msk [vmem:[#allocation3 + $0xd8] sm:$0xff] %vm1673, %v2880
          %2910 = vst.msk [vmem:[#allocation3 + $0xe0] sm:$0xff] %vm1673, %v2473
          %2911 = vst.msk [vmem:[#allocation3 + $0xe8] sm:$0xff] %vm1673, %v2609
          %2912 = vst.msk [vmem:[#allocation3 + $0xf0] sm:$0xff] %vm1673, %v2745
          %2913 = vst.msk [vmem:[#allocation3 + $0xf8] sm:$0xff] %vm1673, %v2881
        $region68: #{tpu_custom_call.1} parent=43 // pred_fallthru
          _
        %v2914 = vld [vmem:[%s313] sm:$0xff]
        %v2915 = vld [vmem:[#allocation10] sm:$0xff]
        %v2916 = vld [vmem:[#allocation10 + $0x8] sm:$0xff]
        %v2917 = vld [vmem:[#allocation10 + $0x10] sm:$0xff]
        %v2918 = vld [vmem:[#allocation10 + $0x18] sm:$0xff]
        %v2919 = vld [vmem:[#allocation10 + $0x20] sm:$0xff]
        %v2920 = vld [vmem:[#allocation10 + $0x28] sm:$0xff]
        %v2921 = vld [vmem:[#allocation10 + $0x30] sm:$0xff]
        %v2922 = vld [vmem:[#allocation10 + $0x38] sm:$0xff]
        %v2923 = vld [vmem:[#allocation10 + $0x40] sm:$0xff]
        %v2924 = vld [vmem:[#allocation10 + $0x48] sm:$0xff]
        %v2925 = vld [vmem:[#allocation10 + $0x50] sm:$0xff]
        %v2926 = vld [vmem:[#allocation10 + $0x58] sm:$0xff]
        %v2927 = vld [vmem:[#allocation10 + $0x60] sm:$0xff]
        %v2928 = vld [vmem:[#allocation10 + $0x68] sm:$0xff]
        %v2929 = vld [vmem:[#allocation10 + $0x70] sm:$0xff]
        %v2930 = vld [vmem:[#allocation10 + $0x78] sm:$0xff]
        %2931 = vmatprep.subr.mxu0 0.0
        %2932 = vmatpush1.msra.mxu0 %v2915
        %2933 = vmatprep.subr.mxu0 0.0
        %2934 = vmatpush1.msra.mxu0 %v2916
        %2935 = vmatprep.subr.mxu0 0.0
        %2936 = vmatpush1.msra.mxu0 %v2917
        %2937 = vmatprep.subr.mxu0 0.0
        %2938 = vmatpush1.msra.mxu0 %v2918
        %2939 = vmatprep.subr.mxu0 0.0
        %2940 = vmatpush1.msra.mxu0 %v2919
        %2941 = vmatprep.subr.mxu0 0.0
        %2942 = vmatpush1.msra.mxu0 %v2920
        %2943 = vmatprep.subr.mxu0 0.0
        %2944 = vmatpush1.msra.mxu0 %v2921
        %2945 = vmatprep.subr.mxu0 0.0
        %2946 = vmatpush1.msra.mxu0 %v2922
        %2947 = vmatprep.subr.mxu0 0.0
        %2948 = vmatpush1.msra.mxu0 %v2923
        %2949 = vmatprep.subr.mxu0 0.0
        %2950 = vmatpush1.msra.mxu0 %v2924
        %2951 = vmatprep.subr.mxu0 0.0
        %2952 = vmatpush1.msra.mxu0 %v2925
        %2953 = vmatprep.subr.mxu0 0.0
        %2954 = vmatpush1.msra.mxu0 %v2926
        %2955 = vmatprep.subr.mxu0 0.0
        %2956 = vmatpush1.msra.mxu0 %v2927
        %2957 = vmatprep.subr.mxu0 0.0
        %2958 = vmatpush1.msra.mxu0 %v2928
        %2959 = vmatprep.subr.mxu0 0.0
        %2960 = vmatpush1.msra.mxu0 %v2929
        %2961 = vmatprep.subr.mxu0 0.0
        %2962 = vmatpush1.msra.mxu0 %v2930
        %2963 = vmatprep.subr.mxu0 0.0
        %2964 = vmatpush1.msra.mxu0 0.0
        %2965 = vmatprep.subr.mxu0 0.0
        %2966 = vmatpush1.msra.mxu0 0.0
        %2967 = vmatprep.subr.mxu0 0.0
        %2968 = vmatpush1.msra.mxu0 0.0
        %2969 = vmatprep.subr.mxu0 0.0
        %2970 = vmatpush1.msra.mxu0 0.0
        %2971 = vmatprep.subr.mxu0 0.0
        %2972 = vmatpush1.msra.mxu0 0.0
        %2973 = vmatprep.subr.mxu0 0.0
        %2974 = vmatpush1.msra.mxu0 0.0
        %2975 = vmatprep.subr.mxu0 0.0
        %2976 = vmatpush1.msra.mxu0 0.0
        %2977 = vmatprep.subr.mxu0 0.0
        %2978 = vmatpush1.msra.mxu0 0.0
        %2979 = vmatprep.subr.mxu0 0.0
        %2980 = vmatpush1.msra.mxu0 0.0
        %2981 = vmatprep.subr.mxu0 0.0
        %2982 = vmatpush1.msra.mxu0 0.0
        %2983 = vmatprep.subr.mxu0 0.0
        %2984 = vmatpush1.msra.mxu0 0.0
        %2985 = vmatprep.subr.mxu0 0.0
        %2986 = vmatpush1.msra.mxu0 0.0
        %2987 = vmatprep.subr.mxu0 0.0
        %2988 = vmatpush1.msra.mxu0 0.0
        %2989 = vmatprep.subr.mxu0 0.0
        %2990 = vmatpush1.msra.mxu0 0.0
        %2991 = vmatprep.subr.mxu0 0.0
        %2992 = vmatpush1.msra.mxu0 0.0
        %2993 = vmatprep.subr.mxu0 0.0
        %2994 = vmatpush1.msra.mxu0 0.0
        %2995 = vmatprep.mubr.f32.mxu0 0.0
        %2996 = vmatmul.mubr.f32.gmra.mrb[0].mxu0 %v2914
        %v2997 = vpop.f32.mrb[0].mxu0
        %v2998 = vadd.f32 0.0, %v2997
        %v2999 = vpop.f32.mrb[0].mxu0
        %3000 = vdwg.mxu0
        %3002 = vrot.lane.b32.xlu0 %v2998, 112
        %v3003 = vpop.permute.xlu0 %3002
        %3005 = vrot.lane.b32.xlu0 %v2998, 96
        %v3006 = vpop.permute.xlu0 %3005
        %3008 = vrot.lane.b32.xlu0 %v2998, 80
        %v3009 = vpop.permute.xlu0 %3008
        %3011 = vrot.lane.b32.xlu0 %v2998, 64
        %v3012 = vpop.permute.xlu0 %3011
        %3014 = vrot.lane.b32.xlu0 %v2998, 48
        %v3015 = vpop.permute.xlu0 %3014
        %3017 = vrot.lane.b32.xlu0 %v2998, 32
        %v3018 = vpop.permute.xlu0 %3017
        %3020 = vrot.lane.b32.xlu0 %v2998, 16
        %v3021 = vpop.permute.xlu0 %3020
        %v3023 = vcombine.low %v2998, %v3006
        %v3024 = vcombine.high %v2998, %v3006
        %v3026 = vunpack.c.l.s4 1983009808
        %v3027 = vunpack.c.0.s8 %v3026
        %v3028 = vlaneseq
        %v3029 = vshrl.u32 %v3028, 7
        %v3030 = vsub.s32 %v3027, %v3029
        %v3031 = vrot.slane %v3023, %v3030
        %v3033 = vunpack.c.l.s4 1983009808
        %v3034 = vunpack.c.0.s8 %v3033
        %v3035 = vlaneseq
        %v3036 = vshrl.u32 %v3035, 7
        %v3037 = vsub.s32 %v3034, %v3036
        %v3038 = vrot.slane %v3024, %v3037
        %v3039 = vcombine.low %v3003, %v3009
        %v3040 = vcombine.high %v3003, %v3009
        %v3042 = vunpack.c.l.s4 1983009808
        %v3043 = vunpack.c.0.s8 %v3042
        %v3044 = vlaneseq
        %v3045 = vshrl.u32 %v3044, 7
        %v3046 = vsub.s32 %v3043, %v3045
        %v3047 = vrot.slane %v3039, %v3046
        %v3049 = vunpack.c.l.s4 1983009808
        %v3050 = vunpack.c.0.s8 %v3049
        %v3051 = vlaneseq
        %v3052 = vshrl.u32 %v3051, 7
        %v3053 = vsub.s32 %v3050, %v3052
        %v3054 = vrot.slane %v3040, %v3053
        %v3055 = vcombine.low %v3012, %v3018
        %v3056 = vcombine.high %v3012, %v3018
        %v3058 = vunpack.c.l.s4 1983009808
        %v3059 = vunpack.c.0.s8 %v3058
        %v3060 = vlaneseq
        %v3061 = vshrl.u32 %v3060, 7
        %v3062 = vsub.s32 %v3059, %v3061
        %v3063 = vrot.slane %v3055, %v3062
        %v3065 = vunpack.c.l.s4 1983009808
        %v3066 = vunpack.c.0.s8 %v3065
        %v3067 = vlaneseq
        %v3068 = vshrl.u32 %v3067, 7
        %v3069 = vsub.s32 %v3066, %v3068
        %v3070 = vrot.slane %v3056, %v3069
        %v3071 = vcombine.low %v3015, %v3021
        %v3072 = vcombine.high %v3015, %v3021
        %v3074 = vunpack.c.l.s4 1983009808
        %v3075 = vunpack.c.0.s8 %v3074
        %v3076 = vlaneseq
        %v3077 = vshrl.u32 %v3076, 7
        %v3078 = vsub.s32 %v3075, %v3077
        %v3079 = vrot.slane %v3071, %v3078
        %v3081 = vunpack.c.l.s4 1983009808
        %v3082 = vunpack.c.0.s8 %v3081
        %v3083 = vlaneseq
        %v3084 = vshrl.u32 %v3083, 7
        %v3085 = vsub.s32 %v3082, %v3084
        %v3086 = vrot.slane %v3072, %v3085
        %v3087 = vcombine.low %v3031, %v3047
        %v3088 = vcombine.high %v3031, %v3047
        %v3090 = vunpack.c.l.s4 1934713408
        %v3091 = vunpack.c.0.s8 %v3090
        %v3092 = vlaneseq
        %v3093 = vshrl.u32 %v3092, 7
        %v3094 = vsub.s32 %v3091, %v3093
        %v3095 = vrot.slane %v3087, %v3094
        %v3097 = vunpack.c.l.s4 1934713408
        %v3098 = vunpack.c.0.s8 %v3097
        %v3099 = vlaneseq
        %v3100 = vshrl.u32 %v3099, 7
        %v3101 = vsub.s32 %v3098, %v3100
        %v3102 = vrot.slane %v3088, %v3101
        %v3103 = vcombine.low %v3038, %v3054
        %v3104 = vcombine.high %v3038, %v3054
        %v3106 = vunpack.c.l.s4 1934713408
        %v3107 = vunpack.c.0.s8 %v3106
        %v3108 = vlaneseq
        %v3109 = vshrl.u32 %v3108, 7
        %v3110 = vsub.s32 %v3107, %v3109
        %v3111 = vrot.slane %v3103, %v3110
        %v3113 = vunpack.c.l.s4 1934713408
        %v3114 = vunpack.c.0.s8 %v3113
        %v3115 = vlaneseq
        %v3116 = vshrl.u32 %v3115, 7
        %v3117 = vsub.s32 %v3114, %v3116
        %v3118 = vrot.slane %v3104, %v3117
        %v3119 = vcombine.low %v3063, %v3079
        %v3120 = vcombine.high %v3063, %v3079
        %v3122 = vunpack.c.l.s4 1934713408
        %v3123 = vunpack.c.0.s8 %v3122
        %v3124 = vlaneseq
        %v3125 = vshrl.u32 %v3124, 7
        %v3126 = vsub.s32 %v3123, %v3125
        %v3127 = vrot.slane %v3119, %v3126
        %v3129 = vunpack.c.l.s4 1934713408
        %v3130 = vunpack.c.0.s8 %v3129
        %v3131 = vlaneseq
        %v3132 = vshrl.u32 %v3131, 7
        %v3133 = vsub.s32 %v3130, %v3132
        %v3134 = vrot.slane %v3120, %v3133
        %v3135 = vcombine.low %v3070, %v3086
        %v3136 = vcombine.high %v3070, %v3086
        %v3138 = vunpack.c.l.s4 1934713408
        %v3139 = vunpack.c.0.s8 %v3138
        %v3140 = vlaneseq
        %v3141 = vshrl.u32 %v3140, 7
        %v3142 = vsub.s32 %v3139, %v3141
        %v3143 = vrot.slane %v3135, %v3142
        %v3145 = vunpack.c.l.s4 1934713408
        %v3146 = vunpack.c.0.s8 %v3145
        %v3147 = vlaneseq
        %v3148 = vshrl.u32 %v3147, 7
        %v3149 = vsub.s32 %v3146, %v3148
        %v3150 = vrot.slane %v3136, %v3149
        %v3151 = vcombine.low %v3095, %v3127
        %v3152 = vcombine.high %v3095, %v3127
        %v3153 = vcombine.low %v3102, %v3134
        %v3154 = vcombine.high %v3102, %v3134
        %v3155 = vcombine.low %v3111, %v3143
        %v3156 = vcombine.high %v3111, %v3143
        %v3157 = vcombine.low %v3118, %v3150
        %v3158 = vcombine.high %v3118, %v3150
        %v3159 = vcombine.low %v3151, %v3153
        %v3160 = vcombine.high %v3151, %v3153
        %v3162 = vunpack.c.l.s4 1983009808
        %v3163 = vunpack.c.0.s8 %v3162
        %v3164 = vlaneseq
        %v3165 = vshrl.u32 %v3164, 7
        %v3166 = vsub.s32 %v3163, %v3165
        %v3167 = vrot.slane %v3159, %v3166
        %v3169 = vunpack.c.l.s4 1983009808
        %v3170 = vunpack.c.0.s8 %v3169
        %v3171 = vlaneseq
        %v3172 = vshrl.u32 %v3171, 7
        %v3173 = vsub.s32 %v3170, %v3172
        %v3174 = vrot.slane %v3160, %v3173
        %v3175 = vcombine.low %v3152, %v3154
        %v3176 = vcombine.high %v3152, %v3154
        %v3178 = vunpack.c.l.s4 1983009808
        %v3179 = vunpack.c.0.s8 %v3178
        %v3180 = vlaneseq
        %v3181 = vshrl.u32 %v3180, 7
        %v3182 = vsub.s32 %v3179, %v3181
        %v3183 = vrot.slane %v3175, %v3182
        %v3185 = vunpack.c.l.s4 1983009808
        %v3186 = vunpack.c.0.s8 %v3185
        %v3187 = vlaneseq
        %v3188 = vshrl.u32 %v3187, 7
        %v3189 = vsub.s32 %v3186, %v3188
        %v3190 = vrot.slane %v3176, %v3189
        %v3191 = vcombine.low %v3155, %v3157
        %v3192 = vcombine.high %v3155, %v3157
        %v3194 = vunpack.c.l.s4 1983009808
        %v3195 = vunpack.c.0.s8 %v3194
        %v3196 = vlaneseq
        %v3197 = vshrl.u32 %v3196, 7
        %v3198 = vsub.s32 %v3195, %v3197
        %v3199 = vrot.slane %v3191, %v3198
        %v3201 = vunpack.c.l.s4 1983009808
        %v3202 = vunpack.c.0.s8 %v3201
        %v3203 = vlaneseq
        %v3204 = vshrl.u32 %v3203, 7
        %v3205 = vsub.s32 %v3202, %v3204
        %v3206 = vrot.slane %v3192, %v3205
        %v3207 = vcombine.low %v3156, %v3158
        %v3208 = vcombine.high %v3156, %v3158
        %v3210 = vunpack.c.l.s4 1983009808
        %v3211 = vunpack.c.0.s8 %v3210
        %v3212 = vlaneseq
        %v3213 = vshrl.u32 %v3212, 7
        %v3214 = vsub.s32 %v3211, %v3213
        %v3215 = vrot.slane %v3207, %v3214
        %v3217 = vunpack.c.l.s4 1983009808
        %v3218 = vunpack.c.0.s8 %v3217
        %v3219 = vlaneseq
        %v3220 = vshrl.u32 %v3219, 7
        %v3221 = vsub.s32 %v3218, %v3220
        %v3222 = vrot.slane %v3208, %v3221
        %v3223 = vcombine.low %v3167, %v3183
        %v3224 = vcombine.high %v3167, %v3183
        %v3226 = vunpack.c.l.s4 1934713408
        %v3227 = vunpack.c.0.s8 %v3226
        %v3228 = vlaneseq
        %v3229 = vshrl.u32 %v3228, 7
        %v3230 = vsub.s32 %v3227, %v3229
        %v3231 = vrot.slane %v3223, %v3230
        %v3233 = vunpack.c.l.s4 1934713408
        %v3234 = vunpack.c.0.s8 %v3233
        %v3235 = vlaneseq
        %v3236 = vshrl.u32 %v3235, 7
        %v3237 = vsub.s32 %v3234, %v3236
        %v3238 = vrot.slane %v3224, %v3237
        %v3239 = vcombine.low %v3174, %v3190
        %v3240 = vcombine.high %v3174, %v3190
        %v3242 = vunpack.c.l.s4 1934713408
        %v3243 = vunpack.c.0.s8 %v3242
        %v3244 = vlaneseq
        %v3245 = vshrl.u32 %v3244, 7
        %v3246 = vsub.s32 %v3243, %v3245
        %v3247 = vrot.slane %v3239, %v3246
        %v3249 = vunpack.c.l.s4 1934713408
        %v3250 = vunpack.c.0.s8 %v3249
        %v3251 = vlaneseq
        %v3252 = vshrl.u32 %v3251, 7
        %v3253 = vsub.s32 %v3250, %v3252
        %v3254 = vrot.slane %v3240, %v3253
        %v3255 = vcombine.low %v3199, %v3215
        %v3256 = vcombine.high %v3199, %v3215
        %v3258 = vunpack.c.l.s4 1934713408
        %v3259 = vunpack.c.0.s8 %v3258
        %v3260 = vlaneseq
        %v3261 = vshrl.u32 %v3260, 7
        %v3262 = vsub.s32 %v3259, %v3261
        %v3263 = vrot.slane %v3255, %v3262
        %v3265 = vunpack.c.l.s4 1934713408
        %v3266 = vunpack.c.0.s8 %v3265
        %v3267 = vlaneseq
        %v3268 = vshrl.u32 %v3267, 7
        %v3269 = vsub.s32 %v3266, %v3268
        %v3270 = vrot.slane %v3256, %v3269
        %v3271 = vcombine.low %v3206, %v3222
        %v3272 = vcombine.high %v3206, %v3222
        %v3274 = vunpack.c.l.s4 1934713408
        %v3275 = vunpack.c.0.s8 %v3274
        %v3276 = vlaneseq
        %v3277 = vshrl.u32 %v3276, 7
        %v3278 = vsub.s32 %v3275, %v3277
        %v3279 = vrot.slane %v3271, %v3278
        %v3281 = vunpack.c.l.s4 1934713408
        %v3282 = vunpack.c.0.s8 %v3281
        %v3283 = vlaneseq
        %v3284 = vshrl.u32 %v3283, 7
        %v3285 = vsub.s32 %v3282, %v3284
        %v3286 = vrot.slane %v3272, %v3285
        %v3287 = vcombine.low %v3231, %v3263
        %v3288 = vcombine.high %v3231, %v3263
        %v3289 = vcombine.low %v3238, %v3270
        %v3290 = vcombine.high %v3238, %v3270
        %v3291 = vcombine.low %v3247, %v3279
        %v3292 = vcombine.high %v3247, %v3279
        %v3293 = vcombine.low %v3254, %v3286
        %v3294 = vcombine.high %v3254, %v3286
        %v3295 = vld [vmem:[#allocation2] sm:$0xff]
        %v3296 = vld [vmem:[#allocation2 + $0x8] sm:$0xff]
        %v3297 = vld [vmem:[#allocation2 + $0x10] sm:$0xff]
        %v3298 = vld [vmem:[#allocation2 + $0x18] sm:$0xff]
        %v3299 = vld [vmem:[#allocation3] sm:$0xff]
        %v3300 = vld [vmem:[#allocation3 + $0x8] sm:$0xff]
        %v3301 = vld [vmem:[#allocation3 + $0x10] sm:$0xff]
        %v3302 = vld [vmem:[#allocation3 + $0x18] sm:$0xff]
        %vm3303 = vcmask 130048
        %v3305 = vsel %vm3303, %v3287, 0
        %v3308 = vsel %vm3303, %v3295, 0
        %v3311 = vsel %vm3303, %v3296, 0
        %v3314 = vsel %vm3303, %v3297, 0
        %v3317 = vsel %vm3303, %v3298, 0
        %3319 = vmatprep.subr.mxu0 0.0
        %3320 = vmatpush1.xpose.msra.mxu0 %v3308
        %3321 = vmatprep.subr.mxu0 0.0
        %3322 = vmatpush1.xpose.msra.mxu0 %v3311
        %3323 = vmatprep.subr.mxu0 0.0
        %3324 = vmatpush1.xpose.msra.mxu0 %v3314
        %3325 = vmatprep.subr.mxu0 0.0
        %3326 = vmatpush1.xpose.msra.mxu0 %v3317
        %3327 = vmatprep.subr.mxu0 0.0
        %3328 = vmatpush1.xpose.msra.mxu0 0.0
        %3329 = vmatprep.subr.mxu0 0.0
        %3330 = vmatpush1.xpose.msra.mxu0 0.0
        %3331 = vmatprep.subr.mxu0 0.0
        %3332 = vmatpush1.xpose.msra.mxu0 0.0
        %3333 = vmatprep.subr.mxu0 0.0
        %3334 = vmatpush1.xpose.msra.mxu0 0.0
        %3335 = vmatprep.subr.mxu0 0.0
        %3336 = vmatpush1.xpose.msra.mxu0 0.0
        %3337 = vmatprep.subr.mxu0 0.0
        %3338 = vmatpush1.xpose.msra.mxu0 0.0
        %3339 = vmatprep.subr.mxu0 0.0
        %3340 = vmatpush1.xpose.msra.mxu0 0.0
        %3341 = vmatprep.subr.mxu0 0.0
        %3342 = vmatpush1.xpose.msra.mxu0 0.0
        %3343 = vmatprep.subr.mxu0 0.0
        %3344 = vmatpush1.xpose.msra.mxu0 0.0
        %3345 = vmatprep.subr.mxu0 0.0
        %3346 = vmatpush1.xpose.msra.mxu0 0.0
        %3347 = vmatprep.subr.mxu0 0.0
        %3348 = vmatpush1.xpose.msra.mxu0 0.0
        %3349 = vmatprep.subr.mxu0 0.0
        %3350 = vmatpush1.xpose.msra.mxu0 0.0
        %3351 = vmatprep.subr.mxu0 0.0
        %3352 = vmatpush1.xpose.msra.mxu0 0.0
        %3353 = vmatprep.subr.mxu0 0.0
        %3354 = vmatpush1.xpose.msra.mxu0 0.0
        %3355 = vmatprep.subr.mxu0 0.0
        %3356 = vmatpush1.xpose.msra.mxu0 0.0
        %3357 = vmatprep.subr.mxu0 0.0
        %3358 = vmatpush1.xpose.msra.mxu0 0.0
        %3359 = vmatprep.subr.mxu0 0.0
        %3360 = vmatpush1.xpose.msra.mxu0 0.0
        %3361 = vmatprep.subr.mxu0 0.0
        %3362 = vmatpush1.xpose.msra.mxu0 0.0
        %3363 = vmatprep.subr.mxu0 0.0
        %3364 = vmatpush1.xpose.msra.mxu0 0.0
        %3365 = vmatprep.subr.mxu0 0.0
        %3366 = vmatpush1.xpose.msra.mxu0 0.0
        %3367 = vmatprep.subr.mxu0 0.0
        %3368 = vmatpush1.xpose.msra.mxu0 0.0
        %3369 = vmatprep.subr.mxu0 0.0
        %3370 = vmatpush1.xpose.msra.mxu0 0.0
        %3371 = vmatprep.subr.mxu0 0.0
        %3372 = vmatpush1.xpose.msra.mxu0 0.0
        %3373 = vmatprep.subr.mxu0 0.0
        %3374 = vmatpush1.xpose.msra.mxu0 0.0
        %3375 = vmatprep.subr.mxu0 0.0
        %3376 = vmatpush1.xpose.msra.mxu0 0.0
        %3377 = vmatprep.subr.mxu0 0.0
        %3378 = vmatpush1.xpose.msra.mxu0 0.0
        %3379 = vmatprep.subr.mxu0 0.0
        %3380 = vmatpush1.xpose.msra.mxu0 0.0
        %3381 = vmatprep.subr.mxu0 0.0
        %3382 = vmatpush1.xpose.msra.mxu0 0.0
        %3383 = vmatprep.mubr.f32.mxu0 0.0
        %3384 = vmatmul.mubr.f32.gmra.mrb[0].mxu0 %v3305
        %v3385 = vpop.f32.mrb[0].mxu0
        %v3386 = vadd.f32 0.0, %v3385
        %v3387 = vpop.f32.mrb[0].mxu0
        %3388 = vdwg.mxu0
        %vm3389 = vcmask 261120
        %v3390 = vsel %vm3389, %v3386, -inf
        %3391 = vmax.xlane.f32.xlu0 %v3390
        %v3392 = vpop.xlane.xlu0 %3391
        %v3393 = vsub.f32 %v3386, %v3392
        %v3394 = vmul.f32 %v3393, 1.442695
        %v3395 = vpow.pop %v3394
        %v3396 = vsel %vm3389, %v3395, 0.0
        %3397 = vadd.xlane.f32.xlu0 %v3396
        %v3398 = vpop.xlane.xlu0 %3397
        %v3400 = vsel %vm3389, %v3395, 0
        %3402 = vmatprep.subr.mxu0 0.0
        %3403 = vmatpush1.msra.mxu0 %v3299
        %3404 = vmatprep.subr.mxu0 0.0
        %3405 = vmatpush1.msra.mxu0 %v3300
        %3406 = vmatprep.subr.mxu0 0.0
        %3407 = vmatpush1.msra.mxu0 %v3301
        %3408 = vmatprep.subr.mxu0 0.0
        %3409 = vmatpush1.msra.mxu0 %v3302
        %3410 = vmatprep.subr.mxu0 0.0
        %3411 = vmatpush1.msra.mxu0 0.0
        %3412 = vmatprep.subr.mxu0 0.0
        %3413 = vmatpush1.msra.mxu0 0.0
        %3414 = vmatprep.subr.mxu0 0.0
        %3415 = vmatpush1.msra.mxu0 0.0
        %3416 = vmatprep.subr.mxu0 0.0
        %3417 = vmatpush1.msra.mxu0 0.0
        %3418 = vmatprep.subr.mxu0 0.0
        %3419 = vmatpush1.msra.mxu0 0.0
        %3420 = vmatprep.subr.mxu0 0.0
        %3421 = vmatpush1.msra.mxu0 0.0
        %3422 = vmatprep.subr.mxu0 0.0
        %3423 = vmatpush1.msra.mxu0 0.0
        %3424 = vmatprep.subr.mxu0 0.0
        %3425 = vmatpush1.msra.mxu0 0.0
        %3426 = vmatprep.subr.mxu0 0.0
        %3427 = vmatpush1.msra.mxu0 0.0
        %3428 = vmatprep.subr.mxu0 0.0
        %3429 = vmatpush1.msra.mxu0 0.0
        %3430 = vmatprep.subr.mxu0 0.0
        %3431 = vmatpush1.msra.mxu0 0.0
        %3432 = vmatprep.subr.mxu0 0.0
        %3433 = vmatpush1.msra.mxu0 0.0
        %3434 = vmatprep.subr.mxu0 0.0
        %3435 = vmatpush1.msra.mxu0 0.0
        %3436 = vmatprep.subr.mxu0 0.0
        %3437 = vmatpush1.msra.mxu0 0.0
        %3438 = vmatprep.subr.mxu0 0.0
        %3439 = vmatpush1.msra.mxu0 0.0
        %3440 = vmatprep.subr.mxu0 0.0
        %3441 = vmatpush1.msra.mxu0 0.0
        %3442 = vmatprep.subr.mxu0 0.0
        %3443 = vmatpush1.msra.mxu0 0.0
        %3444 = vmatprep.subr.mxu0 0.0
        %3445 = vmatpush1.msra.mxu0 0.0
        %3446 = vmatprep.subr.mxu0 0.0
        %3447 = vmatpush1.msra.mxu0 0.0
        %3448 = vmatprep.subr.mxu0 0.0
        %3449 = vmatpush1.msra.mxu0 0.0
        %3450 = vmatprep.subr.mxu0 0.0
        %3451 = vmatpush1.msra.mxu0 0.0
        %3452 = vmatprep.subr.mxu0 0.0
        %3453 = vmatpush1.msra.mxu0 0.0
        %3454 = vmatprep.subr.mxu0 0.0
        %3455 = vmatpush1.msra.mxu0 0.0
        %3456 = vmatprep.subr.mxu0 0.0
        %3457 = vmatpush1.msra.mxu0 0.0
        %3458 = vmatprep.subr.mxu0 0.0
        %3459 = vmatpush1.msra.mxu0 0.0
        %3460 = vmatprep.subr.mxu0 0.0
        %3461 = vmatpush1.msra.mxu0 0.0
        %3462 = vmatprep.subr.mxu0 0.0
        %3463 = vmatpush1.msra.mxu0 0.0
        %3464 = vmatprep.subr.mxu0 0.0
        %3465 = vmatpush1.msra.mxu0 0.0
        %3466 = vmatprep.mubr.f32.mxu0 0.0
        %3467 = vmatmul.mubr.f32.gmra.mrb[0].mxu0 %v3400
        %v3468 = vpop.f32.mrb[0].mxu0
        %v3469 = vadd.f32 0.0, %v3468
        %v3470 = vpop.f32.mrb[0].mxu0
        %3471 = vdwg.mxu0
        %v3472 = vrcp.pop %v3398
        %v3473 = vmul.f32 1.0, %v3472
        %v3474 = vmul.f32 %v3469, %v3473
        %3475 = vst.msk [vmem:[#allocation4] sm:$0xff] %vm3303, %v3474
        %s3476 = scalar_lea.vmem [#allocation2], 32
        %v3477 = vld [vmem:[%s3476] sm:$0xff]
        %v3478 = vld [vmem:[%s3476 + $0x8] sm:$0xff]
        %v3479 = vld [vmem:[%s3476 + $0x10] sm:$0xff]
        %v3480 = vld [vmem:[%s3476 + $0x18] sm:$0xff]
        %s3481 = scalar_lea.vmem [#allocation3], 32
        %v3482 = vld [vmem:[%s3481] sm:$0xff]
        %v3483 = vld [vmem:[%s3481 + $0x8] sm:$0xff]
        %v3484 = vld [vmem:[%s3481 + $0x10] sm:$0xff]
        %v3485 = vld [vmem:[%s3481 + $0x18] sm:$0xff]
        %v3487 = vsel %vm3303, %v3288, 0
        %v3490 = vsel %vm3303, %v3477, 0
        %v3493 = vsel %vm3303, %v3478, 0
        %v3496 = vsel %vm3303, %v3479, 0
        %v3499 = vsel %vm3303, %v3480, 0
        %3501 = vmatprep.subr.mxu0 0.0
        %3502 = vmatpush1.xpose.msra.mxu0 %v3490
        %3503 = vmatprep.subr.mxu0 0.0
        %3504 = vmatpush1.xpose.msra.mxu0 %v3493
        %3505 = vmatprep.subr.mxu0 0.0
        %3506 = vmatpush1.xpose.msra.mxu0 %v3496
        %3507 = vmatprep.subr.mxu0 0.0
        %3508 = vmatpush1.xpose.msra.mxu0 %v3499
        %3509 = vmatprep.subr.mxu0 0.0
        %3510 = vmatpush1.xpose.msra.mxu0 0.0
        %3511 = vmatprep.subr.mxu0 0.0
        %3512 = vmatpush1.xpose.msra.mxu0 0.0
        %3513 = vmatprep.subr.mxu0 0.0
        %3514 = vmatpush1.xpose.msra.mxu0 0.0
        %3515 = vmatprep.subr.mxu0 0.0
        %3516 = vmatpush1.xpose.msra.mxu0 0.0
        %3517 = vmatprep.subr.mxu0 0.0
        %3518 = vmatpush1.xpose.msra.mxu0 0.0
        %3519 = vmatprep.subr.mxu0 0.0
        %3520 = vmatpush1.xpose.msra.mxu0 0.0
        %3521 = vmatprep.subr.mxu0 0.0
        %3522 = vmatpush1.xpose.msra.mxu0 0.0
        %3523 = vmatprep.subr.mxu0 0.0
        %3524 = vmatpush1.xpose.msra.mxu0 0.0
        %3525 = vmatprep.subr.mxu0 0.0
        %3526 = vmatpush1.xpose.msra.mxu0 0.0
        %3527 = vmatprep.subr.mxu0 0.0
        %3528 = vmatpush1.xpose.msra.mxu0 0.0
        %3529 = vmatprep.subr.mxu0 0.0
        %3530 = vmatpush1.xpose.msra.mxu0 0.0
        %3531 = vmatprep.subr.mxu0 0.0
        %3532 = vmatpush1.xpose.msra.mxu0 0.0
        %3533 = vmatprep.subr.mxu0 0.0
        %3534 = vmatpush1.xpose.msra.mxu0 0.0
        %3535 = vmatprep.subr.mxu0 0.0
        %3536 = vmatpush1.xpose.msra.mxu0 0.0
        %3537 = vmatprep.subr.mxu0 0.0
        %3538 = vmatpush1.xpose.msra.mxu0 0.0
        %3539 = vmatprep.subr.mxu0 0.0
        %3540 = vmatpush1.xpose.msra.mxu0 0.0
        %3541 = vmatprep.subr.mxu0 0.0
        %3542 = vmatpush1.xpose.msra.mxu0 0.0
        %3543 = vmatprep.subr.mxu0 0.0
        %3544 = vmatpush1.xpose.msra.mxu0 0.0
        %3545 = vmatprep.subr.mxu0 0.0
        %3546 = vmatpush1.xpose.msra.mxu0 0.0
        %3547 = vmatprep.subr.mxu0 0.0
        %3548 = vmatpush1.xpose.msra.mxu0 0.0
        %3549 = vmatprep.subr.mxu0 0.0
        %3550 = vmatpush1.xpose.msra.mxu0 0.0
        %3551 = vmatprep.subr.mxu0 0.0
        %3552 = vmatpush1.xpose.msra.mxu0 0.0
        %3553 = vmatprep.subr.mxu0 0.0
        %3554 = vmatpush1.xpose.msra.mxu0 0.0
        %3555 = vmatprep.subr.mxu0 0.0
        %3556 = vmatpush1.xpose.msra.mxu0 0.0
        %3557 = vmatprep.subr.mxu0 0.0
        %3558 = vmatpush1.xpose.msra.mxu0 0.0
        %3559 = vmatprep.subr.mxu0 0.0
        %3560 = vmatpush1.xpose.msra.mxu0 0.0
        %3561 = vmatprep.subr.mxu0 0.0
        %3562 = vmatpush1.xpose.msra.mxu0 0.0
        %3563 = vmatprep.subr.mxu0 0.0
        %3564 = vmatpush1.xpose.msra.mxu0 0.0
        %3565 = vmatprep.mubr.f32.mxu0 0.0
        %3566 = vmatmul.mubr.f32.gmra.mrb[0].mxu0 %v3487
        %v3567 = vpop.f32.mrb[0].mxu0
        %v3568 = vadd.f32 0.0, %v3567
        %v3569 = vpop.f32.mrb[0].mxu0
        %3570 = vdwg.mxu0
        %v3571 = vsel %vm3389, %v3568, -inf
        %3572 = vmax.xlane.f32.xlu0 %v3571
        %v3573 = vpop.xlane.xlu0 %3572
        %v3574 = vsub.f32 %v3568, %v3573
        %v3575 = vmul.f32 %v3574, 1.442695
        %v3576 = vpow.pop %v3575
        %v3577 = vsel %vm3389, %v3576, 0.0
        %3578 = vadd.xlane.f32.xlu0 %v3577
        %v3579 = vpop.xlane.xlu0 %3578
        %v3581 = vsel %vm3389, %v3576, 0
        %3583 = vmatprep.subr.mxu0 0.0
        %3584 = vmatpush1.msra.mxu0 %v3482
        %3585 = vmatprep.subr.mxu0 0.0
        %3586 = vmatpush1.msra.mxu0 %v3483
        %3587 = vmatprep.subr.mxu0 0.0
        %3588 = vmatpush1.msra.mxu0 %v3484
        %3589 = vmatprep.subr.mxu0 0.0
        %3590 = vmatpush1.msra.mxu0 %v3485
        %3591 = vmatprep.subr.mxu0 0.0
        %3592 = vmatpush1.msra.mxu0 0.0
        %3593 = vmatprep.subr.mxu0 0.0
        %3594 = vmatpush1.msra.mxu0 0.0
        %3595 = vmatprep.subr.mxu0 0.0
        %3596 = vmatpush1.msra.mxu0 0.0
        %3597 = vmatprep.subr.mxu0 0.0
        %3598 = vmatpush1.msra.mxu0 0.0
        %3599 = vmatprep.subr.mxu0 0.0
        %3600 = vmatpush1.msra.mxu0 0.0
        %3601 = vmatprep.subr.mxu0 0.0
        %3602 = vmatpush1.msra.mxu0 0.0
        %3603 = vmatprep.subr.mxu0 0.0
        %3604 = vmatpush1.msra.mxu0 0.0
        %3605 = vmatprep.subr.mxu0 0.0
        %3606 = vmatpush1.msra.mxu0 0.0
        %3607 = vmatprep.subr.mxu0 0.0
        %3608 = vmatpush1.msra.mxu0 0.0
        %3609 = vmatprep.subr.mxu0 0.0
        %3610 = vmatpush1.msra.mxu0 0.0
        %3611 = vmatprep.subr.mxu0 0.0
        %3612 = vmatpush1.msra.mxu0 0.0
        %3613 = vmatprep.subr.mxu0 0.0
        %3614 = vmatpush1.msra.mxu0 0.0
        %3615 = vmatprep.subr.mxu0 0.0
        %3616 = vmatpush1.msra.mxu0 0.0
        %3617 = vmatprep.subr.mxu0 0.0
        %3618 = vmatpush1.msra.mxu0 0.0
        %3619 = vmatprep.subr.mxu0 0.0
        %3620 = vmatpush1.msra.mxu0 0.0
        %3621 = vmatprep.subr.mxu0 0.0
        %3622 = vmatpush1.msra.mxu0 0.0
        %3623 = vmatprep.subr.mxu0 0.0
        %3624 = vmatpush1.msra.mxu0 0.0
        %3625 = vmatprep.subr.mxu0 0.0
        %3626 = vmatpush1.msra.mxu0 0.0
        %3627 = vmatprep.subr.mxu0 0.0
        %3628 = vmatpush1.msra.mxu0 0.0
        %3629 = vmatprep.subr.mxu0 0.0
        %3630 = vmatpush1.msra.mxu0 0.0
        %3631 = vmatprep.subr.mxu0 0.0
        %3632 = vmatpush1.msra.mxu0 0.0
        %3633 = vmatprep.subr.mxu0 0.0
        %3634 = vmatpush1.msra.mxu0 0.0
        %3635 = vmatprep.subr.mxu0 0.0
        %3636 = vmatpush1.msra.mxu0 0.0
        %3637 = vmatprep.subr.mxu0 0.0
        %3638 = vmatpush1.msra.mxu0 0.0
        %3639 = vmatprep.subr.mxu0 0.0
        %3640 = vmatpush1.msra.mxu0 0.0
        %3641 = vmatprep.subr.mxu0 0.0
        %3642 = vmatpush1.msra.mxu0 0.0
        %3643 = vmatprep.subr.mxu0 0.0
        %3644 = vmatpush1.msra.mxu0 0.0
        %3645 = vmatprep.subr.mxu0 0.0
        %3646 = vmatpush1.msra.mxu0 0.0
        %3647 = vmatprep.mubr.f32.mxu0 0.0
        %3648 = vmatmul.mubr.f32.gmra.mrb[0].mxu0 %v3581
        %v3649 = vpop.f32.mrb[0].mxu0
        %v3650 = vadd.f32 0.0, %v3649
        %v3651 = vpop.f32.mrb[0].mxu0
        %3652 = vdwg.mxu0
        %v3653 = vrcp.pop %v3579
        %v3654 = vmul.f32 1.0, %v3653
        %v3655 = vmul.f32 %v3650, %v3654
        %3657 = vrot.lane.b32.xlu0 %v3655, 16
        %v3658 = vpop.permute.xlu0 %3657
        %vm3660 = vcmask 261248
        %3661 = vst.msk [vmem:[#allocation4] sm:$0xff] %vm3660, %v3658
        %s3662 = scalar_lea.vmem [#allocation2], 64
        %v3663 = vld [vmem:[%s3662] sm:$0xff]
        %v3664 = vld [vmem:[%s3662 + $0x8] sm:$0xff]
        %v3665 = vld [vmem:[%s3662 + $0x10] sm:$0xff]
        %v3666 = vld [vmem:[%s3662 + $0x18] sm:$0xff]
        %s3667 = scalar_lea.vmem [#allocation3], 64
        %v3668 = vld [vmem:[%s3667] sm:$0xff]
        %v3669 = vld [vmem:[%s3667 + $0x8] sm:$0xff]
        %v3670 = vld [vmem:[%s3667 + $0x10] sm:$0xff]
        %v3671 = vld [vmem:[%s3667 + $0x18] sm:$0xff]
        %v3673 = vsel %vm3303, %v3289, 0
        %v3676 = vsel %vm3303, %v3663, 0
        %v3679 = vsel %vm3303, %v3664, 0
        %v3682 = vsel %vm3303, %v3665, 0
        %v3685 = vsel %vm3303, %v3666, 0
        %3687 = vmatprep.subr.mxu0 0.0
        %3688 = vmatpush1.xpose.msra.mxu0 %v3676
        %3689 = vmatprep.subr.mxu0 0.0
        %3690 = vmatpush1.xpose.msra.mxu0 %v3679
        %3691 = vmatprep.subr.mxu0 0.0
        %3692 = vmatpush1.xpose.msra.mxu0 %v3682
        %3693 = vmatprep.subr.mxu0 0.0
        %3694 = vmatpush1.xpose.msra.mxu0 %v3685
        %3695 = vmatprep.subr.mxu0 0.0
        %3696 = vmatpush1.xpose.msra.mxu0 0.0
        %3697 = vmatprep.subr.mxu0 0.0
        %3698 = vmatpush1.xpose.msra.mxu0 0.0
        %3699 = vmatprep.subr.mxu0 0.0
        %3700 = vmatpush1.xpose.msra.mxu0 0.0
        %3701 = vmatprep.subr.mxu0 0.0
        %3702 = vmatpush1.xpose.msra.mxu0 0.0
        %3703 = vmatprep.subr.mxu0 0.0
        %3704 = vmatpush1.xpose.msra.mxu0 0.0
        %3705 = vmatprep.subr.mxu0 0.0
        %3706 = vmatpush1.xpose.msra.mxu0 0.0
        %3707 = vmatprep.subr.mxu0 0.0
        %3708 = vmatpush1.xpose.msra.mxu0 0.0
        %3709 = vmatprep.subr.mxu0 0.0
        %3710 = vmatpush1.xpose.msra.mxu0 0.0
        %3711 = vmatprep.subr.mxu0 0.0
        %3712 = vmatpush1.xpose.msra.mxu0 0.0
        %3713 = vmatprep.subr.mxu0 0.0
        %3714 = vmatpush1.xpose.msra.mxu0 0.0
        %3715 = vmatprep.subr.mxu0 0.0
        %3716 = vmatpush1.xpose.msra.mxu0 0.0
        %3717 = vmatprep.subr.mxu0 0.0
        %3718 = vmatpush1.xpose.msra.mxu0 0.0
        %3719 = vmatprep.subr.mxu0 0.0
        %3720 = vmatpush1.xpose.msra.mxu0 0.0
        %3721 = vmatprep.subr.mxu0 0.0
        %3722 = vmatpush1.xpose.msra.mxu0 0.0
        %3723 = vmatprep.subr.mxu0 0.0
        %3724 = vmatpush1.xpose.msra.mxu0 0.0
        %3725 = vmatprep.subr.mxu0 0.0
        %3726 = vmatpush1.xpose.msra.mxu0 0.0
        %3727 = vmatprep.subr.mxu0 0.0
        %3728 = vmatpush1.xpose.msra.mxu0 0.0
        %3729 = vmatprep.subr.mxu0 0.0
        %3730 = vmatpush1.xpose.msra.mxu0 0.0
        %3731 = vmatprep.subr.mxu0 0.0
        %3732 = vmatpush1.xpose.msra.mxu0 0.0
        %3733 = vmatprep.subr.mxu0 0.0
        %3734 = vmatpush1.xpose.msra.mxu0 0.0
        %3735 = vmatprep.subr.mxu0 0.0
        %3736 = vmatpush1.xpose.msra.mxu0 0.0
        %3737 = vmatprep.subr.mxu0 0.0
        %3738 = vmatpush1.xpose.msra.mxu0 0.0
        %3739 = vmatprep.subr.mxu0 0.0
        %3740 = vmatpush1.xpose.msra.mxu0 0.0
        %3741 = vmatprep.subr.mxu0 0.0
        %3742 = vmatpush1.xpose.msra.mxu0 0.0
        %3743 = vmatprep.subr.mxu0 0.0
        %3744 = vmatpush1.xpose.msra.mxu0 0.0
        %3745 = vmatprep.subr.mxu0 0.0
        %3746 = vmatpush1.xpose.msra.mxu0 0.0
        %3747 = vmatprep.subr.mxu0 0.0
        %3748 = vmatpush1.xpose.msra.mxu0 0.0
        %3749 = vmatprep.subr.mxu0 0.0
        %3750 = vmatpush1.xpose.msra.mxu0 0.0
        %3751 = vmatprep.mubr.f32.mxu0 0.0
        %3752 = vmatmul.mubr.f32.gmra.mrb[0].mxu0 %v3673
        %v3753 = vpop.f32.mrb[0].mxu0
        %v3754 = vadd.f32 0.0, %v3753
        %v3755 = vpop.f32.mrb[0].mxu0
        %3756 = vdwg.mxu0
        %v3757 = vsel %vm3389, %v3754, -inf
        %3758 = vmax.xlane.f32.xlu0 %v3757
        %v3759 = vpop.xlane.xlu0 %3758
        %v3760 = vsub.f32 %v3754, %v3759
        %v3761 = vmul.f32 %v3760, 1.442695
        %v3762 = vpow.pop %v3761
        %v3763 = vsel %vm3389, %v3762, 0.0
        %3764 = vadd.xlane.f32.xlu0 %v3763
        %v3765 = vpop.xlane.xlu0 %3764
        %v3767 = vsel %vm3389, %v3762, 0
        %3769 = vmatprep.subr.mxu0 0.0
        %3770 = vmatpush1.msra.mxu0 %v3668
        %3771 = vmatprep.subr.mxu0 0.0
        %3772 = vmatpush1.msra.mxu0 %v3669
        %3773 = vmatprep.subr.mxu0 0.0
        %3774 = vmatpush1.msra.mxu0 %v3670
        %3775 = vmatprep.subr.mxu0 0.0
        %3776 = vmatpush1.msra.mxu0 %v3671
        %3777 = vmatprep.subr.mxu0 0.0
        %3778 = vmatpush1.msra.mxu0 0.0
        %3779 = vmatprep.subr.mxu0 0.0
        %3780 = vmatpush1.msra.mxu0 0.0
        %3781 = vmatprep.subr.mxu0 0.0
        %3782 = vmatpush1.msra.mxu0 0.0
        %3783 = vmatprep.subr.mxu0 0.0
        %3784 = vmatpush1.msra.mxu0 0.0
        %3785 = vmatprep.subr.mxu0 0.0
        %3786 = vmatpush1.msra.mxu0 0.0
        %3787 = vmatprep.subr.mxu0 0.0
        %3788 = vmatpush1.msra.mxu0 0.0
        %3789 = vmatprep.subr.mxu0 0.0
        %3790 = vmatpush1.msra.mxu0 0.0
        %3791 = vmatprep.subr.mxu0 0.0
        %3792 = vmatpush1.msra.mxu0 0.0
        %3793 = vmatprep.subr.mxu0 0.0
        %3794 = vmatpush1.msra.mxu0 0.0
        %3795 = vmatprep.subr.mxu0 0.0
        %3796 = vmatpush1.msra.mxu0 0.0
        %3797 = vmatprep.subr.mxu0 0.0
        %3798 = vmatpush1.msra.mxu0 0.0
        %3799 = vmatprep.subr.mxu0 0.0
        %3800 = vmatpush1.msra.mxu0 0.0
        %3801 = vmatprep.subr.mxu0 0.0
        %3802 = vmatpush1.msra.mxu0 0.0
        %3803 = vmatprep.subr.mxu0 0.0
        %3804 = vmatpush1.msra.mxu0 0.0
        %3805 = vmatprep.subr.mxu0 0.0
        %3806 = vmatpush1.msra.mxu0 0.0
        %3807 = vmatprep.subr.mxu0 0.0
        %3808 = vmatpush1.msra.mxu0 0.0
        %3809 = vmatprep.subr.mxu0 0.0
        %3810 = vmatpush1.msra.mxu0 0.0
        %3811 = vmatprep.subr.mxu0 0.0
        %3812 = vmatpush1.msra.mxu0 0.0
        %3813 = vmatprep.subr.mxu0 0.0
        %3814 = vmatpush1.msra.mxu0 0.0
        %3815 = vmatprep.subr.mxu0 0.0
        %3816 = vmatpush1.msra.mxu0 0.0
        %3817 = vmatprep.subr.mxu0 0.0
        %3818 = vmatpush1.msra.mxu0 0.0
        %3819 = vmatprep.subr.mxu0 0.0
        %3820 = vmatpush1.msra.mxu0 0.0
        %3821 = vmatprep.subr.mxu0 0.0
        %3822 = vmatpush1.msra.mxu0 0.0
        %3823 = vmatprep.subr.mxu0 0.0
        %3824 = vmatpush1.msra.mxu0 0.0
        %3825 = vmatprep.subr.mxu0 0.0
        %3826 = vmatpush1.msra.mxu0 0.0
        %3827 = vmatprep.subr.mxu0 0.0
        %3828 = vmatpush1.msra.mxu0 0.0
        %3829 = vmatprep.subr.mxu0 0.0
        %3830 = vmatpush1.msra.mxu0 0.0
        %3831 = vmatprep.subr.mxu0 0.0
        %3832 = vmatpush1.msra.mxu0 0.0
        %3833 = vmatprep.mubr.f32.mxu0 0.0
        %3834 = vmatmul.mubr.f32.gmra.mrb[0].mxu0 %v3767
        %v3835 = vpop.f32.mrb[0].mxu0
        %v3836 = vadd.f32 0.0, %v3835
        %v3837 = vpop.f32.mrb[0].mxu0
        %3838 = vdwg.mxu0
        %v3839 = vrcp.pop %v3765
        %v3840 = vmul.f32 1.0, %v3839
        %v3841 = vmul.f32 %v3836, %v3840
        %3843 = vrot.lane.b32.xlu0 %v3841, 32
        %v3844 = vpop.permute.xlu0 %3843
        %vm3846 = vcmask 392448
        %3847 = vst.msk [vmem:[#allocation4] sm:$0xff] %vm3846, %v3844
        %s3848 = scalar_lea.vmem [#allocation2], 96
        %v3849 = vld [vmem:[%s3848] sm:$0xff]
        %v3850 = vld [vmem:[%s3848 + $0x8] sm:$0xff]
        %v3851 = vld [vmem:[%s3848 + $0x10] sm:$0xff]
        %v3852 = vld [vmem:[%s3848 + $0x18] sm:$0xff]
        %s3853 = scalar_lea.vmem [#allocation3], 96
        %v3854 = vld [vmem:[%s3853] sm:$0xff]
        %v3855 = vld [vmem:[%s3853 + $0x8] sm:$0xff]
        %v3856 = vld [vmem:[%s3853 + $0x10] sm:$0xff]
        %v3857 = vld [vmem:[%s3853 + $0x18] sm:$0xff]
        %v3859 = vsel %vm3303, %v3290, 0
        %v3862 = vsel %vm3303, %v3849, 0
        %v3865 = vsel %vm3303, %v3850, 0
        %v3868 = vsel %vm3303, %v3851, 0
        %v3871 = vsel %vm3303, %v3852, 0
        %3873 = vmatprep.subr.mxu0 0.0
        %3874 = vmatpush1.xpose.msra.mxu0 %v3862
        %3875 = vmatprep.subr.mxu0 0.0
        %3876 = vmatpush1.xpose.msra.mxu0 %v3865
        %3877 = vmatprep.subr.mxu0 0.0
        %3878 = vmatpush1.xpose.msra.mxu0 %v3868
        %3879 = vmatprep.subr.mxu0 0.0
        %3880 = vmatpush1.xpose.msra.mxu0 %v3871
        %3881 = vmatprep.subr.mxu0 0.0
        %3882 = vmatpush1.xpose.msra.mxu0 0.0
        %3883 = vmatprep.subr.mxu0 0.0
        %3884 = vmatpush1.xpose.msra.mxu0 0.0
        %3885 = vmatprep.subr.mxu0 0.0
        %3886 = vmatpush1.xpose.msra.mxu0 0.0
        %3887 = vmatprep.subr.mxu0 0.0
        %3888 = vmatpush1.xpose.msra.mxu0 0.0
        %3889 = vmatprep.subr.mxu0 0.0
        %3890 = vmatpush1.xpose.msra.mxu0 0.0
        %3891 = vmatprep.subr.mxu0 0.0
        %3892 = vmatpush1.xpose.msra.mxu0 0.0
        %3893 = vmatprep.subr.mxu0 0.0
        %3894 = vmatpush1.xpose.msra.mxu0 0.0
        %3895 = vmatprep.subr.mxu0 0.0
        %3896 = vmatpush1.xpose.msra.mxu0 0.0
        %3897 = vmatprep.subr.mxu0 0.0
        %3898 = vmatpush1.xpose.msra.mxu0 0.0
        %3899 = vmatprep.subr.mxu0 0.0
        %3900 = vmatpush1.xpose.msra.mxu0 0.0
        %3901 = vmatprep.subr.mxu0 0.0
        %3902 = vmatpush1.xpose.msra.mxu0 0.0
        %3903 = vmatprep.subr.mxu0 0.0
        %3904 = vmatpush1.xpose.msra.mxu0 0.0
        %3905 = vmatprep.subr.mxu0 0.0
        %3906 = vmatpush1.xpose.msra.mxu0 0.0
        %3907 = vmatprep.subr.mxu0 0.0
        %3908 = vmatpush1.xpose.msra.mxu0 0.0
        %3909 = vmatprep.subr.mxu0 0.0
        %3910 = vmatpush1.xpose.msra.mxu0 0.0
        %3911 = vmatprep.subr.mxu0 0.0
        %3912 = vmatpush1.xpose.msra.mxu0 0.0
        %3913 = vmatprep.subr.mxu0 0.0
        %3914 = vmatpush1.xpose.msra.mxu0 0.0
        %3915 = vmatprep.subr.mxu0 0.0
        %3916 = vmatpush1.xpose.msra.mxu0 0.0
        %3917 = vmatprep.subr.mxu0 0.0
        %3918 = vmatpush1.xpose.msra.mxu0 0.0
        %3919 = vmatprep.subr.mxu0 0.0
        %3920 = vmatpush1.xpose.msra.mxu0 0.0
        %3921 = vmatprep.subr.mxu0 0.0
        %3922 = vmatpush1.xpose.msra.mxu0 0.0
        %3923 = vmatprep.subr.mxu0 0.0
        %3924 = vmatpush1.xpose.msra.mxu0 0.0
        %3925 = vmatprep.subr.mxu0 0.0
        %3926 = vmatpush1.xpose.msra.mxu0 0.0
        %3927 = vmatprep.subr.mxu0 0.0
        %3928 = vmatpush1.xpose.msra.mxu0 0.0
        %3929 = vmatprep.subr.mxu0 0.0
        %3930 = vmatpush1.xpose.msra.mxu0 0.0
        %3931 = vmatprep.subr.mxu0 0.0
        %3932 = vmatpush1.xpose.msra.mxu0 0.0
        %3933 = vmatprep.subr.mxu0 0.0
        %3934 = vmatpush1.xpose.msra.mxu0 0.0
        %3935 = vmatprep.subr.mxu0 0.0
        %3936 = vmatpush1.xpose.msra.mxu0 0.0
        %3937 = vmatprep.mubr.f32.mxu0 0.0
        %3938 = vmatmul.mubr.f32.gmra.mrb[0].mxu0 %v3859
        %v3939 = vpop.f32.mrb[0].mxu0
        %v3940 = vadd.f32 0.0, %v3939
        %v3941 = vpop.f32.mrb[0].mxu0
        %3942 = vdwg.mxu0
        %v3943 = vsel %vm3389, %v3940, -inf
        %3944 = vmax.xlane.f32.xlu0 %v3943
        %v3945 = vpop.xlane.xlu0 %3944
        %v3946 = vsub.f32 %v3940, %v3945
        %v3947 = vmul.f32 %v3946, 1.442695
        %v3948 = vpow.pop %v3947
        %v3949 = vsel %vm3389, %v3948, 0.0
        %3950 = vadd.xlane.f32.xlu0 %v3949
        %v3951 = vpop.xlane.xlu0 %3950
        %v3953 = vsel %vm3389, %v3948, 0
        %3955 = vmatprep.subr.mxu0 0.0
        %3956 = vmatpush1.msra.mxu0 %v3854
        %3957 = vmatprep.subr.mxu0 0.0
        %3958 = vmatpush1.msra.mxu0 %v3855
        %3959 = vmatprep.subr.mxu0 0.0
        %3960 = vmatpush1.msra.mxu0 %v3856
        %3961 = vmatprep.subr.mxu0 0.0
        %3962 = vmatpush1.msra.mxu0 %v3857
        %3963 = vmatprep.subr.mxu0 0.0
        %3964 = vmatpush1.msra.mxu0 0.0
        %3965 = vmatprep.subr.mxu0 0.0
        %3966 = vmatpush1.msra.mxu0 0.0
        %3967 = vmatprep.subr.mxu0 0.0
        %3968 = vmatpush1.msra.mxu0 0.0
        %3969 = vmatprep.subr.mxu0 0.0
        %3970 = vmatpush1.msra.mxu0 0.0
        %3971 = vmatprep.subr.mxu0 0.0
        %3972 = vmatpush1.msra.mxu0 0.0
        %3973 = vmatprep.subr.mxu0 0.0
        %3974 = vmatpush1.msra.mxu0 0.0
        %3975 = vmatprep.subr.mxu0 0.0
        %3976 = vmatpush1.msra.mxu0 0.0
        %3977 = vmatprep.subr.mxu0 0.0
        %3978 = vmatpush1.msra.mxu0 0.0
        %3979 = vmatprep.subr.mxu0 0.0
        %3980 = vmatpush1.msra.mxu0 0.0
        %3981 = vmatprep.subr.mxu0 0.0
        %3982 = vmatpush1.msra.mxu0 0.0
        %3983 = vmatprep.subr.mxu0 0.0
        %3984 = vmatpush1.msra.mxu0 0.0
        %3985 = vmatprep.subr.mxu0 0.0
        %3986 = vmatpush1.msra.mxu0 0.0
        %3987 = vmatprep.subr.mxu0 0.0
        %3988 = vmatpush1.msra.mxu0 0.0
        %3989 = vmatprep.subr.mxu0 0.0
        %3990 = vmatpush1.msra.mxu0 0.0
        %3991 = vmatprep.subr.mxu0 0.0
        %3992 = vmatpush1.msra.mxu0 0.0
        %3993 = vmatprep.subr.mxu0 0.0
        %3994 = vmatpush1.msra.mxu0 0.0
        %3995 = vmatprep.subr.mxu0 0.0
        %3996 = vmatpush1.msra.mxu0 0.0
        %3997 = vmatprep.subr.mxu0 0.0
        %3998 = vmatpush1.msra.mxu0 0.0
        %3999 = vmatprep.subr.mxu0 0.0
        %4000 = vmatpush1.msra.mxu0 0.0
        %4001 = vmatprep.subr.mxu0 0.0
        %4002 = vmatpush1.msra.mxu0 0.0
        %4003 = vmatprep.subr.mxu0 0.0
        %4004 = vmatpush1.msra.mxu0 0.0
        %4005 = vmatprep.subr.mxu0 0.0
        %4006 = vmatpush1.msra.mxu0 0.0
        %4007 = vmatprep.subr.mxu0 0.0
        %4008 = vmatpush1.msra.mxu0 0.0
        %4009 = vmatprep.subr.mxu0 0.0
        %4010 = vmatpush1.msra.mxu0 0.0
        %4011 = vmatprep.subr.mxu0 0.0
        %4012 = vmatpush1.msra.mxu0 0.0
        %4013 = vmatprep.subr.mxu0 0.0
        %4014 = vmatpush1.msra.mxu0 0.0
        %4015 = vmatprep.subr.mxu0 0.0
        %4016 = vmatpush1.msra.mxu0 0.0
        %4017 = vmatprep.subr.mxu0 0.0
        %4018 = vmatpush1.msra.mxu0 0.0
        %4019 = vmatprep.mubr.f32.mxu0 0.0
        %4020 = vmatmul.mubr.f32.gmra.mrb[0].mxu0 %v3953
        %v4021 = vpop.f32.mrb[0].mxu0
        %v4022 = vadd.f32 0.0, %v4021
        %v4023 = vpop.f32.mrb[0].mxu0
        %4024 = vdwg.mxu0
        %v4025 = vrcp.pop %v3951
        %v4026 = vmul.f32 1.0, %v4025
        %v4027 = vmul.f32 %v4022, %v4026
        %4029 = vrot.lane.b32.xlu0 %v4027, 48
        %v4030 = vpop.permute.xlu0 %4029
        %vm4032 = vcmask 523648
        %4033 = vst.msk [vmem:[#allocation4] sm:$0xff] %vm4032, %v4030
        %s4034 = scalar_lea.vmem [#allocation2], 128
        %v4035 = vld [vmem:[%s4034] sm:$0xff]
        %v4036 = vld [vmem:[%s4034 + $0x8] sm:$0xff]
        %v4037 = vld [vmem:[%s4034 + $0x10] sm:$0xff]
        %v4038 = vld [vmem:[%s4034 + $0x18] sm:$0xff]
        %s4039 = scalar_lea.vmem [#allocation3], 128
        %v4040 = vld [vmem:[%s4039] sm:$0xff]
        %v4041 = vld [vmem:[%s4039 + $0x8] sm:$0xff]
        %v4042 = vld [vmem:[%s4039 + $0x10] sm:$0xff]
        %v4043 = vld [vmem:[%s4039 + $0x18] sm:$0xff]
        %v4045 = vsel %vm3303, %v3291, 0
        %v4048 = vsel %vm3303, %v4035, 0
        %v4051 = vsel %vm3303, %v4036, 0
        %v4054 = vsel %vm3303, %v4037, 0
        %v4057 = vsel %vm3303, %v4038, 0
        %4059 = vmatprep.subr.mxu0 0.0
        %4060 = vmatpush1.xpose.msra.mxu0 %v4048
        %4061 = vmatprep.subr.mxu0 0.0
        %4062 = vmatpush1.xpose.msra.mxu0 %v4051
        %4063 = vmatprep.subr.mxu0 0.0
        %4064 = vmatpush1.xpose.msra.mxu0 %v4054
        %4065 = vmatprep.subr.mxu0 0.0
        %4066 = vmatpush1.xpose.msra.mxu0 %v4057
        %4067 = vmatprep.subr.mxu0 0.0
        %4068 = vmatpush1.xpose.msra.mxu0 0.0
        %4069 = vmatprep.subr.mxu0 0.0
        %4070 = vmatpush1.xpose.msra.mxu0 0.0
        %4071 = vmatprep.subr.mxu0 0.0
        %4072 = vmatpush1.xpose.msra.mxu0 0.0
        %4073 = vmatprep.subr.mxu0 0.0
        %4074 = vmatpush1.xpose.msra.mxu0 0.0
        %4075 = vmatprep.subr.mxu0 0.0
        %4076 = vmatpush1.xpose.msra.mxu0 0.0
        %4077 = vmatprep.subr.mxu0 0.0
        %4078 = vmatpush1.xpose.msra.mxu0 0.0
        %4079 = vmatprep.subr.mxu0 0.0
        %4080 = vmatpush1.xpose.msra.mxu0 0.0
        %4081 = vmatprep.subr.mxu0 0.0
        %4082 = vmatpush1.xpose.msra.mxu0 0.0
        %4083 = vmatprep.subr.mxu0 0.0
        %4084 = vmatpush1.xpose.msra.mxu0 0.0
        %4085 = vmatprep.subr.mxu0 0.0
        %4086 = vmatpush1.xpose.msra.mxu0 0.0
        %4087 = vmatprep.subr.mxu0 0.0
        %4088 = vmatpush1.xpose.msra.mxu0 0.0
        %4089 = vmatprep.subr.mxu0 0.0
        %4090 = vmatpush1.xpose.msra.mxu0 0.0
        %4091 = vmatprep.subr.mxu0 0.0
        %4092 = vmatpush1.xpose.msra.mxu0 0.0
        %4093 = vmatprep.subr.mxu0 0.0
        %4094 = vmatpush1.xpose.msra.mxu0 0.0
        %4095 = vmatprep.subr.mxu0 0.0
        %4096 = vmatpush1.xpose.msra.mxu0 0.0
        %4097 = vmatprep.subr.mxu0 0.0
        %4098 = vmatpush1.xpose.msra.mxu0 0.0
        %4099 = vmatprep.subr.mxu0 0.0
        %4100 = vmatpush1.xpose.msra.mxu0 0.0
        %4101 = vmatprep.subr.mxu0 0.0
        %4102 = vmatpush1.xpose.msra.mxu0 0.0
        %4103 = vmatprep.subr.mxu0 0.0
        %4104 = vmatpush1.xpose.msra.mxu0 0.0
        %4105 = vmatprep.subr.mxu0 0.0
        %4106 = vmatpush1.xpose.msra.mxu0 0.0
        %4107 = vmatprep.subr.mxu0 0.0
        %4108 = vmatpush1.xpose.msra.mxu0 0.0
        %4109 = vmatprep.subr.mxu0 0.0
        %4110 = vmatpush1.xpose.msra.mxu0 0.0
        %4111 = vmatprep.subr.mxu0 0.0
        %4112 = vmatpush1.xpose.msra.mxu0 0.0
        %4113 = vmatprep.subr.mxu0 0.0
        %4114 = vmatpush1.xpose.msra.mxu0 0.0
        %4115 = vmatprep.subr.mxu0 0.0
        %4116 = vmatpush1.xpose.msra.mxu0 0.0
        %4117 = vmatprep.subr.mxu0 0.0
        %4118 = vmatpush1.xpose.msra.mxu0 0.0
        %4119 = vmatprep.subr.mxu0 0.0
        %4120 = vmatpush1.xpose.msra.mxu0 0.0
        %4121 = vmatprep.subr.mxu0 0.0
        %4122 = vmatpush1.xpose.msra.mxu0 0.0
        %4123 = vmatprep.mubr.f32.mxu0 0.0
        %4124 = vmatmul.mubr.f32.gmra.mrb[0].mxu0 %v4045
        %v4125 = vpop.f32.mrb[0].mxu0
        %v4126 = vadd.f32 0.0, %v4125
        %v4127 = vpop.f32.mrb[0].mxu0
        %4128 = vdwg.mxu0
        %v4129 = vsel %vm3389, %v4126, -inf
        %4130 = vmax.xlane.f32.xlu0 %v4129
        %v4131 = vpop.xlane.xlu0 %4130
        %v4132 = vsub.f32 %v4126, %v4131
        %v4133 = vmul.f32 %v4132, 1.442695
        %v4134 = vpow.pop %v4133
        %v4135 = vsel %vm3389, %v4134, 0.0
        %4136 = vadd.xlane.f32.xlu0 %v4135
        %v4137 = vpop.xlane.xlu0 %4136
        %v4139 = vsel %vm3389, %v4134, 0
        %4141 = vmatprep.subr.mxu0 0.0
        %4142 = vmatpush1.msra.mxu0 %v4040
        %4143 = vmatprep.subr.mxu0 0.0
        %4144 = vmatpush1.msra.mxu0 %v4041
        %4145 = vmatprep.subr.mxu0 0.0
        %4146 = vmatpush1.msra.mxu0 %v4042
        %4147 = vmatprep.subr.mxu0 0.0
        %4148 = vmatpush1.msra.mxu0 %v4043
        %4149 = vmatprep.subr.mxu0 0.0
        %4150 = vmatpush1.msra.mxu0 0.0
        %4151 = vmatprep.subr.mxu0 0.0
        %4152 = vmatpush1.msra.mxu0 0.0
        %4153 = vmatprep.subr.mxu0 0.0
        %4154 = vmatpush1.msra.mxu0 0.0
        %4155 = vmatprep.subr.mxu0 0.0
        %4156 = vmatpush1.msra.mxu0 0.0
        %4157 = vmatprep.subr.mxu0 0.0
        %4158 = vmatpush1.msra.mxu0 0.0
        %4159 = vmatprep.subr.mxu0 0.0
        %4160 = vmatpush1.msra.mxu0 0.0
        %4161 = vmatprep.subr.mxu0 0.0
        %4162 = vmatpush1.msra.mxu0 0.0
        %4163 = vmatprep.subr.mxu0 0.0
        %4164 = vmatpush1.msra.mxu0 0.0
        %4165 = vmatprep.subr.mxu0 0.0
        %4166 = vmatpush1.msra.mxu0 0.0
        %4167 = vmatprep.subr.mxu0 0.0
        %4168 = vmatpush1.msra.mxu0 0.0
        %4169 = vmatprep.subr.mxu0 0.0
        %4170 = vmatpush1.msra.mxu0 0.0
        %4171 = vmatprep.subr.mxu0 0.0
        %4172 = vmatpush1.msra.mxu0 0.0
        %4173 = vmatprep.subr.mxu0 0.0
        %4174 = vmatpush1.msra.mxu0 0.0
        %4175 = vmatprep.subr.mxu0 0.0
        %4176 = vmatpush1.msra.mxu0 0.0
        %4177 = vmatprep.subr.mxu0 0.0
        %4178 = vmatpush1.msra.mxu0 0.0
        %4179 = vmatprep.subr.mxu0 0.0
        %4180 = vmatpush1.msra.mxu0 0.0
        %4181 = vmatprep.subr.mxu0 0.0
        %4182 = vmatpush1.msra.mxu0 0.0
        %4183 = vmatprep.subr.mxu0 0.0
        %4184 = vmatpush1.msra.mxu0 0.0
        %4185 = vmatprep.subr.mxu0 0.0
        %4186 = vmatpush1.msra.mxu0 0.0
        %4187 = vmatprep.subr.mxu0 0.0
        %4188 = vmatpush1.msra.mxu0 0.0
        %4189 = vmatprep.subr.mxu0 0.0
        %4190 = vmatpush1.msra.mxu0 0.0
        %4191 = vmatprep.subr.mxu0 0.0
        %4192 = vmatpush1.msra.mxu0 0.0
        %4193 = vmatprep.subr.mxu0 0.0
        %4194 = vmatpush1.msra.mxu0 0.0
        %4195 = vmatprep.subr.mxu0 0.0
        %4196 = vmatpush1.msra.mxu0 0.0
        %4197 = vmatprep.subr.mxu0 0.0
        %4198 = vmatpush1.msra.mxu0 0.0
        %4199 = vmatprep.subr.mxu0 0.0
        %4200 = vmatpush1.msra.mxu0 0.0
        %4201 = vmatprep.subr.mxu0 0.0
        %4202 = vmatpush1.msra.mxu0 0.0
        %4203 = vmatprep.subr.mxu0 0.0
        %4204 = vmatpush1.msra.mxu0 0.0
        %4205 = vmatprep.mubr.f32.mxu0 0.0
        %4206 = vmatmul.mubr.f32.gmra.mrb[0].mxu0 %v4139
        %v4207 = vpop.f32.mrb[0].mxu0
        %v4208 = vadd.f32 0.0, %v4207
        %v4209 = vpop.f32.mrb[0].mxu0
        %4210 = vdwg.mxu0
        %v4211 = vrcp.pop %v4137
        %v4212 = vmul.f32 1.0, %v4211
        %v4213 = vmul.f32 %v4208, %v4212
        %4215 = vrot.lane.b32.xlu0 %v4213, 64
        %v4216 = vpop.permute.xlu0 %4215
        %vm4218 = vcmask 654848
        %4219 = vst.msk [vmem:[#allocation4] sm:$0xff] %vm4218, %v4216
        %s4220 = scalar_lea.vmem [#allocation2], 160
        %v4221 = vld [vmem:[%s4220] sm:$0xff]
        %v4222 = vld [vmem:[%s4220 + $0x8] sm:$0xff]
        %v4223 = vld [vmem:[%s4220 + $0x10] sm:$0xff]
        %v4224 = vld [vmem:[%s4220 + $0x18] sm:$0xff]
        %s4225 = scalar_lea.vmem [#allocation3], 160
        %v4226 = vld [vmem:[%s4225] sm:$0xff]
        %v4227 = vld [vmem:[%s4225 + $0x8] sm:$0xff]
        %v4228 = vld [vmem:[%s4225 + $0x10] sm:$0xff]
        %v4229 = vld [vmem:[%s4225 + $0x18] sm:$0xff]
        %v4231 = vsel %vm3303, %v3292, 0
        %v4234 = vsel %vm3303, %v4221, 0
        %v4237 = vsel %vm3303, %v4222, 0
        %v4240 = vsel %vm3303, %v4223, 0
        %v4243 = vsel %vm3303, %v4224, 0
        %4245 = vmatprep.subr.mxu0 0.0
        %4246 = vmatpush1.xpose.msra.mxu0 %v4234
        %4247 = vmatprep.subr.mxu0 0.0
        %4248 = vmatpush1.xpose.msra.mxu0 %v4237
        %4249 = vmatprep.subr.mxu0 0.0
        %4250 = vmatpush1.xpose.msra.mxu0 %v4240
        %4251 = vmatprep.subr.mxu0 0.0
        %4252 = vmatpush1.xpose.msra.mxu0 %v4243
        %4253 = vmatprep.subr.mxu0 0.0
        %4254 = vmatpush1.xpose.msra.mxu0 0.0
        %4255 = vmatprep.subr.mxu0 0.0
        %4256 = vmatpush1.xpose.msra.mxu0 0.0
        %4257 = vmatprep.subr.mxu0 0.0
        %4258 = vmatpush1.xpose.msra.mxu0 0.0
        %4259 = vmatprep.subr.mxu0 0.0
        %4260 = vmatpush1.xpose.msra.mxu0 0.0
        %4261 = vmatprep.subr.mxu0 0.0
        %4262 = vmatpush1.xpose.msra.mxu0 0.0
        %4263 = vmatprep.subr.mxu0 0.0
        %4264 = vmatpush1.xpose.msra.mxu0 0.0
        %4265 = vmatprep.subr.mxu0 0.0
        %4266 = vmatpush1.xpose.msra.mxu0 0.0
        %4267 = vmatprep.subr.mxu0 0.0
        %4268 = vmatpush1.xpose.msra.mxu0 0.0
        %4269 = vmatprep.subr.mxu0 0.0
        %4270 = vmatpush1.xpose.msra.mxu0 0.0
        %4271 = vmatprep.subr.mxu0 0.0
        %4272 = vmatpush1.xpose.msra.mxu0 0.0
        %4273 = vmatprep.subr.mxu0 0.0
        %4274 = vmatpush1.xpose.msra.mxu0 0.0
        %4275 = vmatprep.subr.mxu0 0.0
        %4276 = vmatpush1.xpose.msra.mxu0 0.0
        %4277 = vmatprep.subr.mxu0 0.0
        %4278 = vmatpush1.xpose.msra.mxu0 0.0
        %4279 = vmatprep.subr.mxu0 0.0
        %4280 = vmatpush1.xpose.msra.mxu0 0.0
        %4281 = vmatprep.subr.mxu0 0.0
        %4282 = vmatpush1.xpose.msra.mxu0 0.0
        %4283 = vmatprep.subr.mxu0 0.0
        %4284 = vmatpush1.xpose.msra.mxu0 0.0
        %4285 = vmatprep.subr.mxu0 0.0
        %4286 = vmatpush1.xpose.msra.mxu0 0.0
        %4287 = vmatprep.subr.mxu0 0.0
        %4288 = vmatpush1.xpose.msra.mxu0 0.0
        %4289 = vmatprep.subr.mxu0 0.0
        %4290 = vmatpush1.xpose.msra.mxu0 0.0
        %4291 = vmatprep.subr.mxu0 0.0
        %4292 = vmatpush1.xpose.msra.mxu0 0.0
        %4293 = vmatprep.subr.mxu0 0.0
        %4294 = vmatpush1.xpose.msra.mxu0 0.0
        %4295 = vmatprep.subr.mxu0 0.0
        %4296 = vmatpush1.xpose.msra.mxu0 0.0
        %4297 = vmatprep.subr.mxu0 0.0
        %4298 = vmatpush1.xpose.msra.mxu0 0.0
        %4299 = vmatprep.subr.mxu0 0.0
        %4300 = vmatpush1.xpose.msra.mxu0 0.0
        %4301 = vmatprep.subr.mxu0 0.0
        %4302 = vmatpush1.xpose.msra.mxu0 0.0
        %4303 = vmatprep.subr.mxu0 0.0
        %4304 = vmatpush1.xpose.msra.mxu0 0.0
        %4305 = vmatprep.subr.mxu0 0.0
        %4306 = vmatpush1.xpose.msra.mxu0 0.0
        %4307 = vmatprep.subr.mxu0 0.0
        %4308 = vmatpush1.xpose.msra.mxu0 0.0
        %4309 = vmatprep.mubr.f32.mxu0 0.0
        %4310 = vmatmul.mubr.f32.gmra.mrb[0].mxu0 %v4231
        %v4311 = vpop.f32.mrb[0].mxu0
        %v4312 = vadd.f32 0.0, %v4311
        %v4313 = vpop.f32.mrb[0].mxu0
        %4314 = vdwg.mxu0
        %v4315 = vsel %vm3389, %v4312, -inf
        %4316 = vmax.xlane.f32.xlu0 %v4315
        %v4317 = vpop.xlane.xlu0 %4316
        %v4318 = vsub.f32 %v4312, %v4317
        %v4319 = vmul.f32 %v4318, 1.442695
        %v4320 = vpow.pop %v4319
        %v4321 = vsel %vm3389, %v4320, 0.0
        %4322 = vadd.xlane.f32.xlu0 %v4321
        %v4323 = vpop.xlane.xlu0 %4322
        %v4325 = vsel %vm3389, %v4320, 0
        %4327 = vmatprep.subr.mxu0 0.0
        %4328 = vmatpush1.msra.mxu0 %v4226
        %4329 = vmatprep.subr.mxu0 0.0
        %4330 = vmatpush1.msra.mxu0 %v4227
        %4331 = vmatprep.subr.mxu0 0.0
        %4332 = vmatpush1.msra.mxu0 %v4228
        %4333 = vmatprep.subr.mxu0 0.0
        %4334 = vmatpush1.msra.mxu0 %v4229
        %4335 = vmatprep.subr.mxu0 0.0
        %4336 = vmatpush1.msra.mxu0 0.0
        %4337 = vmatprep.subr.mxu0 0.0
        %4338 = vmatpush1.msra.mxu0 0.0
        %4339 = vmatprep.subr.mxu0 0.0
        %4340 = vmatpush1.msra.mxu0 0.0
        %4341 = vmatprep.subr.mxu0 0.0
        %4342 = vmatpush1.msra.mxu0 0.0
        %4343 = vmatprep.subr.mxu0 0.0
        %4344 = vmatpush1.msra.mxu0 0.0
        %4345 = vmatprep.subr.mxu0 0.0
        %4346 = vmatpush1.msra.mxu0 0.0
        %4347 = vmatprep.subr.mxu0 0.0
        %4348 = vmatpush1.msra.mxu0 0.0
        %4349 = vmatprep.subr.mxu0 0.0
        %4350 = vmatpush1.msra.mxu0 0.0
        %4351 = vmatprep.subr.mxu0 0.0
        %4352 = vmatpush1.msra.mxu0 0.0
        %4353 = vmatprep.subr.mxu0 0.0
        %4354 = vmatpush1.msra.mxu0 0.0
        %4355 = vmatprep.subr.mxu0 0.0
        %4356 = vmatpush1.msra.mxu0 0.0
        %4357 = vmatprep.subr.mxu0 0.0
        %4358 = vmatpush1.msra.mxu0 0.0
        %4359 = vmatprep.subr.mxu0 0.0
        %4360 = vmatpush1.msra.mxu0 0.0
        %4361 = vmatprep.subr.mxu0 0.0
        %4362 = vmatpush1.msra.mxu0 0.0
        %4363 = vmatprep.subr.mxu0 0.0
        %4364 = vmatpush1.msra.mxu0 0.0
        %4365 = vmatprep.subr.mxu0 0.0
        %4366 = vmatpush1.msra.mxu0 0.0
        %4367 = vmatprep.subr.mxu0 0.0
        %4368 = vmatpush1.msra.mxu0 0.0
        %4369 = vmatprep.subr.mxu0 0.0
        %4370 = vmatpush1.msra.mxu0 0.0
        %4371 = vmatprep.subr.mxu0 0.0
        %4372 = vmatpush1.msra.mxu0 0.0
        %4373 = vmatprep.subr.mxu0 0.0
        %4374 = vmatpush1.msra.mxu0 0.0
        %4375 = vmatprep.subr.mxu0 0.0
        %4376 = vmatpush1.msra.mxu0 0.0
        %4377 = vmatprep.subr.mxu0 0.0
        %4378 = vmatpush1.msra.mxu0 0.0
        %4379 = vmatprep.subr.mxu0 0.0
        %4380 = vmatpush1.msra.mxu0 0.0
        %4381 = vmatprep.subr.mxu0 0.0
        %4382 = vmatpush1.msra.mxu0 0.0
        %4383 = vmatprep.subr.mxu0 0.0
        %4384 = vmatpush1.msra.mxu0 0.0
        %4385 = vmatprep.subr.mxu0 0.0
        %4386 = vmatpush1.msra.mxu0 0.0
        %4387 = vmatprep.subr.mxu0 0.0
        %4388 = vmatpush1.msra.mxu0 0.0
        %4389 = vmatprep.subr.mxu0 0.0
        %4390 = vmatpush1.msra.mxu0 0.0
        %4391 = vmatprep.mubr.f32.mxu0 0.0
        %4392 = vmatmul.mubr.f32.gmra.mrb[0].mxu0 %v4325
        %v4393 = vpop.f32.mrb[0].mxu0
        %v4394 = vadd.f32 0.0, %v4393
        %v4395 = vpop.f32.mrb[0].mxu0
        %4396 = vdwg.mxu0
        %v4397 = vrcp.pop %v4323
        %v4398 = vmul.f32 1.0, %v4397
        %v4399 = vmul.f32 %v4394, %v4398
        %4401 = vrot.lane.b32.xlu0 %v4399, 80
        %v4402 = vpop.permute.xlu0 %4401
        %vm4404 = vcmask 786048
        %4405 = vst.msk [vmem:[#allocation4] sm:$0xff] %vm4404, %v4402
        %s4406 = scalar_lea.vmem [#allocation2], 192
        %v4407 = vld [vmem:[%s4406] sm:$0xff]
        %v4408 = vld [vmem:[%s4406 + $0x8] sm:$0xff]
        %v4409 = vld [vmem:[%s4406 + $0x10] sm:$0xff]
        %v4410 = vld [vmem:[%s4406 + $0x18] sm:$0xff]
        %s4411 = scalar_lea.vmem [#allocation3], 192
        %v4412 = vld [vmem:[%s4411] sm:$0xff]
        %v4413 = vld [vmem:[%s4411 + $0x8] sm:$0xff]
        %v4414 = vld [vmem:[%s4411 + $0x10] sm:$0xff]
        %v4415 = vld [vmem:[%s4411 + $0x18] sm:$0xff]
        %v4417 = vsel %vm3303, %v3293, 0
        %v4420 = vsel %vm3303, %v4407, 0
        %v4423 = vsel %vm3303, %v4408, 0
        %v4426 = vsel %vm3303, %v4409, 0
        %v4429 = vsel %vm3303, %v4410, 0
        %4431 = vmatprep.subr.mxu0 0.0
        %4432 = vmatpush1.xpose.msra.mxu0 %v4420
        %4433 = vmatprep.subr.mxu0 0.0
        %4434 = vmatpush1.xpose.msra.mxu0 %v4423
        %4435 = vmatprep.subr.mxu0 0.0
        %4436 = vmatpush1.xpose.msra.mxu0 %v4426
        %4437 = vmatprep.subr.mxu0 0.0
        %4438 = vmatpush1.xpose.msra.mxu0 %v4429
        %4439 = vmatprep.subr.mxu0 0.0
        %4440 = vmatpush1.xpose.msra.mxu0 0.0
        %4441 = vmatprep.subr.mxu0 0.0
        %4442 = vmatpush1.xpose.msra.mxu0 0.0
        %4443 = vmatprep.subr.mxu0 0.0
        %4444 = vmatpush1.xpose.msra.mxu0 0.0
        %4445 = vmatprep.subr.mxu0 0.0
        %4446 = vmatpush1.xpose.msra.mxu0 0.0
        %4447 = vmatprep.subr.mxu0 0.0
        %4448 = vmatpush1.xpose.msra.mxu0 0.0
        %4449 = vmatprep.subr.mxu0 0.0
        %4450 = vmatpush1.xpose.msra.mxu0 0.0
        %4451 = vmatprep.subr.mxu0 0.0
        %4452 = vmatpush1.xpose.msra.mxu0 0.0
        %4453 = vmatprep.subr.mxu0 0.0
        %4454 = vmatpush1.xpose.msra.mxu0 0.0
        %4455 = vmatprep.subr.mxu0 0.0
        %4456 = vmatpush1.xpose.msra.mxu0 0.0
        %4457 = vmatprep.subr.mxu0 0.0
        %4458 = vmatpush1.xpose.msra.mxu0 0.0
        %4459 = vmatprep.subr.mxu0 0.0
        %4460 = vmatpush1.xpose.msra.mxu0 0.0
        %4461 = vmatprep.subr.mxu0 0.0
        %4462 = vmatpush1.xpose.msra.mxu0 0.0
        %4463 = vmatprep.subr.mxu0 0.0
        %4464 = vmatpush1.xpose.msra.mxu0 0.0
        %4465 = vmatprep.subr.mxu0 0.0
        %4466 = vmatpush1.xpose.msra.mxu0 0.0
        %4467 = vmatprep.subr.mxu0 0.0
        %4468 = vmatpush1.xpose.msra.mxu0 0.0
        %4469 = vmatprep.subr.mxu0 0.0
        %4470 = vmatpush1.xpose.msra.mxu0 0.0
        %4471 = vmatprep.subr.mxu0 0.0
        %4472 = vmatpush1.xpose.msra.mxu0 0.0
        %4473 = vmatprep.subr.mxu0 0.0
        %4474 = vmatpush1.xpose.msra.mxu0 0.0
        %4475 = vmatprep.subr.mxu0 0.0
        %4476 = vmatpush1.xpose.msra.mxu0 0.0
        %4477 = vmatprep.subr.mxu0 0.0
        %4478 = vmatpush1.xpose.msra.mxu0 0.0
        %4479 = vmatprep.subr.mxu0 0.0
        %4480 = vmatpush1.xpose.msra.mxu0 0.0
        %4481 = vmatprep.subr.mxu0 0.0
        %4482 = vmatpush1.xpose.msra.mxu0 0.0
        %4483 = vmatprep.subr.mxu0 0.0
        %4484 = vmatpush1.xpose.msra.mxu0 0.0
        %4485 = vmatprep.subr.mxu0 0.0
        %4486 = vmatpush1.xpose.msra.mxu0 0.0
        %4487 = vmatprep.subr.mxu0 0.0
        %4488 = vmatpush1.xpose.msra.mxu0 0.0
        %4489 = vmatprep.subr.mxu0 0.0
        %4490 = vmatpush1.xpose.msra.mxu0 0.0
        %4491 = vmatprep.subr.mxu0 0.0
        %4492 = vmatpush1.xpose.msra.mxu0 0.0
        %4493 = vmatprep.subr.mxu0 0.0
        %4494 = vmatpush1.xpose.msra.mxu0 0.0
        %4495 = vmatprep.mubr.f32.mxu0 0.0
        %4496 = vmatmul.mubr.f32.gmra.mrb[0].mxu0 %v4417
        %v4497 = vpop.f32.mrb[0].mxu0
        %v4498 = vadd.f32 0.0, %v4497
        %v4499 = vpop.f32.mrb[0].mxu0
        %4500 = vdwg.mxu0
        %v4501 = vsel %vm3389, %v4498, -inf
        %4502 = vmax.xlane.f32.xlu0 %v4501
        %v4503 = vpop.xlane.xlu0 %4502
        %v4504 = vsub.f32 %v4498, %v4503
        %v4505 = vmul.f32 %v4504, 1.442695
        %v4506 = vpow.pop %v4505
        %v4507 = vsel %vm3389, %v4506, 0.0
        %4508 = vadd.xlane.f32.xlu0 %v4507
        %v4509 = vpop.xlane.xlu0 %4508
        %v4511 = vsel %vm3389, %v4506, 0
        %4513 = vmatprep.subr.mxu0 0.0
        %4514 = vmatpush1.msra.mxu0 %v4412
        %4515 = vmatprep.subr.mxu0 0.0
        %4516 = vmatpush1.msra.mxu0 %v4413
        %4517 = vmatprep.subr.mxu0 0.0
        %4518 = vmatpush1.msra.mxu0 %v4414
        %4519 = vmatprep.subr.mxu0 0.0
        %4520 = vmatpush1.msra.mxu0 %v4415
        %4521 = vmatprep.subr.mxu0 0.0
        %4522 = vmatpush1.msra.mxu0 0.0
        %4523 = vmatprep.subr.mxu0 0.0
        %4524 = vmatpush1.msra.mxu0 0.0
        %4525 = vmatprep.subr.mxu0 0.0
        %4526 = vmatpush1.msra.mxu0 0.0
        %4527 = vmatprep.subr.mxu0 0.0
        %4528 = vmatpush1.msra.mxu0 0.0
        %4529 = vmatprep.subr.mxu0 0.0
        %4530 = vmatpush1.msra.mxu0 0.0
        %4531 = vmatprep.subr.mxu0 0.0
        %4532 = vmatpush1.msra.mxu0 0.0
        %4533 = vmatprep.subr.mxu0 0.0
        %4534 = vmatpush1.msra.mxu0 0.0
        %4535 = vmatprep.subr.mxu0 0.0
        %4536 = vmatpush1.msra.mxu0 0.0
        %4537 = vmatprep.subr.mxu0 0.0
        %4538 = vmatpush1.msra.mxu0 0.0
        %4539 = vmatprep.subr.mxu0 0.0
        %4540 = vmatpush1.msra.mxu0 0.0
        %4541 = vmatprep.subr.mxu0 0.0
        %4542 = vmatpush1.msra.mxu0 0.0
        %4543 = vmatprep.subr.mxu0 0.0
        %4544 = vmatpush1.msra.mxu0 0.0
        %4545 = vmatprep.subr.mxu0 0.0
        %4546 = vmatpush1.msra.mxu0 0.0
        %4547 = vmatprep.subr.mxu0 0.0
        %4548 = vmatpush1.msra.mxu0 0.0
        %4549 = vmatprep.subr.mxu0 0.0
        %4550 = vmatpush1.msra.mxu0 0.0
        %4551 = vmatprep.subr.mxu0 0.0
        %4552 = vmatpush1.msra.mxu0 0.0
        %4553 = vmatprep.subr.mxu0 0.0
        %4554 = vmatpush1.msra.mxu0 0.0
        %4555 = vmatprep.subr.mxu0 0.0
        %4556 = vmatpush1.msra.mxu0 0.0
        %4557 = vmatprep.subr.mxu0 0.0
        %4558 = vmatpush1.msra.mxu0 0.0
        %4559 = vmatprep.subr.mxu0 0.0
        %4560 = vmatpush1.msra.mxu0 0.0
        %4561 = vmatprep.subr.mxu0 0.0
        %4562 = vmatpush1.msra.mxu0 0.0
        %4563 = vmatprep.subr.mxu0 0.0
        %4564 = vmatpush1.msra.mxu0 0.0
        %4565 = vmatprep.subr.mxu0 0.0
        %4566 = vmatpush1.msra.mxu0 0.0
        %4567 = vmatprep.subr.mxu0 0.0
        %4568 = vmatpush1.msra.mxu0 0.0
        %4569 = vmatprep.subr.mxu0 0.0
        %4570 = vmatpush1.msra.mxu0 0.0
        %4571 = vmatprep.subr.mxu0 0.0
        %4572 = vmatpush1.msra.mxu0 0.0
        %4573 = vmatprep.subr.mxu0 0.0
        %4574 = vmatpush1.msra.mxu0 0.0
        %4575 = vmatprep.subr.mxu0 0.0
        %4576 = vmatpush1.msra.mxu0 0.0
        %4577 = vmatprep.mubr.f32.mxu0 0.0
        %4578 = vmatmul.mubr.f32.gmra.mrb[0].mxu0 %v4511
        %v4579 = vpop.f32.mrb[0].mxu0
        %v4580 = vadd.f32 0.0, %v4579
        %v4581 = vpop.f32.mrb[0].mxu0
        %4582 = vdwg.mxu0
        %v4583 = vrcp.pop %v4509
        %v4584 = vmul.f32 1.0, %v4583
        %v4585 = vmul.f32 %v4580, %v4584
        %4587 = vrot.lane.b32.xlu0 %v4585, 96
        %v4588 = vpop.permute.xlu0 %4587
        %vm4590 = vcmask 917248
        %4591 = vst.msk [vmem:[#allocation4] sm:$0xff] %vm4590, %v4588
        %s4592 = scalar_lea.vmem [#allocation2], 224
        %v4593 = vld [vmem:[%s4592] sm:$0xff]
        %v4594 = vld [vmem:[%s4592 + $0x8] sm:$0xff]
        %v4595 = vld [vmem:[%s4592 + $0x10] sm:$0xff]
        %v4596 = vld [vmem:[%s4592 + $0x18] sm:$0xff]
        %s4597 = scalar_lea.vmem [#allocation3], 224
        %v4598 = vld [vmem:[%s4597] sm:$0xff]
        %v4599 = vld [vmem:[%s4597 + $0x8] sm:$0xff]
        %v4600 = vld [vmem:[%s4597 + $0x10] sm:$0xff]
        %v4601 = vld [vmem:[%s4597 + $0x18] sm:$0xff]
        %v4603 = vsel %vm3303, %v3294, 0
        %v4606 = vsel %vm3303, %v4593, 0
        %v4609 = vsel %vm3303, %v4594, 0
        %v4612 = vsel %vm3303, %v4595, 0
        %v4615 = vsel %vm3303, %v4596, 0
        %4617 = vmatprep.subr.mxu0 0.0
        %4618 = vmatpush1.xpose.msra.mxu0 %v4606
        %4619 = vmatprep.subr.mxu0 0.0
        %4620 = vmatpush1.xpose.msra.mxu0 %v4609
        %4621 = vmatprep.subr.mxu0 0.0
        %4622 = vmatpush1.xpose.msra.mxu0 %v4612
        %4623 = vmatprep.subr.mxu0 0.0
        %4624 = vmatpush1.xpose.msra.mxu0 %v4615
        %4625 = vmatprep.subr.mxu0 0.0
        %4626 = vmatpush1.xpose.msra.mxu0 0.0
        %4627 = vmatprep.subr.mxu0 0.0
        %4628 = vmatpush1.xpose.msra.mxu0 0.0
        %4629 = vmatprep.subr.mxu0 0.0
        %4630 = vmatpush1.xpose.msra.mxu0 0.0
        %4631 = vmatprep.subr.mxu0 0.0
        %4632 = vmatpush1.xpose.msra.mxu0 0.0
        %4633 = vmatprep.subr.mxu0 0.0
        %4634 = vmatpush1.xpose.msra.mxu0 0.0
        %4635 = vmatprep.subr.mxu0 0.0
        %4636 = vmatpush1.xpose.msra.mxu0 0.0
        %4637 = vmatprep.subr.mxu0 0.0
        %4638 = vmatpush1.xpose.msra.mxu0 0.0
        %4639 = vmatprep.subr.mxu0 0.0
        %4640 = vmatpush1.xpose.msra.mxu0 0.0
        %4641 = vmatprep.subr.mxu0 0.0
        %4642 = vmatpush1.xpose.msra.mxu0 0.0
        %4643 = vmatprep.subr.mxu0 0.0
        %4644 = vmatpush1.xpose.msra.mxu0 0.0
        %4645 = vmatprep.subr.mxu0 0.0
        %4646 = vmatpush1.xpose.msra.mxu0 0.0
        %4647 = vmatprep.subr.mxu0 0.0
        %4648 = vmatpush1.xpose.msra.mxu0 0.0
        %4649 = vmatprep.subr.mxu0 0.0
        %4650 = vmatpush1.xpose.msra.mxu0 0.0
        %4651 = vmatprep.subr.mxu0 0.0
        %4652 = vmatpush1.xpose.msra.mxu0 0.0
        %4653 = vmatprep.subr.mxu0 0.0
        %4654 = vmatpush1.xpose.msra.mxu0 0.0
        %4655 = vmatprep.subr.mxu0 0.0
        %4656 = vmatpush1.xpose.msra.mxu0 0.0
        %4657 = vmatprep.subr.mxu0 0.0
        %4658 = vmatpush1.xpose.msra.mxu0 0.0
        %4659 = vmatprep.subr.mxu0 0.0
        %4660 = vmatpush1.xpose.msra.mxu0 0.0
        %4661 = vmatprep.subr.mxu0 0.0
        %4662 = vmatpush1.xpose.msra.mxu0 0.0
        %4663 = vmatprep.subr.mxu0 0.0
        %4664 = vmatpush1.xpose.msra.mxu0 0.0
        %4665 = vmatprep.subr.mxu0 0.0
        %4666 = vmatpush1.xpose.msra.mxu0 0.0
        %4667 = vmatprep.subr.mxu0 0.0
        %4668 = vmatpush1.xpose.msra.mxu0 0.0
        %4669 = vmatprep.subr.mxu0 0.0
        %4670 = vmatpush1.xpose.msra.mxu0 0.0
        %4671 = vmatprep.subr.mxu0 0.0
        %4672 = vmatpush1.xpose.msra.mxu0 0.0
        %4673 = vmatprep.subr.mxu0 0.0
        %4674 = vmatpush1.xpose.msra.mxu0 0.0
        %4675 = vmatprep.subr.mxu0 0.0
        %4676 = vmatpush1.xpose.msra.mxu0 0.0
        %4677 = vmatprep.subr.mxu0 0.0
        %4678 = vmatpush1.xpose.msra.mxu0 0.0
        %4679 = vmatprep.subr.mxu0 0.0
        %4680 = vmatpush1.xpose.msra.mxu0 0.0
        %4681 = vmatprep.mubr.f32.mxu0 0.0
        %4682 = vmatmul.mubr.f32.gmra.mrb[0].mxu0 %v4603
        %v4683 = vpop.f32.mrb[0].mxu0
        %v4684 = vadd.f32 0.0, %v4683
        %v4685 = vpop.f32.mrb[0].mxu0
        %4686 = vdwg.mxu0
        %v4687 = vsel %vm3389, %v4684, -inf
        %4688 = vmax.xlane.f32.xlu0 %v4687
        %v4689 = vpop.xlane.xlu0 %4688
        %v4690 = vsub.f32 %v4684, %v4689
        %v4691 = vmul.f32 %v4690, 1.442695
        %v4692 = vpow.pop %v4691
        %v4693 = vsel %vm3389, %v4692, 0.0
        %4694 = vadd.xlane.f32.xlu0 %v4693
        %v4695 = vpop.xlane.xlu0 %4694
        %v4697 = vsel %vm3389, %v4692, 0
        %4699 = vmatprep.subr.mxu0 0.0
        %4700 = vmatpush1.msra.mxu0 %v4598
        %4701 = vmatprep.subr.mxu0 0.0
        %4702 = vmatpush1.msra.mxu0 %v4599
        %4703 = vmatprep.subr.mxu0 0.0
        %4704 = vmatpush1.msra.mxu0 %v4600
        %4705 = vmatprep.subr.mxu0 0.0
        %4706 = vmatpush1.msra.mxu0 %v4601
        %4707 = vmatprep.subr.mxu0 0.0
        %4708 = vmatpush1.msra.mxu0 0.0
        %4709 = vmatprep.subr.mxu0 0.0
        %4710 = vmatpush1.msra.mxu0 0.0
        %4711 = vmatprep.subr.mxu0 0.0
        %4712 = vmatpush1.msra.mxu0 0.0
        %4713 = vmatprep.subr.mxu0 0.0
        %4714 = vmatpush1.msra.mxu0 0.0
        %4715 = vmatprep.subr.mxu0 0.0
        %4716 = vmatpush1.msra.mxu0 0.0
        %4717 = vmatprep.subr.mxu0 0.0
        %4718 = vmatpush1.msra.mxu0 0.0
        %4719 = vmatprep.subr.mxu0 0.0
        %4720 = vmatpush1.msra.mxu0 0.0
        %4721 = vmatprep.subr.mxu0 0.0
        %4722 = vmatpush1.msra.mxu0 0.0
        %4723 = vmatprep.subr.mxu0 0.0
        %4724 = vmatpush1.msra.mxu0 0.0
        %4725 = vmatprep.subr.mxu0 0.0
        %4726 = vmatpush1.msra.mxu0 0.0
        %4727 = vmatprep.subr.mxu0 0.0
        %4728 = vmatpush1.msra.mxu0 0.0
        %4729 = vmatprep.subr.mxu0 0.0
        %4730 = vmatpush1.msra.mxu0 0.0
        %4731 = vmatprep.subr.mxu0 0.0
        %4732 = vmatpush1.msra.mxu0 0.0
        %4733 = vmatprep.subr.mxu0 0.0
        %4734 = vmatpush1.msra.mxu0 0.0
        %4735 = vmatprep.subr.mxu0 0.0
        %4736 = vmatpush1.msra.mxu0 0.0
        %4737 = vmatprep.subr.mxu0 0.0
        %4738 = vmatpush1.msra.mxu0 0.0
        %4739 = vmatprep.subr.mxu0 0.0
        %4740 = vmatpush1.msra.mxu0 0.0
        %4741 = vmatprep.subr.mxu0 0.0
        %4742 = vmatpush1.msra.mxu0 0.0
        %4743 = vmatprep.subr.mxu0 0.0
        %4744 = vmatpush1.msra.mxu0 0.0
        %4745 = vmatprep.subr.mxu0 0.0
        %4746 = vmatpush1.msra.mxu0 0.0
        %4747 = vmatprep.subr.mxu0 0.0
        %4748 = vmatpush1.msra.mxu0 0.0
        %4749 = vmatprep.subr.mxu0 0.0
        %4750 = vmatpush1.msra.mxu0 0.0
        %4751 = vmatprep.subr.mxu0 0.0
        %4752 = vmatpush1.msra.mxu0 0.0
        %4753 = vmatprep.subr.mxu0 0.0
        %4754 = vmatpush1.msra.mxu0 0.0
        %4755 = vmatprep.subr.mxu0 0.0
        %4756 = vmatpush1.msra.mxu0 0.0
        %4757 = vmatprep.subr.mxu0 0.0
        %4758 = vmatpush1.msra.mxu0 0.0
        %4759 = vmatprep.subr.mxu0 0.0
        %4760 = vmatpush1.msra.mxu0 0.0
        %4761 = vmatprep.subr.mxu0 0.0
        %4762 = vmatpush1.msra.mxu0 0.0
        %4763 = vmatprep.mubr.f32.mxu0 0.0
        %4764 = vmatmul.mubr.f32.gmra.mrb[0].mxu0 %v4697
        %v4765 = vpop.f32.mrb[0].mxu0
        %v4766 = vadd.f32 0.0, %v4765
        %v4767 = vpop.f32.mrb[0].mxu0
        %4768 = vdwg.mxu0
        %v4769 = vrcp.pop %v4695
        %v4770 = vmul.f32 1.0, %v4769
        %v4771 = vmul.f32 %v4766, %v4770
        %4773 = vrot.lane.b32.xlu0 %v4771, 112
        %v4774 = vpop.permute.xlu0 %4773
        %vm4776 = vcmask 1048448
        %4777 = vst.msk [vmem:[#allocation4] sm:$0xff] %vm4776, %v4774
        %v4778 = vld [vmem:[#allocation4] sm:$0xff]
        %v4779 = vld [vmem:[#allocation13] sm:$0xff]
        %v4780 = vld [vmem:[#allocation13 + $0x8] sm:$0xff]
        %v4781 = vld [vmem:[#allocation13 + $0x10] sm:$0xff]
        %v4782 = vld [vmem:[#allocation13 + $0x18] sm:$0xff]
        %v4783 = vld [vmem:[#allocation13 + $0x20] sm:$0xff]
        %v4784 = vld [vmem:[#allocation13 + $0x28] sm:$0xff]
        %v4785 = vld [vmem:[#allocation13 + $0x30] sm:$0xff]
        %v4786 = vld [vmem:[#allocation13 + $0x38] sm:$0xff]
        %v4787 = vld [vmem:[#allocation13 + $0x40] sm:$0xff]
        %v4788 = vld [vmem:[#allocation13 + $0x48] sm:$0xff]
        %v4789 = vld [vmem:[#allocation13 + $0x50] sm:$0xff]
        %v4790 = vld [vmem:[#allocation13 + $0x58] sm:$0xff]
        %v4791 = vld [vmem:[#allocation13 + $0x60] sm:$0xff]
        %v4792 = vld [vmem:[#allocation13 + $0x68] sm:$0xff]
        %v4793 = vld [vmem:[#allocation13 + $0x70] sm:$0xff]
        %v4794 = vld [vmem:[#allocation13 + $0x78] sm:$0xff]
        %v4795 = vld [vmem:[%s5] sm:$0x1]
        %v4797 = vlaneseq
        %v4798 = vshrl.u32 %v4797, 7
        %v4799 = vsub.s32 0, %v4798
        %v4800 = vrot.slane %v4795, %v4799
        %4802 = vmatprep.subr.mxu0 0.0
        %4803 = vmatpush1.msra.mxu0 %v4779
        %4804 = vmatprep.subr.mxu0 0.0
        %4805 = vmatpush1.msra.mxu0 %v4780
        %4806 = vmatprep.subr.mxu0 0.0
        %4807 = vmatpush1.msra.mxu0 %v4781
        %4808 = vmatprep.subr.mxu0 0.0
        %4809 = vmatpush1.msra.mxu0 %v4782
        %4810 = vmatprep.subr.mxu0 0.0
        %4811 = vmatpush1.msra.mxu0 %v4783
        %4812 = vmatprep.subr.mxu0 0.0
        %4813 = vmatpush1.msra.mxu0 %v4784
        %4814 = vmatprep.subr.mxu0 0.0
        %4815 = vmatpush1.msra.mxu0 %v4785
        %4816 = vmatprep.subr.mxu0 0.0
        %4817 = vmatpush1.msra.mxu0 %v4786
        %4818 = vmatprep.subr.mxu0 0.0
        %4819 = vmatpush1.msra.mxu0 %v4787
        %4820 = vmatprep.subr.mxu0 0.0
        %4821 = vmatpush1.msra.mxu0 %v4788
        %4822 = vmatprep.subr.mxu0 0.0
        %4823 = vmatpush1.msra.mxu0 %v4789
        %4824 = vmatprep.subr.mxu0 0.0
        %4825 = vmatpush1.msra.mxu0 %v4790
        %4826 = vmatprep.subr.mxu0 0.0
        %4827 = vmatpush1.msra.mxu0 %v4791
        %4828 = vmatprep.subr.mxu0 0.0
        %4829 = vmatpush1.msra.mxu0 %v4792
        %4830 = vmatprep.subr.mxu0 0.0
        %4831 = vmatpush1.msra.mxu0 %v4793
        %4832 = vmatprep.subr.mxu0 0.0
        %4833 = vmatpush1.msra.mxu0 %v4794
        %4834 = vmatprep.subr.mxu0 0.0
        %4835 = vmatpush1.msra.mxu0 0.0
        %4836 = vmatprep.subr.mxu0 0.0
        %4837 = vmatpush1.msra.mxu0 0.0
        %4838 = vmatprep.subr.mxu0 0.0
        %4839 = vmatpush1.msra.mxu0 0.0
        %4840 = vmatprep.subr.mxu0 0.0
        %4841 = vmatpush1.msra.mxu0 0.0
        %4842 = vmatprep.subr.mxu0 0.0
        %4843 = vmatpush1.msra.mxu0 0.0
        %4844 = vmatprep.subr.mxu0 0.0
        %4845 = vmatpush1.msra.mxu0 0.0
        %4846 = vmatprep.subr.mxu0 0.0
        %4847 = vmatpush1.msra.mxu0 0.0
        %4848 = vmatprep.subr.mxu0 0.0
        %4849 = vmatpush1.msra.mxu0 0.0
        %4850 = vmatprep.subr.mxu0 0.0
        %4851 = vmatpush1.msra.mxu0 0.0
        %4852 = vmatprep.subr.mxu0 0.0
        %4853 = vmatpush1.msra.mxu0 0.0
        %4854 = vmatprep.subr.mxu0 0.0
        %4855 = vmatpush1.msra.mxu0 0.0
        %4856 = vmatprep.subr.mxu0 0.0
        %4857 = vmatpush1.msra.mxu0 0.0
        %4858 = vmatprep.subr.mxu0 0.0
        %4859 = vmatpush1.msra.mxu0 0.0
        %4860 = vmatprep.subr.mxu0 0.0
        %4861 = vmatpush1.msra.mxu0 0.0
        %4862 = vmatprep.subr.mxu0 0.0
        %4863 = vmatpush1.msra.mxu0 0.0
        %4864 = vmatprep.subr.mxu0 0.0
        %4865 = vmatpush1.msra.mxu0 0.0
        %4866 = vmatprep.mubr.f32.mxu0 0.0
        %4867 = vmatmul.mubr.f32.gmra.mrb[0].mxu0 %v4778
        %v4868 = vpop.f32.mrb[0].mxu0
        %v4869 = vadd.f32 %v4800, %v4868
        %v4870 = vpop.f32.mrb[0].mxu0
        %4871 = vdwg.mxu0
        %4872 = vst [vmem:[%s367] sm:$0xff] %v4869
        %s4873 = sand.u32 %s187, 1
        %s4874 = scalar_lea.sflag [#allocation7], %s4873
        %s4875 = sand.u32 %s187, 1
        %s4876 = smul.addr %s4875, 8
        %s4877 = scalar_lea.vmem [#allocation14], %s4876
        // Predicated region
        $region69: #{tpu_custom_call.1} parent=43 // pred_check
          %p4878 = pneg %p197
        $region70: #{tpu_custom_call.1} parent=43 // pred_check_branch
          %4880 = sbr.rel (%p4878) target = $region72
        $region71: #{tpu_custom_call.1} parent=43 // pred_region
          %s4882 = ssub.s32 128, 128
          %4883 = vsyncadd %s4874, %s4882
          %s4884 = smul.addr %s31, 4
          %s4885 = sadd.s32 %s32, %s4884
          %s4886 = smul.addr %s4885, 128
          %s4887 = scalar_lea.hbm %s6, %s4886
          %s4889 = sshll.u32 %s4877, 4
          %s4890 = int_to_ptr.vmem [resolvable:$true] %s4889
          %4892 = dma.vmem_to_hbm [thread:$0]  %s4890, 128, %s4887, %s4874
        $region72: #{tpu_custom_call.1} parent=43 // pred_fallthru
          _
      $region44: #{tpu_custom_call.1} parent=5 // pred_fallthru
        _
      %p4893 = scmp.le.s32.totalorder 2, %s22
      // Predicated region
      $region73: #{tpu_custom_call.1} parent=5 // pred_check
        %p4894 = pneg %p4893
      $region74: #{tpu_custom_call.1} parent=5 // pred_check_branch
        %4896 = sbr.rel (%p4894) target = $region76
      $region75: #{tpu_custom_call.1} parent=5 // pred_region
        %s4897 = ssub.s32 %s22, 2
        // Predicated region
        $region77: #{tpu_custom_call.1} parent=75 // pred_check
          %p4898 = pneg %p203
        $region78: #{tpu_custom_call.1} parent=75 // pred_check_branch
          %4900 = sbr.rel (%p4898) target = $region80
        $region79: #{tpu_custom_call.1} parent=75 // pred_region
          %s4901 = sand.u32 %s188, 1
          %s4902 = scalar_lea.sflag [#allocation7], %s4901
          %s4903 = sand.u32 %s188, 1
          %s4904 = smul.addr %s4903, 8
          %s4905 = scalar_lea.vmem [#allocation14], %s4904
          %4906 = dma.done %s4902, 128
        $region80: #{tpu_custom_call.1} parent=75 // pred_fallthru
          _
      $region76: #{tpu_custom_call.1} parent=5 // pred_fallthru
        _
    $region6: #{tpu_custom_call.1} parent=1 // loop_footer
      %s26 = sadd.s32 1, %s22
    $region7: #{tpu_custom_call.1} parent=1 // loop_footer_branch
      %21 = sbr.rel target = $region3
    $region8: #{tpu_custom_call.1} parent=1 // loop_exit
      _
    %4907 = vsyncpa [#allocation6], 1
    %s4908 = scalar_lea.sflag [#allocation6], 1
    %4909 = vsyncpa %s4908, 1
    %4910 = vsyncpa [#allocation9], 1
    %s4911 = scalar_lea.sflag [#allocation9], 1
    %4912 = vsyncpa %s4911, 1
    %4913 = vsyncpa [#allocation12], 1
    %4914 = vsyncpa [#allocation7], 1
    %s4915 = scalar_lea.sflag [#allocation7], 1
    %4916 = vsyncpa %s4915, 1

</llo_original>
